<compile_context>
chip_gen: v7x
topology: tpu7x:2x2x1
jax: 0.10.0
libtpu: 0.0.40
codegen_flags: <defaults>
</compile_context>

<pallas_src>
import jax
import jax.numpy as jnp
from jax import lax
from jax.experimental import pallas as pl
from jax.experimental.pallas import tpu as pltpu

HIDDEN = 32
NUM_HEADS = 4
HEAD_DIM = HIDDEN // NUM_HEADS
GROUP = 7                    # data_args.train_group_size
SEQ = GROUP + 1              # [qry_cls ; doc group]
LN_EPS = 1e-12               # BERT LayerNorm eps
PACK = 4                     # batch items packed per 128-lane vector row
LANES = PACK * HIDDEN        # 128
TB_MAX = 256                 # max batch items per grid step
TB_ALIGN = 8 * PACK          # tb multiple of 32 -> 8-sublane-aligned out block
_NEG = -1e30                 # masks out the query position in the rank softmax


def _head_kernel(reps_ref, wqkv_ref, wo_ref, emat_ref, gmat_ref, vec_ref,
                 mask_ref, out_ref):
    """reps_ref: (G*SEQ, 128) block, PACK=4 batch items per 128-lane row.
    out_ref:  (G, 128) block; item c of a group occupies lanes c*32+[0:21]
              with [score_ir(7) ; score_rank(7) ; score_rank(7)].
    vec_ref rows (all 4x lane-tiled): 0=bq 1=bk 2=bv 3=bo 4=gamma 5=beta 6=wm.
    emat_ref: head-block (8-lane) sum+replicate matrix (bf16 0/1).
    gmat_ref: item-group (32-lane) sum+replicate matrix (f32 0/1).
    mask_ref: rows 0:8 = ir-placement mask, rows 8:16 = rank-placement mask.
    """
    f32 = jnp.float32
    x = reps_ref[...]                                        # (G*S, 128)
    g = x.shape[0] // SEQ

    # ---- fused QKV projection: one MXU matmul, block-diagonal weights keep
    # the 4-items-per-row lane packing intact.
    qkv = jnp.dot(x, wqkv_ref[...], preferred_element_type=f32)   # (G*S, 384)
    inv_sqrt_d = 1.0 / (HEAD_DIM ** 0.5)
    q = (qkv[:, 0 * LANES:1 * LANES] + vec_ref[0:1, :]) * inv_sqrt_d
    k = qkv[:, 1 * LANES:2 * LANES] + vec_ref[1:2, :]
    v = qkv[:, 2 * LANES:3 * LANES] + vec_ref[2:3, :]

    q3 = q.reshape(g, SEQ, LANES)
    k3 = k.reshape(g, SEQ, LANES)
    v3 = v.reshape(g, SEQ, LANES)

    # ---- multi-head attention, no per-head / per-item loops.  e_mat sums each
    # head's 8 lanes of q*k AND replicates the score back across them; bf16
    # operands (e_mat is exact in bf16) so the dominant matmul is single-pass.
    prod = (q3[:, :, None, :] * k3[:, None, :, :]).astype(jnp.bfloat16)
    scores = jnp.dot(prod.reshape(g * SEQ * SEQ, LANES), emat_ref[...],
                     preferred_element_type=f32)
    scores = scores.reshape(g, SEQ, SEQ, LANES)              # (G, Sq, Sk, 128)

    m = jnp.max(scores, axis=2, keepdims=True)
    p = jnp.exp(scores - m)
    probs = p / jnp.sum(p, axis=2, keepdims=True)            # softmax over keys
    ctx = jnp.sum(probs * v3[:, None, :, :], axis=2)         # (G, S, 128)
    ctx2 = ctx.reshape(g * SEQ, LANES)

    # ---- BertSelfOutput: dense + residual + LayerNorm (dropout = identity).
    # gmat gives 32-lane item-group sums (replicated), used for mean/var/dots.
    gmat = gmat_ref[...]
    hds = jnp.dot(ctx2, wo_ref[...], preferred_element_type=f32)
    hds = hds + vec_ref[3:4, :] + x
    mean = jnp.dot(hds, gmat, preferred_element_type=f32) * (1.0 / HIDDEN)
    d = hds - mean
    var = jnp.dot(d * d, gmat, preferred_element_type=f32) * (1.0 / HIDDEN)
    y = d * lax.rsqrt(var + LN_EPS)
    y = y * vec_ref[4:5, :] + vec_ref[5:6, :]                # (G*S, 128)

    # ---- final linear hidden -> 1 (mlp bias dropped: cancels in the softmax)
    logit = jnp.dot(y * vec_ref[6:7, :], gmat, preferred_element_type=f32)
    logit3 = logit.reshape(g, SEQ, LANES)                    # replicated/group

    # ---- rank scores: softmax over the GROUP doc positions (seq 1..7)
    sidx = lax.broadcasted_iota(jnp.int32, (1, SEQ, LANES), 1)
    lr = jnp.where(sidx == 0, _NEG, logit3)
    lm = jnp.max(lr, axis=1, keepdims=True)
    le = jnp.exp(lr - lm)
    rank = le / jnp.sum(le, axis=1, keepdims=True)           # (G, S, 128), s=0 -> 0

    # ---- score_ir = qry . doc within each item's 32-lane group (HIGHEST
    # precision: near-zero dot products need full f32 accuracy).
    x3 = x.reshape(g, SEQ, LANES)
    ir = jnp.dot((x3[:, 0:1, :] * x3).reshape(g * SEQ, LANES), gmat,
                 preferred_element_type=f32,
                 precision=lax.Precision.HIGHEST).reshape(g, SEQ, LANES)

    # ---- gather [ir | rank | rank] into lanes c*32 + [0:21] of one row/group
    m_ir = mask_ref[0:SEQ, :]                                # (S, 128)
    m_rank = mask_ref[SEQ:2 * SEQ, :]
    out_ref[...] = jnp.sum(ir * m_ir[None, :, :] + rank * m_rank[None, :, :],
                           axis=1)                           # (G, 128)


def _round_up(x, m):
    return ((x + m - 1) // m) * m


def _num_tensorcores():
    """TensorCores the Pallas 'parallel' grid axis can be split across."""
    try:
        kind = jax.devices()[0].device_kind.lower()
    except Exception:
        return 1
    return 2 if any(t in kind for t in ("v4", "v5p", "v7")) else 1


def _choose_tiling(batch, num_cores):
    """(tile_batch, num_blocks): tb multiple of 32, minimal padding; a single
    step on 1-TC chips, an even TC-balanced number of steps on 2-TC chips."""
    n_blk = max(1, pl.cdiv(batch, TB_MAX))
    if num_cores > 1:
        n_blk = max(n_blk, min(num_cores, pl.cdiv(batch, TB_ALIGN)))
        n_blk = _round_up(n_blk, num_cores)
    tb = _round_up(pl.cdiv(batch, n_blk), TB_ALIGN)
    return tb, n_blk


def _block_diag4(w):
    """(HIDDEN, n) -> (PACK*HIDDEN, PACK*n) 4-way block-diagonal replication."""
    return jnp.kron(jnp.eye(PACK, dtype=w.dtype), w)


def joint_retriever_att_forward(qry_cls, doc_cls, params, *, tile_batch=None):
    """qry_cls: (B, 32) f32; doc_cls: (B*GROUP, 32) f32 -> (B, 3*GROUP) f32."""
    B, H = qry_cls.shape
    assert H == HIDDEN and doc_cls.shape == (B * GROUP, H)
    f32 = jnp.float32

    doc_reps = doc_cls.reshape(B, GROUP, H)
    reps = jnp.concatenate([qry_cls[:, None, :], doc_reps], axis=1)   # (B, S, H)

    if tile_batch is None:
        tb, n_blk = _choose_tiling(B, _num_tensorcores())
    else:
        tb = _round_up(tile_batch, TB_ALIGN)
        n_blk = pl.cdiv(B, tb)
    b_pad = tb * n_blk
    if b_pad != B:
        reps = jnp.pad(reps, ((0, b_pad - B), (0, 0), (0, 0)))

    # lane-pack PACK=4 batch items per 128-lane row: row (g, s) holds items
    # 4g .. 4g+3 at seq position s in lane groups of 32.
    reps_packed = (reps.reshape(b_pad // PACK, PACK, SEQ, H)
                   .transpose(0, 2, 1, 3)
                   .reshape(b_pad // PACK * SEQ, LANES))

    # ---- packed weights / constants (hoisted out of the kernel) ----
    wqkv_bd = jnp.concatenate([_block_diag4(params["wq"]),
                               _block_diag4(params["wk"]),
                               _block_diag4(params["wv"])], axis=1)   # (128, 384)
    wo_bd = _block_diag4(params["wo"])                                # (128, 128)

    lane = jnp.arange(LANES)
    emat = (lane[:, None] // HEAD_DIM == lane[None, :] // HEAD_DIM)
    emat = emat.astype(jnp.bfloat16)                                  # head sums
    gmat = (lane[:, None] // HIDDEN == lane[None, :] // HIDDEN).astype(f32)

    vec = jnp.concatenate(
        [jnp.tile(params[k], (1, PACK)) for k in
         ("bq", "bk", "bv", "bo", "gamma", "beta", "wm")]
        + [jnp.zeros((1, LANES), f32)], axis=0)                       # (8, 128)

    # output-assembly masks: place ir at lanes c*32+[0:7], rank at [7:14]+[14:21]
    lane_mod = lane % HIDDEN
    srow = jnp.arange(SEQ)
    m_ir = ((srow[:, None] >= 1)
            & (lane_mod[None, :] == srow[:, None] - 1)).astype(f32)
    m_rank = ((srow[:, None] >= 1)
              & ((lane_mod[None, :] == srow[:, None] + GROUP - 1)
                 | (lane_mod[None, :] == srow[:, None] + 2 * GROUP - 1))
              ).astype(f32)
    masks = jnp.concatenate([m_ir, m_rank], axis=0)                   # (16, 128)

    gsz = tb // PACK
    out = pl.pallas_call(
        _head_kernel,
        out_shape=jax.ShapeDtypeStruct((b_pad // PACK, LANES), f32),
        grid_spec=pltpu.PrefetchScalarGridSpec(
            num_scalar_prefetch=0,
            grid=(n_blk,),
            in_specs=[
                pl.BlockSpec((gsz * SEQ, LANES), lambda b: (b, 0)),
                pl.BlockSpec((LANES, 3 * LANES), lambda b: (0, 0)),
                pl.BlockSpec((LANES, LANES), lambda b: (0, 0)),
                pl.BlockSpec((LANES, LANES), lambda b: (0, 0)),
                pl.BlockSpec((LANES, LANES), lambda b: (0, 0)),
                pl.BlockSpec((8, LANES), lambda b: (0, 0)),
                pl.BlockSpec((2 * SEQ, LANES), lambda b: (0, 0)),
            ],
            out_specs=pl.BlockSpec((gsz, LANES), lambda b: (b, 0)),
        ),
        compiler_params=pltpu.CompilerParams(
            dimension_semantics=("parallel",),
            vmem_limit_bytes=32 * 1024 * 1024),
    )(reps_packed, wqkv_bd, wo_bd, emat, gmat, vec, masks)

    # unpack: (b_pad/4, 128) -> (b_pad, 32) -> (B, 21)
    scores = out.reshape(b_pad // PACK, PACK, HIDDEN).reshape(b_pad, HIDDEN)
    return scores[:B, :3 * GROUP]


def init_params(key):
    ks = jax.random.split(key, 8)
    std = 0.2
    f32 = jnp.float32
    # Linear weights stored already transposed to (in, out) so kernels do x @ W.
    return {
        "wq": jax.random.normal(ks[0], (HIDDEN, HIDDEN), f32) * std,
        "bq": jax.random.normal(ks[1], (1, HIDDEN), f32) * std,
        "wk": jax.random.normal(ks[2], (HIDDEN, HIDDEN), f32) * std,
        "bk": jax.random.normal(ks[3], (1, HIDDEN), f32) * std,
        "wv": jax.random.normal(ks[4], (HIDDEN, HIDDEN), f32) * std,
        "bv": jax.random.normal(ks[5], (1, HIDDEN), f32) * std,
        "wo": jax.random.normal(ks[6], (HIDDEN, HIDDEN), f32) * std,
        "bo": jnp.zeros((1, HIDDEN), f32),
        "gamma": jnp.ones((1, HIDDEN), f32),
        "beta": jnp.zeros((1, HIDDEN), f32),
        "wm": jax.random.normal(ks[7], (1, HIDDEN), f32) * std,   # hidden -> 1
        "bm": jnp.zeros((1, 1), f32),
    }


def reference(qry_cls, doc_cls, p):
    """Pure-JAX reference of the eval branch (matches PyTorch semantics)."""
    hp = lax.Precision.HIGHEST
    B, H = qry_cls.shape
    doc_reps = doc_cls.reshape(B, GROUP, H)
    reps = jnp.concatenate([qry_cls[:, None, :], doc_reps], axis=1)   # (B, S, H)

    q = jnp.einsum("bsh,hd->bsd", reps, p["wq"], precision=hp) + p["bq"]
    k = jnp.einsum("bsh,hd->bsd", reps, p["wk"], precision=hp) + p["bk"]
    v = jnp.einsum("bsh,hd->bsd", reps, p["wv"], precision=hp) + p["bv"]

    def split(t):
        return t.reshape(B, SEQ, NUM_HEADS, HEAD_DIM).transpose(0, 2, 1, 3)

    qh, kh, vh = split(q), split(k), split(v)
    scores = jnp.einsum("bhqd,bhkd->bhqk", qh, kh, precision=hp) / (HEAD_DIM ** 0.5)
    probs = jax.nn.softmax(scores, axis=-1)
    ctx = jnp.einsum("bhqk,bhkd->bhqd", probs, vh, precision=hp)
    ctx = ctx.transpose(0, 2, 1, 3).reshape(B, SEQ, HIDDEN)

    hds = jnp.einsum("bsh,hd->bsd", ctx, p["wo"], precision=hp) + p["bo"] + reps
    mean = hds.mean(-1, keepdims=True)
    var = ((hds - mean) ** 2).mean(-1, keepdims=True)
    y = (hds - mean) / jnp.sqrt(var + LN_EPS) * p["gamma"] + p["beta"]

    logit = jnp.einsum("bsh,oh->bso", y, p["wm"], precision=hp)[..., 0] + p["bm"][0, 0]
    score_ir = jnp.sum(qry_cls[:, None, :] * doc_reps, axis=-1)
    score_rank = jax.nn.softmax(logit[:, 1:], axis=-1)
    return jnp.concatenate([score_ir, score_rank, score_rank], axis=-1)


if __name__ == "__main__":
    key = jax.random.PRNGKey(0)
    k_inp, k_par = jax.random.split(key)
    params = init_params(k_par)

    # case 1: auto tiling (single padded step); case 2: forced 2-step grid.
    for B, tile in ((12, None), (40, 32)):
        kq, kd = jax.random.split(jax.random.fold_in(k_inp, B))
        qry_cls = jax.random.normal(kq, (B, HIDDEN), jnp.float32)
        doc_cls = jax.random.normal(kd, (B * GROUP, HIDDEN), jnp.float32)

        out = joint_retriever_att_forward(qry_cls, doc_cls, params,
                                          tile_batch=tile)
        out = jax.block_until_ready(out)

        ref = reference(qry_cls, doc_cls, params)
        assert out.shape == (B, 3 * GROUP), out.shape
        if not bool(jnp.allclose(out, ref, atol=5e-3, rtol=5e-3)):
            raise AssertionError(
                "Pallas kernel output does not match JAX reference (B=%d)" % B)
    print("KERNEL_OK")
</pallas_src>

<mosaic_0001>
module attributes {stable_mosaic.version = 11 : i64} {
  func.func @_head_kernel(%arg0: i32, %arg1: memref<64x128xf32, #tpu.memory_space<vmem>>, %arg2: memref<128x384xf32, #tpu.memory_space<vmem>>, %arg3: memref<128x128xf32, #tpu.memory_space<vmem>>, %arg4: memref<128x128xbf16, #tpu.memory_space<vmem>>, %arg5: memref<128x128xf32, #tpu.memory_space<vmem>>, %arg6: memref<8x128xf32, #tpu.memory_space<vmem>>, %arg7: memref<16x128xf32, #tpu.memory_space<vmem>>, %arg8: memref<8x128xf32, #tpu.memory_space<vmem>>) attributes {dimension_semantics = [#tpu.dimension_semantics<parallel>], iteration_bounds = array<i64: 1>, scalar_prefetch = 0 : i64, scratch_operands = 0 : i64, tpu.core_type = #tpu.core_type<tc>, window_params = [{transform_indices = @transform_0, window_bounds = array<i64: 64, 128>}, {pipeline_mode = #tpu.pipeline_mode<synchronous>, transform_indices = @transform_1, window_bounds = array<i64: 128, 384>}, {pipeline_mode = #tpu.pipeline_mode<synchronous>, transform_indices = @transform_2, window_bounds = array<i64: 128, 128>}, {pipeline_mode = #tpu.pipeline_mode<synchronous>, transform_indices = @transform_3, window_bounds = array<i64: 128, 128>}, {pipeline_mode = #tpu.pipeline_mode<synchronous>, transform_indices = @transform_4, window_bounds = array<i64: 128, 128>}, {pipeline_mode = #tpu.pipeline_mode<synchronous>, transform_indices = @transform_5, window_bounds = array<i64: 8, 128>}, {pipeline_mode = #tpu.pipeline_mode<synchronous>, transform_indices = @transform_6, window_bounds = array<i64: 16, 128>}, {transform_indices = @transform_7, window_bounds = array<i64: 8, 128>}]} {
    %c0 = arith.constant 0 : index
    %c0_0 = arith.constant 0 : index
    %0 = vector.load %arg1[%c0, %c0_0] : memref<64x128xf32, #tpu.memory_space<vmem>>, vector<64x128xf32>
    %c0_1 = arith.constant 0 : index
    %c0_2 = arith.constant 0 : index
    %1 = vector.load %arg2[%c0_1, %c0_2] : memref<128x384xf32, #tpu.memory_space<vmem>>, vector<128x384xf32>
    %cst = arith.constant dense<0.000000e+00> : vector<64x384xf32>
    %2 = tpu.matmul %0, %1, %cst {dimension_numbers = #tpu.dot_dimension_numbers<[1], [0], [0], [1], [0, 0, 1, 1], [], []>} : vector<64x128xf32>, vector<128x384xf32>, vector<64x384xf32> -> vector<64x384xf32>
    %3 = vector.extract_strided_slice %2 {offsets = [0, 0], sizes = [64, 128], strides = [1, 1]} : vector<64x384xf32> to vector<64x128xf32>
    %c0_3 = arith.constant 0 : index
    %c0_4 = arith.constant 0 : index
    %4 = vector.load %arg6[%c0_3, %c0_4] : memref<8x128xf32, #tpu.memory_space<vmem>>, vector<1x128xf32>
    %5 = vector.broadcast %4 : vector<1x128xf32> to vector<64x128xf32>
    %6 = arith.addf %3, %5 : vector<64x128xf32>
    %cst_5 = arith.constant 0.353553385 : f32
    %7 = vector.broadcast %cst_5 : f32 to vector<64x128xf32>
    %8 = arith.mulf %6, %7 : vector<64x128xf32>
    %9 = vector.extract_strided_slice %2 {offsets = [0, 128], sizes = [64, 128], strides = [1, 1]} : vector<64x384xf32> to vector<64x128xf32>
    %c1 = arith.constant 1 : index
    %c0_6 = arith.constant 0 : index
    %10 = vector.load %arg6[%c1, %c0_6] : memref<8x128xf32, #tpu.memory_space<vmem>>, vector<1x128xf32>
    %11 = vector.broadcast %10 : vector<1x128xf32> to vector<64x128xf32>
    %12 = arith.addf %9, %11 : vector<64x128xf32>
    %13 = vector.extract_strided_slice %2 {offsets = [0, 256], sizes = [64, 128], strides = [1, 1]} : vector<64x384xf32> to vector<64x128xf32>
    %c2 = arith.constant 2 : index
    %c0_7 = arith.constant 0 : index
    %14 = vector.load %arg6[%c2, %c0_7] : memref<8x128xf32, #tpu.memory_space<vmem>>, vector<1x128xf32>
    %15 = vector.broadcast %14 : vector<1x128xf32> to vector<64x128xf32>
    %16 = arith.addf %13, %15 : vector<64x128xf32>
    %17 = vector.shape_cast %8 : vector<64x128xf32> to vector<8x8x128xf32>
    %18 = vector.shape_cast %12 : vector<64x128xf32> to vector<8x8x128xf32>
    %19 = vector.shape_cast %16 : vector<64x128xf32> to vector<8x8x128xf32>
    %20 = vector.shape_cast %17 : vector<8x8x128xf32> to vector<8x8x1x128xf32>
    %21 = vector.shape_cast %18 : vector<8x8x128xf32> to vector<8x1x8x128xf32>
    %22 = vector.broadcast %20 : vector<8x8x1x128xf32> to vector<8x8x8x128xf32>
    %23 = vector.broadcast %21 : vector<8x1x8x128xf32> to vector<8x8x8x128xf32>
    %24 = arith.mulf %22, %23 : vector<8x8x8x128xf32>
    %25 = arith.truncf %24 : vector<8x8x8x128xf32> to vector<8x8x8x128xbf16>
    %26 = vector.shape_cast %25 : vector<8x8x8x128xbf16> to vector<512x128xbf16>
    %c0_8 = arith.constant 0 : index
    %c0_9 = arith.constant 0 : index
    %27 = vector.load %arg4[%c0_8, %c0_9] : memref<128x128xbf16, #tpu.memory_space<vmem>>, vector<128x128xbf16>
    %cst_10 = arith.constant dense<0.000000e+00> : vector<512x128xf32>
    %28 = tpu.matmul %26, %27, %cst_10 {dimension_numbers = #tpu.dot_dimension_numbers<[1], [0], [0], [1], [0, 0, 1, 1], [], []>} : vector<512x128xbf16>, vector<128x128xbf16>, vector<512x128xf32> -> vector<512x128xf32>
    %29 = vector.shape_cast %28 : vector<512x128xf32> to vector<8x8x8x128xf32>
    %cst_11 = arith.constant dense<0xFF800000> : vector<8x8x128xf32>
    %30 = vector.multi_reduction <maximumf>, %29, %cst_11 [2] : vector<8x8x8x128xf32> to vector<8x8x128xf32>
    %31 = vector.shape_cast %30 : vector<8x8x128xf32> to vector<8x8x1x128xf32>
    %32 = vector.broadcast %31 : vector<8x8x1x128xf32> to vector<8x8x8x128xf32>
    %33 = arith.subf %29, %32 : vector<8x8x8x128xf32>
    %34 = math.exp %33 : vector<8x8x8x128xf32>
    %cst_12 = arith.constant dense<0.000000e+00> : vector<8x8x128xf32>
    %35 = vector.multi_reduction <add>, %34, %cst_12 [2] : vector<8x8x8x128xf32> to vector<8x8x128xf32>
    %36 = vector.shape_cast %35 : vector<8x8x128xf32> to vector<8x8x1x128xf32>
    %37 = vector.broadcast %36 : vector<8x8x1x128xf32> to vector<8x8x8x128xf32>
    %38 = arith.divf %34, %37 : vector<8x8x8x128xf32>
    %39 = vector.shape_cast %19 : vector<8x8x128xf32> to vector<8x1x8x128xf32>
    %40 = vector.broadcast %39 : vector<8x1x8x128xf32> to vector<8x8x8x128xf32>
    %41 = arith.mulf %38, %40 : vector<8x8x8x128xf32>
    %cst_13 = arith.constant dense<0.000000e+00> : vector<8x8x128xf32>
    %42 = vector.multi_reduction <add>, %41, %cst_13 [2] : vector<8x8x8x128xf32> to vector<8x8x128xf32>
    %43 = vector.shape_cast %42 : vector<8x8x128xf32> to vector<64x128xf32>
    %c0_14 = arith.constant 0 : index
    %c0_15 = arith.constant 0 : index
    %44 = vector.load %arg5[%c0_14, %c0_15] : memref<128x128xf32, #tpu.memory_space<vmem>>, vector<128x128xf32>
    %c0_16 = arith.constant 0 : index
    %c0_17 = arith.constant 0 : index
    %45 = vector.load %arg3[%c0_16, %c0_17] : memref<128x128xf32, #tpu.memory_space<vmem>>, vector<128x128xf32>
    %cst_18 = arith.constant dense<0.000000e+00> : vector<64x128xf32>
    %46 = tpu.matmul %43, %45, %cst_18 {dimension_numbers = #tpu.dot_dimension_numbers<[1], [0], [0], [1], [0, 0, 1, 1], [], []>} : vector<64x128xf32>, vector<128x128xf32>, vector<64x128xf32> -> vector<64x128xf32>
    %c3 = arith.constant 3 : index
    %c0_19 = arith.constant 0 : index
    %47 = vector.load %arg6[%c3, %c0_19] : memref<8x128xf32, #tpu.memory_space<vmem>>, vector<1x128xf32>
    %48 = vector.broadcast %47 : vector<1x128xf32> to vector<64x128xf32>
    %49 = arith.addf %46, %48 : vector<64x128xf32>
    %50 = arith.addf %49, %0 : vector<64x128xf32>
    %cst_20 = arith.constant dense<0.000000e+00> : vector<64x128xf32>
    %51 = tpu.matmul %50, %44, %cst_20 {dimension_numbers = #tpu.dot_dimension_numbers<[1], [0], [0], [1], [0, 0, 1, 1], [], []>} : vector<64x128xf32>, vector<128x128xf32>, vector<64x128xf32> -> vector<64x128xf32>
    %cst_21 = arith.constant 3.125000e-02 : f32
    %52 = vector.broadcast %cst_21 : f32 to vector<64x128xf32>
    %53 = arith.mulf %51, %52 : vector<64x128xf32>
    %54 = arith.subf %50, %53 : vector<64x128xf32>
    %55 = arith.mulf %54, %54 : vector<64x128xf32>
    %cst_22 = arith.constant dense<0.000000e+00> : vector<64x128xf32>
    %56 = tpu.matmul %55, %44, %cst_22 {dimension_numbers = #tpu.dot_dimension_numbers<[1], [0], [0], [1], [0, 0, 1, 1], [], []>} : vector<64x128xf32>, vector<128x128xf32>, vector<64x128xf32> -> vector<64x128xf32>
    %cst_23 = arith.constant 3.125000e-02 : f32
    %57 = vector.broadcast %cst_23 : f32 to vector<64x128xf32>
    %58 = arith.mulf %56, %57 : vector<64x128xf32>
    %cst_24 = arith.constant 9.99999996E-13 : f32
    %59 = vector.broadcast %cst_24 : f32 to vector<64x128xf32>
    %60 = arith.addf %58, %59 : vector<64x128xf32>
    %61 = math.rsqrt %60 : vector<64x128xf32>
    %62 = arith.mulf %54, %61 : vector<64x128xf32>
    %c4 = arith.constant 4 : index
    %c0_25 = arith.constant 0 : index
    %63 = vector.load %arg6[%c4, %c0_25] : memref<8x128xf32, #tpu.memory_space<vmem>>, vector<1x128xf32>
    %64 = vector.broadcast %63 : vector<1x128xf32> to vector<64x128xf32>
    %65 = arith.mulf %62, %64 : vector<64x128xf32>
    %c5 = arith.constant 5 : index
    %c0_26 = arith.constant 0 : index
    %66 = vector.load %arg6[%c5, %c0_26] : memref<8x128xf32, #tpu.memory_space<vmem>>, vector<1x128xf32>
    %67 = vector.broadcast %66 : vector<1x128xf32> to vector<64x128xf32>
    %68 = arith.addf %65, %67 : vector<64x128xf32>
    %c6 = arith.constant 6 : index
    %c0_27 = arith.constant 0 : index
    %69 = vector.load %arg6[%c6, %c0_27] : memref<8x128xf32, #tpu.memory_space<vmem>>, vector<1x128xf32>
    %70 = vector.broadcast %69 : vector<1x128xf32> to vector<64x128xf32>
    %71 = arith.mulf %68, %70 : vector<64x128xf32>
    %cst_28 = arith.constant dense<0.000000e+00> : vector<64x128xf32>
    %72 = tpu.matmul %71, %44, %cst_28 {dimension_numbers = #tpu.dot_dimension_numbers<[1], [0], [0], [1], [0, 0, 1, 1], [], []>} : vector<64x128xf32>, vector<128x128xf32>, vector<64x128xf32> -> vector<64x128xf32>
    %73 = vector.shape_cast %72 : vector<64x128xf32> to vector<8x8x128xf32>
    %74 = tpu.iota {dimensions = array<i32: 1>} : vector<1x8x128xi32>
    %c0_i32 = arith.constant 0 : i32
    %75 = vector.broadcast %c0_i32 : i32 to vector<1x8x128xi32>
    %76 = arith.cmpi eq, %74, %75 : vector<1x8x128xi32>
    %cst_29 = arith.constant -1.000000e+30 : f32
    %77 = vector.shape_cast %76 : vector<1x8x128xi1> to vector<1x8x128xi1>
    %78 = vector.broadcast %77 : vector<1x8x128xi1> to vector<8x8x128xi1>
    %79 = vector.broadcast %cst_29 : f32 to vector<8x8x128xf32>
    %80 = arith.select %78, %79, %73 : vector<8x8x128xi1>, vector<8x8x128xf32>
    %cst_30 = arith.constant dense<0xFF800000> : vector<8x128xf32>
    %81 = vector.multi_reduction <maximumf>, %80, %cst_30 [1] : vector<8x8x128xf32> to vector<8x128xf32>
    %82 = vector.shape_cast %81 : vector<8x128xf32> to vector<8x1x128xf32>
    %83 = vector.broadcast %82 : vector<8x1x128xf32> to vector<8x8x128xf32>
    %84 = arith.subf %80, %83 : vector<8x8x128xf32>
    %85 = math.exp %84 : vector<8x8x128xf32>
    %cst_31 = arith.constant dense<0.000000e+00> : vector<8x128xf32>
    %86 = vector.multi_reduction <add>, %85, %cst_31 [1] : vector<8x8x128xf32> to vector<8x128xf32>
    %87 = vector.shape_cast %86 : vector<8x128xf32> to vector<8x1x128xf32>
    %88 = vector.broadcast %87 : vector<8x1x128xf32> to vector<8x8x128xf32>
    %89 = arith.divf %85, %88 : vector<8x8x128xf32>
    %90 = vector.shape_cast %0 : vector<64x128xf32> to vector<8x8x128xf32>
    %91 = vector.extract_strided_slice %90 {offsets = [0, 0, 0], sizes = [8, 1, 128], strides = [1, 1, 1]} : vector<8x8x128xf32> to vector<8x1x128xf32>
    %92 = vector.broadcast %91 : vector<8x1x128xf32> to vector<8x8x128xf32>
    %93 = arith.mulf %92, %90 : vector<8x8x128xf32>
    %94 = vector.shape_cast %93 : vector<8x8x128xf32> to vector<64x128xf32>
    %cst_32 = arith.constant dense<0.000000e+00> : vector<64x128xf32>
    %95 = tpu.matmul %94, %44, %cst_32 {dimension_numbers = #tpu.dot_dimension_numbers<[1], [0], [0], [1], [0, 0, 1, 1], [], []>, precision = #tpu.contract_precision<fp32>} : vector<64x128xf32>, vector<128x128xf32>, vector<64x128xf32> -> vector<64x128xf32>
    %96 = vector.shape_cast %95 : vector<64x128xf32> to vector<8x8x128xf32>
    %c0_33 = arith.constant 0 : index
    %c0_34 = arith.constant 0 : index
    %97 = vector.load %arg7[%c0_33, %c0_34] : memref<16x128xf32, #tpu.memory_space<vmem>>, vector<8x128xf32>
    %c8 = arith.constant 8 : index
    %c0_35 = arith.constant 0 : index
    %98 = vector.load %arg7[%c8, %c0_35] : memref<16x128xf32, #tpu.memory_space<vmem>>, vector<8x128xf32>
    %99 = vector.shape_cast %97 : vector<8x128xf32> to vector<1x8x128xf32>
    %100 = vector.broadcast %99 : vector<1x8x128xf32> to vector<8x8x128xf32>
    %101 = arith.mulf %96, %100 : vector<8x8x128xf32>
    %102 = vector.shape_cast %98 : vector<8x128xf32> to vector<1x8x128xf32>
    %103 = vector.broadcast %102 : vector<1x8x128xf32> to vector<8x8x128xf32>
    %104 = arith.mulf %89, %103 : vector<8x8x128xf32>
    %105 = arith.addf %101, %104 : vector<8x8x128xf32>
    %cst_36 = arith.constant dense<0.000000e+00> : vector<8x128xf32>
    %106 = vector.multi_reduction <add>, %105, %cst_36 [1] : vector<8x8x128xf32> to vector<8x128xf32>
    %c0_37 = arith.constant 0 : index
    %c0_38 = arith.constant 0 : index
    %107 = vector.load %arg8[%c0_37, %c0_38] : memref<8x128xf32, #tpu.memory_space<vmem>>, vector<8x128xf32>
    tpu.vector_store %arg8[%c0_37, %c0_38], %106 {strides = array<i32>} : memref<8x128xf32, #tpu.memory_space<vmem>>, vector<8x128xf32>,
    return
  }
  func.func @transform_0(%arg0: i32) -> (i32, i32) {
    %c0_i32 = arith.constant 0 : i32
    %c0_i32_0 = arith.constant 0 : i32
    return %arg0, %c0_i32 : i32, i32
  }
  func.func @transform_1(%arg0: i32) -> (i32, i32) {
    %c0_i32 = arith.constant 0 : i32
    %c0_i32_0 = arith.constant 0 : i32
    %c0_i32_1 = arith.constant 0 : i32
    return %c0_i32, %c0_i32_0 : i32, i32
  }
  func.func @transform_2(%arg0: i32) -> (i32, i32) {
    %c0_i32 = arith.constant 0 : i32
    %c0_i32_0 = arith.constant 0 : i32
    %c0_i32_1 = arith.constant 0 : i32
    return %c0_i32, %c0_i32_0 : i32, i32
  }
  func.func @transform_3(%arg0: i32) -> (i32, i32) {
    %c0_i32 = arith.constant 0 : i32
    %c0_i32_0 = arith.constant 0 : i32
    %c0_i32_1 = arith.constant 0 : i32
    return %c0_i32, %c0_i32_0 : i32, i32
  }
  func.func @transform_4(%arg0: i32) -> (i32, i32) {
    %c0_i32 = arith.constant 0 : i32
    %c0_i32_0 = arith.constant 0 : i32
    %c0_i32_1 = arith.constant 0 : i32
    return %c0_i32, %c0_i32_0 : i32, i32
  }
  func.func @transform_5(%arg0: i32) -> (i32, i32) {
    %c0_i32 = arith.constant 0 : i32
    %c0_i32_0 = arith.constant 0 : i32
    %c0_i32_1 = arith.constant 0 : i32
    return %c0_i32, %c0_i32_0 : i32, i32
  }
  func.func @transform_6(%arg0: i32) -> (i32, i32) {
    %c0_i32 = arith.constant 0 : i32
    %c0_i32_0 = arith.constant 0 : i32
    %c0_i32_1 = arith.constant 0 : i32
    return %c0_i32, %c0_i32_0 : i32, i32
  }
  func.func @transform_7(%arg0: i32) -> (i32, i32) {
    %c0_i32 = arith.constant 0 : i32
    %c0_i32_0 = arith.constant 0 : i32
    return %arg0, %c0_i32 : i32, i32
  }
}

</mosaic_0001>

<llo_original>
// kernel: tpu_custom_call.1
$region0: #{tpu_custom_call.1}
  #allocation0 [shape = 'u32[]', space=smem, size = 0x4, offset = 0x4, fixed_abs, tag = 'smem constant byte address 0x4 - core index']
  #allocation1 [shape = 'u32[144,128]{1,0:T(1,128)}', space=vmem, size = 0x12000, scoped, tag = 'internal scratch']
  %s0 = inlined_call_operand.hbm [shape: f32[64,128], index: 0, kind: input, shape index: {}]
  %s1 = inlined_call_operand.hbm [shape: f32[128,384], index: 1, kind: input, shape index: {}]
  %s2 = inlined_call_operand.hbm [shape: f32[128,128], index: 2, kind: input, shape index: {}]
  %s3 = inlined_call_operand.hbm [shape: bf16[128,128], index: 3, kind: input, shape index: {}]
  %s4 = inlined_call_operand.hbm [shape: f32[128,128], index: 4, kind: input, shape index: {}]
  %s5 = inlined_call_operand.hbm [shape: f32[8,128], index: 5, kind: input, shape index: {}]
  %s6 = inlined_call_operand.vmem [shape: f32[16,128], index: 6, kind: input, shape index: {}]
  %s7 = inlined_call_operand.hbm [shape: f32[8,128], index: 7, kind: output, shape index: {}]
  %s8 = sld [smem:[#allocation0]]
  $region62: #{tpu_custom_call.1} parent=0
    _
  %s10 = ssub.s32 1, %s8
  %s11 = scalar_select 0, %s10, %s8
  $region1: #{tpu_custom_call.1} parent=0
    #allocation2 [shape = 'u8[32768]{0}', space=vmem, size = 0x8000, scoped, tag = 'input window, operand 0, single buffered']
    #allocation3 [shape = 's32[1]{0}', space=sflag, size = 0x4, scoped, tag = 'scoped memory for tpu_custom_call.1']
    #allocation4 [shape = 's32[1]{0}', space=sflag, size = 0x4, scoped, tag = 'scoped memory for tpu_custom_call.1']
    #allocation5 [shape = 'u8[196608]{0}', space=vmem, size = 0x30000, scoped, tag = 'input window, operand 1, single buffered']
    #allocation6 [shape = 's32[1]{0}', space=sflag, size = 0x4, scoped, tag = 'scoped memory for tpu_custom_call.1']
    #allocation7 [shape = 'u8[65536]{0}', space=vmem, size = 0x10000, scoped, tag = 'input window, operand 2, single buffered']
    #allocation8 [shape = 'u8[32768]{0}', space=vmem, size = 0x8000, scoped, tag = 'input window, operand 3, single buffered']
    #allocation9 [shape = 's32[1]{0}', space=sflag, size = 0x4, scoped, tag = 'scoped memory for tpu_custom_call.1']
    #allocation10 [shape = 'u8[65536]{0}', space=vmem, size = 0x10000, scoped, tag = 'input window, operand 4, single buffered']
    #allocation11 [shape = 'u8[4096]{0}', space=vmem, size = 0x1000, scoped, tag = 'input window, operand 5, single buffered']
    #allocation12 [shape = 's32[1]{0}', space=sflag, size = 0x4, scoped, tag = 'scoped memory for tpu_custom_call.1']
    #allocation13 [shape = 'u8[4096]{0}', space=vmem, size = 0x1000, scoped, tag = 'output window, operand 0, single buffered']
    %12 = vsyncpa [#allocation3], 0
    %13 = vsyncpa [#allocation6], 0
    %14 = vsyncpa [#allocation9], 0
    %15 = vsyncpa [#allocation12], 0
    %16 = vsyncpa [#allocation4], 0
    // Predicated region
    $region2: #{tpu_custom_call.1} parent=1 // pred_check
      _
    $region3: #{tpu_custom_call.1} parent=1 // pred_check_branch
      %18 = sbr.rel (0) target = $region5
    $region4: #{tpu_custom_call.1} parent=1 // pred_region
      %s20 = ssub.s32 1024, 1024
      %21 = vsyncadd [#allocation3], %s20
      %s22 = sshll.u32 [#allocation2], 4
      %s23 = int_to_ptr.vmem [resolvable:$true] %s22
      %28 = dma.hbm_to_vmem [thread:$0]  %s0, 1024, %s23, [#allocation3], 128, 128, 8
    $region5: #{tpu_custom_call.1} parent=1 // pred_fallthru
      _
    // Predicated region
    $region6: #{tpu_custom_call.1} parent=1 // pred_check
      _
    $region7: #{tpu_custom_call.1} parent=1 // pred_check_branch
      %30 = sbr.rel (0) target = $region9
    $region8: #{tpu_custom_call.1} parent=1 // pred_region
      %s32 = ssub.s32 6144, 6144
      %33 = vsyncadd [#allocation6], %s32
      %s34 = sshll.u32 [#allocation5], 4
      %s35 = int_to_ptr.vmem [resolvable:$true] %s34
      %40 = dma.hbm_to_vmem [thread:$0]  %s1, 6144, %s35, [#allocation6], 384, 384, 24
    $region9: #{tpu_custom_call.1} parent=1 // pred_fallthru
      _
    // Predicated region
    $region10: #{tpu_custom_call.1} parent=1 // pred_check
      _
    $region11: #{tpu_custom_call.1} parent=1 // pred_check_branch
      %42 = sbr.rel (0) target = $region13
    $region12: #{tpu_custom_call.1} parent=1 // pred_region
      %s44 = ssub.s32 2048, 2048
      %45 = vsyncadd [#allocation6], %s44
      %s46 = sshll.u32 [#allocation7], 4
      %s47 = int_to_ptr.vmem [resolvable:$true] %s46
      %52 = dma.hbm_to_vmem [thread:$0]  %s2, 2048, %s47, [#allocation6], 128, 128, 8
    $region13: #{tpu_custom_call.1} parent=1 // pred_fallthru
      _
    // Predicated region
    $region14: #{tpu_custom_call.1} parent=1 // pred_check
      _
    $region15: #{tpu_custom_call.1} parent=1 // pred_check_branch
      %54 = sbr.rel (0) target = $region17
    $region16: #{tpu_custom_call.1} parent=1 // pred_region
      %s56 = ssub.s32 1024, 1024
      %57 = vsyncadd [#allocation9], %s56
      %s58 = sshll.u32 [#allocation8], 4
      %s59 = int_to_ptr.vmem [resolvable:$true] %s58
      %64 = dma.hbm_to_vmem [thread:$0]  %s3, 1024, %s59, [#allocation9], 64, 64, 4
    $region17: #{tpu_custom_call.1} parent=1 // pred_fallthru
      _
    // Predicated region
    $region18: #{tpu_custom_call.1} parent=1 // pred_check
      _
    $region19: #{tpu_custom_call.1} parent=1 // pred_check_branch
      %66 = sbr.rel (0) target = $region21
    $region20: #{tpu_custom_call.1} parent=1 // pred_region
      %s68 = ssub.s32 2048, 2048
      %69 = vsyncadd [#allocation9], %s68
      %s70 = sshll.u32 [#allocation10], 4
      %s71 = int_to_ptr.vmem [resolvable:$true] %s70
      %76 = dma.hbm_to_vmem [thread:$0]  %s4, 2048, %s71, [#allocation9], 128, 128, 8
    $region21: #{tpu_custom_call.1} parent=1 // pred_fallthru
      _
    // Predicated region
    $region22: #{tpu_custom_call.1} parent=1 // pred_check
      _
    $region23: #{tpu_custom_call.1} parent=1 // pred_check_branch
      %78 = sbr.rel (0) target = $region25
    $region24: #{tpu_custom_call.1} parent=1 // pred_region
      %s80 = ssub.s32 128, 128
      %81 = vsyncadd [#allocation12], %s80
      %s83 = sshll.u32 [#allocation11], 4
      %s84 = int_to_ptr.vmem [resolvable:$true] %s83
      %86 = dma.hbm_to_vmem [thread:$0]  %s5, 128, %s84, [#allocation12]
    $region25: #{tpu_custom_call.1} parent=1 // pred_fallthru
      _
    // Predicated region
    $region26: #{tpu_custom_call.1} parent=1 // pred_check
      _
    $region27: #{tpu_custom_call.1} parent=1 // pred_check_branch
      %88 = sbr.rel (0) target = $region29
    $region28: #{tpu_custom_call.1} parent=1 // pred_region
      _
    $region29: #{tpu_custom_call.1} parent=1 // pred_fallthru
      _
    // Predicated region
    $region30: #{tpu_custom_call.1} parent=1 // pred_check
      _
    $region31: #{tpu_custom_call.1} parent=1 // pred_check_branch
      %90 = sbr.rel (0) target = $region33
    $region32: #{tpu_custom_call.1} parent=1 // pred_region
      %91 = dma.done [#allocation3], 1024
    $region33: #{tpu_custom_call.1} parent=1 // pred_fallthru
      _
    // Predicated region
    $region34: #{tpu_custom_call.1} parent=1 // pred_check
      _
    $region35: #{tpu_custom_call.1} parent=1 // pred_check_branch
      %93 = sbr.rel (0) target = $region37
    $region36: #{tpu_custom_call.1} parent=1 // pred_region
      %94 = dma.done [#allocation6], 6144
    $region37: #{tpu_custom_call.1} parent=1 // pred_fallthru
      _
    // Predicated region
    $region38: #{tpu_custom_call.1} parent=1 // pred_check
      _
    $region39: #{tpu_custom_call.1} parent=1 // pred_check_branch
      %96 = sbr.rel (0) target = $region41
    $region40: #{tpu_custom_call.1} parent=1 // pred_region
      %97 = dma.done [#allocation6], 2048
    $region41: #{tpu_custom_call.1} parent=1 // pred_fallthru
      _
    // Predicated region
    $region42: #{tpu_custom_call.1} parent=1 // pred_check
      _
    $region43: #{tpu_custom_call.1} parent=1 // pred_check_branch
      %99 = sbr.rel (0) target = $region45
    $region44: #{tpu_custom_call.1} parent=1 // pred_region
      %100 = dma.done [#allocation9], 1024
    $region45: #{tpu_custom_call.1} parent=1 // pred_fallthru
      _
    // Predicated region
    $region46: #{tpu_custom_call.1} parent=1 // pred_check
      _
    $region47: #{tpu_custom_call.1} parent=1 // pred_check_branch
      %102 = sbr.rel (0) target = $region49
    $region48: #{tpu_custom_call.1} parent=1 // pred_region
      %103 = dma.done [#allocation9], 2048
    $region49: #{tpu_custom_call.1} parent=1 // pred_fallthru
      _
    // Predicated region
    $region50: #{tpu_custom_call.1} parent=1 // pred_check
      _
    $region51: #{tpu_custom_call.1} parent=1 // pred_check_branch
      %105 = sbr.rel (0) target = $region53
    $region52: #{tpu_custom_call.1} parent=1 // pred_region
      %106 = dma.done [#allocation12], 128
    $region53: #{tpu_custom_call.1} parent=1 // pred_fallthru
      _
    %v108 = vld [vmem:[#allocation2] sm:$0xff]
    %v109 = vld [vmem:[#allocation2 + $0x8] sm:$0xff]
    %v110 = vld [vmem:[#allocation2 + $0x10] sm:$0xff]
    %v111 = vld [vmem:[#allocation2 + $0x18] sm:$0xff]
    %v112 = vld [vmem:[#allocation2 + $0x20] sm:$0xff]
    %v113 = vld [vmem:[#allocation2 + $0x28] sm:$0xff]
    %v114 = vld [vmem:[#allocation2 + $0x30] sm:$0xff]
    %v115 = vld [vmem:[#allocation2 + $0x38] sm:$0xff]
    %v116 = vld [vmem:[#allocation5] sm:$0xff]
    %v117 = vld [vmem:[#allocation5 + $0x8] sm:$0xff]
    %v118 = vld [vmem:[#allocation5 + $0x10] sm:$0xff]
    %v119 = vld [vmem:[#allocation5 + $0x18] sm:$0xff]
    %v120 = vld [vmem:[#allocation5 + $0x20] sm:$0xff]
    %v121 = vld [vmem:[#allocation5 + $0x28] sm:$0xff]
    %v122 = vld [vmem:[#allocation5 + $0x30] sm:$0xff]
    %v123 = vld [vmem:[#allocation5 + $0x38] sm:$0xff]
    %v124 = vld [vmem:[#allocation5 + $0x40] sm:$0xff]
    %v125 = vld [vmem:[#allocation5 + $0x48] sm:$0xff]
    %v126 = vld [vmem:[#allocation5 + $0x50] sm:$0xff]
    %v127 = vld [vmem:[#allocation5 + $0x58] sm:$0xff]
    %v128 = vld [vmem:[#allocation5 + $0x60] sm:$0xff]
    %v129 = vld [vmem:[#allocation5 + $0x68] sm:$0xff]
    %v130 = vld [vmem:[#allocation5 + $0x70] sm:$0xff]
    %v131 = vld [vmem:[#allocation5 + $0x78] sm:$0xff]
    %v132 = vld [vmem:[#allocation5 + $0x80] sm:$0xff]
    %v133 = vld [vmem:[#allocation5 + $0x88] sm:$0xff]
    %v134 = vld [vmem:[#allocation5 + $0x90] sm:$0xff]
    %v135 = vld [vmem:[#allocation5 + $0x98] sm:$0xff]
    %v136 = vld [vmem:[#allocation5 + $0xa0] sm:$0xff]
    %v137 = vld [vmem:[#allocation5 + $0xa8] sm:$0xff]
    %v138 = vld [vmem:[#allocation5 + $0xb0] sm:$0xff]
    %v139 = vld [vmem:[#allocation5 + $0xb8] sm:$0xff]
    %v140 = vld [vmem:[#allocation5 + $0xc0] sm:$0xff]
    %v141 = vld [vmem:[#allocation5 + $0xc8] sm:$0xff]
    %v142 = vld [vmem:[#allocation5 + $0xd0] sm:$0xff]
    %v143 = vld [vmem:[#allocation5 + $0xd8] sm:$0xff]
    %v144 = vld [vmem:[#allocation5 + $0xe0] sm:$0xff]
    %v145 = vld [vmem:[#allocation5 + $0xe8] sm:$0xff]
    %v146 = vld [vmem:[#allocation5 + $0xf0] sm:$0xff]
    %v147 = vld [vmem:[#allocation5 + $0xf8] sm:$0xff]
    %v148 = vld [vmem:[#allocation5 + $0x100] sm:$0xff]
    %v149 = vld [vmem:[#allocation5 + $0x108] sm:$0xff]
    %v150 = vld [vmem:[#allocation5 + $0x110] sm:$0xff]
    %v151 = vld [vmem:[#allocation5 + $0x118] sm:$0xff]
    %v152 = vld [vmem:[#allocation5 + $0x120] sm:$0xff]
    %v153 = vld [vmem:[#allocation5 + $0x128] sm:$0xff]
    %v154 = vld [vmem:[#allocation5 + $0x130] sm:$0xff]
    %v155 = vld [vmem:[#allocation5 + $0x138] sm:$0xff]
    %v156 = vld [vmem:[#allocation5 + $0x140] sm:$0xff]
    %v157 = vld [vmem:[#allocation5 + $0x148] sm:$0xff]
    %v158 = vld [vmem:[#allocation5 + $0x150] sm:$0xff]
    %v159 = vld [vmem:[#allocation5 + $0x158] sm:$0xff]
    %v160 = vld [vmem:[#allocation5 + $0x160] sm:$0xff]
    %v161 = vld [vmem:[#allocation5 + $0x168] sm:$0xff]
    %v162 = vld [vmem:[#allocation5 + $0x170] sm:$0xff]
    %v163 = vld [vmem:[#allocation5 + $0x178] sm:$0xff]
    %164 = vmatprep.subr.mxu0 %v117
    %165 = vmatpush1.msra.mxu0 %v116
    %166 = vmatprep.subr.mxu0 %v120
    %167 = vmatpush1.msra.mxu0 %v119
    %168 = vmatprep.subr.mxu0 %v123
    %169 = vmatpush1.msra.mxu0 %v122
    %170 = vmatprep.subr.mxu0 %v126
    %171 = vmatpush1.msra.mxu0 %v125
    %172 = vmatprep.subr.mxu0 %v129
    %173 = vmatpush1.msra.mxu0 %v128
    %174 = vmatprep.subr.mxu0 %v132
    %175 = vmatpush1.msra.mxu0 %v131
    %176 = vmatprep.subr.mxu0 %v135
    %177 = vmatpush1.msra.mxu0 %v134
    %178 = vmatprep.subr.mxu0 %v138
    %179 = vmatpush1.msra.mxu0 %v137
    %180 = vmatprep.subr.mxu0 %v141
    %181 = vmatpush1.msra.mxu0 %v140
    %182 = vmatprep.subr.mxu0 %v144
    %183 = vmatpush1.msra.mxu0 %v143
    %184 = vmatprep.subr.mxu0 %v147
    %185 = vmatpush1.msra.mxu0 %v146
    %186 = vmatprep.subr.mxu0 %v150
    %187 = vmatpush1.msra.mxu0 %v149
    %188 = vmatprep.subr.mxu0 %v153
    %189 = vmatpush1.msra.mxu0 %v152
    %190 = vmatprep.subr.mxu0 %v156
    %191 = vmatpush1.msra.mxu0 %v155
    %192 = vmatprep.subr.mxu0 %v159
    %193 = vmatpush1.msra.mxu0 %v158
    %194 = vmatprep.subr.mxu0 %v162
    %195 = vmatpush1.msra.mxu0 %v161
    %196 = vmatprep.subr.mxu0 0.0
    %197 = vmatpush1.msra.mxu0 0.0
    %198 = vmatprep.subr.mxu0 0.0
    %199 = vmatpush1.msra.mxu0 0.0
    %200 = vmatprep.subr.mxu0 0.0
    %201 = vmatpush1.msra.mxu0 0.0
    %202 = vmatprep.subr.mxu0 0.0
    %203 = vmatpush1.msra.mxu0 0.0
    %204 = vmatprep.subr.mxu0 0.0
    %205 = vmatpush1.msra.mxu0 0.0
    %206 = vmatprep.subr.mxu0 0.0
    %207 = vmatpush1.msra.mxu0 0.0
    %208 = vmatprep.subr.mxu0 0.0
    %209 = vmatpush1.msra.mxu0 0.0
    %210 = vmatprep.subr.mxu0 0.0
    %211 = vmatpush1.msra.mxu0 0.0
    %212 = vmatprep.subr.mxu0 0.0
    %213 = vmatpush1.msra.mxu0 0.0
    %214 = vmatprep.subr.mxu0 0.0
    %215 = vmatpush1.msra.mxu0 0.0
    %216 = vmatprep.subr.mxu0 0.0
    %217 = vmatpush1.msra.mxu0 0.0
    %218 = vmatprep.subr.mxu0 0.0
    %219 = vmatpush1.msra.mxu0 0.0
    %220 = vmatprep.subr.mxu0 0.0
    %221 = vmatpush1.msra.mxu0 0.0
    %222 = vmatprep.subr.mxu0 0.0
    %223 = vmatpush1.msra.mxu0 0.0
    %224 = vmatprep.subr.mxu0 0.0
    %225 = vmatpush1.msra.mxu0 0.0
    %226 = vmatprep.subr.mxu0 0.0
    %227 = vmatpush1.msra.mxu0 0.0
    %228 = vmatprep.mubr.f32.mxu0 0.0
    %229 = vmatmul.mubr.f32.gmra.mrb[0].mxu0 %v108
    %v230 = vpop.f32.mrb[0].mxu0
    %v231 = vadd.f32 0.0, %v230
    %v232 = vpop.f32.mrb[0].mxu0
    %v233 = vadd.f32 0.0, %v232
    %234 = vmatprep.mubr.f32.mxu0 0.0
    %235 = vmatmul.mubr.f32.gmra.mrb[0].mxu0 %v109
    %v236 = vpop.f32.mrb[0].mxu0
    %v237 = vadd.f32 0.0, %v236
    %v238 = vpop.f32.mrb[0].mxu0
    %v239 = vadd.f32 0.0, %v238
    %240 = vmatprep.mubr.f32.mxu0 0.0
    %241 = vmatmul.mubr.f32.gmra.mrb[0].mxu0 %v110
    %v242 = vpop.f32.mrb[0].mxu0
    %v243 = vadd.f32 0.0, %v242
    %v244 = vpop.f32.mrb[0].mxu0
    %v245 = vadd.f32 0.0, %v244
    %246 = vmatprep.mubr.f32.mxu0 0.0
    %247 = vmatmul.mubr.f32.gmra.mrb[0].mxu0 %v111
    %v248 = vpop.f32.mrb[0].mxu0
    %v249 = vadd.f32 0.0, %v248
    %v250 = vpop.f32.mrb[0].mxu0
    %v251 = vadd.f32 0.0, %v250
    %252 = vmatprep.mubr.f32.mxu0 0.0
    %253 = vmatmul.mubr.f32.gmra.mrb[0].mxu0 %v112
    %v254 = vpop.f32.mrb[0].mxu0
    %v255 = vadd.f32 0.0, %v254
    %v256 = vpop.f32.mrb[0].mxu0
    %v257 = vadd.f32 0.0, %v256
    %258 = vmatprep.mubr.f32.mxu0 0.0
    %259 = vmatmul.mubr.f32.gmra.mrb[0].mxu0 %v113
    %v260 = vpop.f32.mrb[0].mxu0
    %v261 = vadd.f32 0.0, %v260
    %v262 = vpop.f32.mrb[0].mxu0
    %v263 = vadd.f32 0.0, %v262
    %264 = vmatprep.mubr.f32.mxu0 0.0
    %265 = vmatmul.mubr.f32.gmra.mrb[0].mxu0 %v114
    %v266 = vpop.f32.mrb[0].mxu0
    %v267 = vadd.f32 0.0, %v266
    %v268 = vpop.f32.mrb[0].mxu0
    %v269 = vadd.f32 0.0, %v268
    %270 = vmatprep.mubr.f32.mxu0 0.0
    %271 = vmatmul.mubr.f32.gmra.mrb[0].mxu0 %v115
    %v272 = vpop.f32.mrb[0].mxu0
    %v273 = vadd.f32 0.0, %v272
    %v274 = vpop.f32.mrb[0].mxu0
    %v275 = vadd.f32 0.0, %v274
    %276 = vdwg.mxu0
    %277 = vmatprep.subr.mxu0 0.0
    %278 = vmatpush1.msra.mxu0 %v118
    %279 = vmatprep.subr.mxu0 0.0
    %280 = vmatpush1.msra.mxu0 %v121
    %281 = vmatprep.subr.mxu0 0.0
    %282 = vmatpush1.msra.mxu0 %v124
    %283 = vmatprep.subr.mxu0 0.0
    %284 = vmatpush1.msra.mxu0 %v127
    %285 = vmatprep.subr.mxu0 0.0
    %286 = vmatpush1.msra.mxu0 %v130
    %287 = vmatprep.subr.mxu0 0.0
    %288 = vmatpush1.msra.mxu0 %v133
    %289 = vmatprep.subr.mxu0 0.0
    %290 = vmatpush1.msra.mxu0 %v136
    %291 = vmatprep.subr.mxu0 0.0
    %292 = vmatpush1.msra.mxu0 %v139
    %293 = vmatprep.subr.mxu0 0.0
    %294 = vmatpush1.msra.mxu0 %v142
    %295 = vmatprep.subr.mxu0 0.0
    %296 = vmatpush1.msra.mxu0 %v145
    %297 = vmatprep.subr.mxu0 0.0
    %298 = vmatpush1.msra.mxu0 %v148
    %299 = vmatprep.subr.mxu0 0.0
    %300 = vmatpush1.msra.mxu0 %v151
    %301 = vmatprep.subr.mxu0 0.0
    %302 = vmatpush1.msra.mxu0 %v154
    %303 = vmatprep.subr.mxu0 0.0
    %304 = vmatpush1.msra.mxu0 %v157
    %305 = vmatprep.subr.mxu0 0.0
    %306 = vmatpush1.msra.mxu0 %v160
    %307 = vmatprep.subr.mxu0 0.0
    %308 = vmatpush1.msra.mxu0 %v163
    %309 = vmatprep.subr.mxu0 0.0
    %310 = vmatpush1.msra.mxu0 0.0
    %311 = vmatprep.subr.mxu0 0.0
    %312 = vmatpush1.msra.mxu0 0.0
    %313 = vmatprep.subr.mxu0 0.0
    %314 = vmatpush1.msra.mxu0 0.0
    %315 = vmatprep.subr.mxu0 0.0
    %316 = vmatpush1.msra.mxu0 0.0
    %317 = vmatprep.subr.mxu0 0.0
    %318 = vmatpush1.msra.mxu0 0.0
    %319 = vmatprep.subr.mxu0 0.0
    %320 = vmatpush1.msra.mxu0 0.0
    %321 = vmatprep.subr.mxu0 0.0
    %322 = vmatpush1.msra.mxu0 0.0
    %323 = vmatprep.subr.mxu0 0.0
    %324 = vmatpush1.msra.mxu0 0.0
    %325 = vmatprep.subr.mxu0 0.0
    %326 = vmatpush1.msra.mxu0 0.0
    %327 = vmatprep.subr.mxu0 0.0
    %328 = vmatpush1.msra.mxu0 0.0
    %329 = vmatprep.subr.mxu0 0.0
    %330 = vmatpush1.msra.mxu0 0.0
    %331 = vmatprep.subr.mxu0 0.0
    %332 = vmatpush1.msra.mxu0 0.0
    %333 = vmatprep.subr.mxu0 0.0
    %334 = vmatpush1.msra.mxu0 0.0
    %335 = vmatprep.subr.mxu0 0.0
    %336 = vmatpush1.msra.mxu0 0.0
    %337 = vmatprep.subr.mxu0 0.0
    %338 = vmatpush1.msra.mxu0 0.0
    %339 = vmatprep.subr.mxu0 0.0
    %340 = vmatpush1.msra.mxu0 0.0
    %341 = vmatprep.mubr.f32.mxu0 0.0
    %342 = vmatmul.mubr.f32.gmra.mrb[0].mxu0 %v108
    %v343 = vpop.f32.mrb[0].mxu0
    %v344 = vadd.f32 0.0, %v343
    %v345 = vpop.f32.mrb[0].mxu0
    %346 = vmatprep.mubr.f32.mxu0 0.0
    %347 = vmatmul.mubr.f32.gmra.mrb[0].mxu0 %v109
    %v348 = vpop.f32.mrb[0].mxu0
    %v349 = vadd.f32 0.0, %v348
    %v350 = vpop.f32.mrb[0].mxu0
    %351 = vmatprep.mubr.f32.mxu0 0.0
    %352 = vmatmul.mubr.f32.gmra.mrb[0].mxu0 %v110
    %v353 = vpop.f32.mrb[0].mxu0
    %v354 = vadd.f32 0.0, %v353
    %v355 = vpop.f32.mrb[0].mxu0
    %356 = vmatprep.mubr.f32.mxu0 0.0
    %357 = vmatmul.mubr.f32.gmra.mrb[0].mxu0 %v111
    %v358 = vpop.f32.mrb[0].mxu0
    %v359 = vadd.f32 0.0, %v358
    %v360 = vpop.f32.mrb[0].mxu0
    %361 = vmatprep.mubr.f32.mxu0 0.0
    %362 = vmatmul.mubr.f32.gmra.mrb[0].mxu0 %v112
    %v363 = vpop.f32.mrb[0].mxu0
    %v364 = vadd.f32 0.0, %v363
    %v365 = vpop.f32.mrb[0].mxu0
    %366 = vmatprep.mubr.f32.mxu0 0.0
    %367 = vmatmul.mubr.f32.gmra.mrb[0].mxu0 %v113
    %v368 = vpop.f32.mrb[0].mxu0
    %v369 = vadd.f32 0.0, %v368
    %v370 = vpop.f32.mrb[0].mxu0
    %371 = vmatprep.mubr.f32.mxu0 0.0
    %372 = vmatmul.mubr.f32.gmra.mrb[0].mxu0 %v114
    %v373 = vpop.f32.mrb[0].mxu0
    %v374 = vadd.f32 0.0, %v373
    %v375 = vpop.f32.mrb[0].mxu0
    %376 = vmatprep.mubr.f32.mxu0 0.0
    %377 = vmatmul.mubr.f32.gmra.mrb[0].mxu0 %v115
    %v378 = vpop.f32.mrb[0].mxu0
    %v379 = vadd.f32 0.0, %v378
    %v380 = vpop.f32.mrb[0].mxu0
    %381 = vdwg.mxu0
    %v382 = vld [vmem:[#allocation11] sm:$0x1]
    %v383 = vlaneseq
    %v384 = vshrl.u32 %v383, 7
    %v385 = vsub.s32 0, %v384
    %v386 = vrot.slane %v382, %v385
    %v387 = vadd.f32 %v231, %v386
    %v388 = vadd.f32 %v237, %v386
    %v389 = vadd.f32 %v243, %v386
    %v390 = vadd.f32 %v249, %v386
    %v391 = vadd.f32 %v255, %v386
    %v392 = vadd.f32 %v261, %v386
    %v393 = vadd.f32 %v267, %v386
    %v394 = vadd.f32 %v273, %v386
    %v395 = vmul.f32 %v387, 0.35355338
    %v396 = vmul.f32 %v388, 0.35355338
    %v397 = vmul.f32 %v389, 0.35355338
    %v398 = vmul.f32 %v390, 0.35355338
    %v399 = vmul.f32 %v391, 0.35355338
    %v400 = vmul.f32 %v392, 0.35355338
    %v401 = vmul.f32 %v393, 0.35355338
    %v402 = vmul.f32 %v394, 0.35355338
    %v403 = vld [vmem:[#allocation11 + $0x1] sm:$0x1]
    %v404 = vlaneseq
    %v405 = vshrl.u32 %v404, 7
    %v406 = vsub.s32 0, %v405
    %v407 = vrot.slane %v403, %v406
    %v408 = vadd.f32 %v233, %v407
    %v409 = vadd.f32 %v239, %v407
    %v410 = vadd.f32 %v245, %v407
    %v411 = vadd.f32 %v251, %v407
    %v412 = vadd.f32 %v257, %v407
    %v413 = vadd.f32 %v263, %v407
    %v414 = vadd.f32 %v269, %v407
    %v415 = vadd.f32 %v275, %v407
    %v416 = vld [vmem:[#allocation11 + $0x2] sm:$0x1]
    %v417 = vlaneseq
    %v418 = vshrl.u32 %v417, 7
    %v419 = vsub.s32 0, %v418
    %v420 = vrot.slane %v416, %v419
    %v421 = vadd.f32 %v344, %v420
    %v422 = vadd.f32 %v349, %v420
    %v423 = vadd.f32 %v354, %v420
    %v424 = vadd.f32 %v359, %v420
    %v425 = vadd.f32 %v364, %v420
    %v426 = vadd.f32 %v369, %v420
    %v427 = vadd.f32 %v374, %v420
    %v428 = vadd.f32 %v379, %v420
    %v437 = vcombine.high %v395, %v395
    %v439 = vunpack.c.l.s4 1966171168
    %v440 = vunpack.c.0.s8 %v439
    %v441 = vlaneseq
    %v442 = vshrl.u32 %v441, 7
    %v443 = vsub.s32 %v440, %v442
    %v444 = vrot.slane %v395, %v443
    %v446 = vunpack.c.l.s4 1966171168
    %v447 = vunpack.c.0.s8 %v446
    %v448 = vlaneseq
    %v449 = vshrl.u32 %v448, 7
    %v450 = vsub.s32 %v447, %v449
    %v451 = vrot.slane %v437, %v450
    %v452 = vcombine.high %v444, %v444
    %v453 = vcombine.high %v451, %v451
    %v455 = vunpack.c.l.s4 1966171168
    %v456 = vunpack.c.0.s8 %v455
    %v457 = vlaneseq
    %v458 = vshrl.u32 %v457, 7
    %v459 = vsub.s32 %v456, %v458
    %v460 = vrot.slane %v444, %v459
    %v462 = vunpack.c.l.s4 1966171168
    %v463 = vunpack.c.0.s8 %v462
    %v464 = vlaneseq
    %v465 = vshrl.u32 %v464, 7
    %v466 = vsub.s32 %v463, %v465
    %v467 = vrot.slane %v451, %v466
    %v469 = vunpack.c.l.s4 1966171168
    %v470 = vunpack.c.0.s8 %v469
    %v471 = vlaneseq
    %v472 = vshrl.u32 %v471, 7
    %v473 = vsub.s32 %v470, %v472
    %v474 = vrot.slane %v452, %v473
    %v476 = vunpack.c.l.s4 1966171168
    %v477 = vunpack.c.0.s8 %v476
    %v478 = vlaneseq
    %v479 = vshrl.u32 %v478, 7
    %v480 = vsub.s32 %v477, %v479
    %v481 = vrot.slane %v453, %v480
    %v482 = vcombine.high %v460, %v460
    %v483 = vcombine.high %v467, %v467
    %v484 = vcombine.high %v474, %v474
    %v485 = vcombine.high %v481, %v481
    %v486 = vcombine.high %v396, %v396
    %v488 = vunpack.c.l.s4 1966171168
    %v489 = vunpack.c.0.s8 %v488
    %v490 = vlaneseq
    %v491 = vshrl.u32 %v490, 7
    %v492 = vsub.s32 %v489, %v491
    %v493 = vrot.slane %v396, %v492
    %v495 = vunpack.c.l.s4 1966171168
    %v496 = vunpack.c.0.s8 %v495
    %v497 = vlaneseq
    %v498 = vshrl.u32 %v497, 7
    %v499 = vsub.s32 %v496, %v498
    %v500 = vrot.slane %v486, %v499
    %v501 = vcombine.high %v493, %v493
    %v502 = vcombine.high %v500, %v500
    %v504 = vunpack.c.l.s4 1966171168
    %v505 = vunpack.c.0.s8 %v504
    %v506 = vlaneseq
    %v507 = vshrl.u32 %v506, 7
    %v508 = vsub.s32 %v505, %v507
    %v509 = vrot.slane %v493, %v508
    %v511 = vunpack.c.l.s4 1966171168
    %v512 = vunpack.c.0.s8 %v511
    %v513 = vlaneseq
    %v514 = vshrl.u32 %v513, 7
    %v515 = vsub.s32 %v512, %v514
    %v516 = vrot.slane %v500, %v515
    %v518 = vunpack.c.l.s4 1966171168
    %v519 = vunpack.c.0.s8 %v518
    %v520 = vlaneseq
    %v521 = vshrl.u32 %v520, 7
    %v522 = vsub.s32 %v519, %v521
    %v523 = vrot.slane %v501, %v522
    %v525 = vunpack.c.l.s4 1966171168
    %v526 = vunpack.c.0.s8 %v525
    %v527 = vlaneseq
    %v528 = vshrl.u32 %v527, 7
    %v529 = vsub.s32 %v526, %v528
    %v530 = vrot.slane %v502, %v529
    %v531 = vcombine.high %v509, %v509
    %v532 = vcombine.high %v516, %v516
    %v533 = vcombine.high %v523, %v523
    %v534 = vcombine.high %v530, %v530
    %v535 = vcombine.high %v397, %v397
    %v537 = vunpack.c.l.s4 1966171168
    %v538 = vunpack.c.0.s8 %v537
    %v539 = vlaneseq
    %v540 = vshrl.u32 %v539, 7
    %v541 = vsub.s32 %v538, %v540
    %v542 = vrot.slane %v397, %v541
    %v544 = vunpack.c.l.s4 1966171168
    %v545 = vunpack.c.0.s8 %v544
    %v546 = vlaneseq
    %v547 = vshrl.u32 %v546, 7
    %v548 = vsub.s32 %v545, %v547
    %v549 = vrot.slane %v535, %v548
    %v550 = vcombine.high %v542, %v542
    %v551 = vcombine.high %v549, %v549
    %v553 = vunpack.c.l.s4 1966171168
    %v554 = vunpack.c.0.s8 %v553
    %v555 = vlaneseq
    %v556 = vshrl.u32 %v555, 7
    %v557 = vsub.s32 %v554, %v556
    %v558 = vrot.slane %v542, %v557
    %v560 = vunpack.c.l.s4 1966171168
    %v561 = vunpack.c.0.s8 %v560
    %v562 = vlaneseq
    %v563 = vshrl.u32 %v562, 7
    %v564 = vsub.s32 %v561, %v563
    %v565 = vrot.slane %v549, %v564
    %v567 = vunpack.c.l.s4 1966171168
    %v568 = vunpack.c.0.s8 %v567
    %v569 = vlaneseq
    %v570 = vshrl.u32 %v569, 7
    %v571 = vsub.s32 %v568, %v570
    %v572 = vrot.slane %v550, %v571
    %v574 = vunpack.c.l.s4 1966171168
    %v575 = vunpack.c.0.s8 %v574
    %v576 = vlaneseq
    %v577 = vshrl.u32 %v576, 7
    %v578 = vsub.s32 %v575, %v577
    %v579 = vrot.slane %v551, %v578
    %v580 = vcombine.high %v558, %v558
    %v581 = vcombine.high %v565, %v565
    %v582 = vcombine.high %v572, %v572
    %v583 = vcombine.high %v579, %v579
    %v584 = vcombine.high %v398, %v398
    %v586 = vunpack.c.l.s4 1966171168
    %v587 = vunpack.c.0.s8 %v586
    %v588 = vlaneseq
    %v589 = vshrl.u32 %v588, 7
    %v590 = vsub.s32 %v587, %v589
    %v591 = vrot.slane %v398, %v590
    %v593 = vunpack.c.l.s4 1966171168
    %v594 = vunpack.c.0.s8 %v593
    %v595 = vlaneseq
    %v596 = vshrl.u32 %v595, 7
    %v597 = vsub.s32 %v594, %v596
    %v598 = vrot.slane %v584, %v597
    %v599 = vcombine.high %v591, %v591
    %v600 = vcombine.high %v598, %v598
    %v602 = vunpack.c.l.s4 1966171168
    %v603 = vunpack.c.0.s8 %v602
    %v604 = vlaneseq
    %v605 = vshrl.u32 %v604, 7
    %v606 = vsub.s32 %v603, %v605
    %v607 = vrot.slane %v591, %v606
    %v609 = vunpack.c.l.s4 1966171168
    %v610 = vunpack.c.0.s8 %v609
    %v611 = vlaneseq
    %v612 = vshrl.u32 %v611, 7
    %v613 = vsub.s32 %v610, %v612
    %v614 = vrot.slane %v598, %v613
    %v616 = vunpack.c.l.s4 1966171168
    %v617 = vunpack.c.0.s8 %v616
    %v618 = vlaneseq
    %v619 = vshrl.u32 %v618, 7
    %v620 = vsub.s32 %v617, %v619
    %v621 = vrot.slane %v599, %v620
    %v623 = vunpack.c.l.s4 1966171168
    %v624 = vunpack.c.0.s8 %v623
    %v625 = vlaneseq
    %v626 = vshrl.u32 %v625, 7
    %v627 = vsub.s32 %v624, %v626
    %v628 = vrot.slane %v600, %v627
    %v629 = vcombine.high %v607, %v607
    %v630 = vcombine.high %v614, %v614
    %v631 = vcombine.high %v621, %v621
    %v632 = vcombine.high %v628, %v628
    %v633 = vcombine.high %v399, %v399
    %v635 = vunpack.c.l.s4 1966171168
    %v636 = vunpack.c.0.s8 %v635
    %v637 = vlaneseq
    %v638 = vshrl.u32 %v637, 7
    %v639 = vsub.s32 %v636, %v638
    %v640 = vrot.slane %v399, %v639
    %v642 = vunpack.c.l.s4 1966171168
    %v643 = vunpack.c.0.s8 %v642
    %v644 = vlaneseq
    %v645 = vshrl.u32 %v644, 7
    %v646 = vsub.s32 %v643, %v645
    %v647 = vrot.slane %v633, %v646
    %v648 = vcombine.high %v640, %v640
    %v649 = vcombine.high %v647, %v647
    %v651 = vunpack.c.l.s4 1966171168
    %v652 = vunpack.c.0.s8 %v651
    %v653 = vlaneseq
    %v654 = vshrl.u32 %v653, 7
    %v655 = vsub.s32 %v652, %v654
    %v656 = vrot.slane %v640, %v655
    %v658 = vunpack.c.l.s4 1966171168
    %v659 = vunpack.c.0.s8 %v658
    %v660 = vlaneseq
    %v661 = vshrl.u32 %v660, 7
    %v662 = vsub.s32 %v659, %v661
    %v663 = vrot.slane %v647, %v662
    %v665 = vunpack.c.l.s4 1966171168
    %v666 = vunpack.c.0.s8 %v665
    %v667 = vlaneseq
    %v668 = vshrl.u32 %v667, 7
    %v669 = vsub.s32 %v666, %v668
    %v670 = vrot.slane %v648, %v669
    %v672 = vunpack.c.l.s4 1966171168
    %v673 = vunpack.c.0.s8 %v672
    %v674 = vlaneseq
    %v675 = vshrl.u32 %v674, 7
    %v676 = vsub.s32 %v673, %v675
    %v677 = vrot.slane %v649, %v676
    %v678 = vcombine.high %v656, %v656
    %v679 = vcombine.high %v663, %v663
    %v680 = vcombine.high %v670, %v670
    %v681 = vcombine.high %v677, %v677
    %v682 = vcombine.high %v400, %v400
    %v684 = vunpack.c.l.s4 1966171168
    %v685 = vunpack.c.0.s8 %v684
    %v686 = vlaneseq
    %v687 = vshrl.u32 %v686, 7
    %v688 = vsub.s32 %v685, %v687
    %v689 = vrot.slane %v400, %v688
    %v691 = vunpack.c.l.s4 1966171168
    %v692 = vunpack.c.0.s8 %v691
    %v693 = vlaneseq
    %v694 = vshrl.u32 %v693, 7
    %v695 = vsub.s32 %v692, %v694
    %v696 = vrot.slane %v682, %v695
    %v697 = vcombine.high %v689, %v689
    %v698 = vcombine.high %v696, %v696
    %v700 = vunpack.c.l.s4 1966171168
    %v701 = vunpack.c.0.s8 %v700
    %v702 = vlaneseq
    %v703 = vshrl.u32 %v702, 7
    %v704 = vsub.s32 %v701, %v703
    %v705 = vrot.slane %v689, %v704
    %v707 = vunpack.c.l.s4 1966171168
    %v708 = vunpack.c.0.s8 %v707
    %v709 = vlaneseq
    %v710 = vshrl.u32 %v709, 7
    %v711 = vsub.s32 %v708, %v710
    %v712 = vrot.slane %v696, %v711
    %v714 = vunpack.c.l.s4 1966171168
    %v715 = vunpack.c.0.s8 %v714
    %v716 = vlaneseq
    %v717 = vshrl.u32 %v716, 7
    %v718 = vsub.s32 %v715, %v717
    %v719 = vrot.slane %v697, %v718
    %v721 = vunpack.c.l.s4 1966171168
    %v722 = vunpack.c.0.s8 %v721
    %v723 = vlaneseq
    %v724 = vshrl.u32 %v723, 7
    %v725 = vsub.s32 %v722, %v724
    %v726 = vrot.slane %v698, %v725
    %v727 = vcombine.high %v705, %v705
    %v728 = vcombine.high %v712, %v712
    %v729 = vcombine.high %v719, %v719
    %v730 = vcombine.high %v726, %v726
    %v731 = vcombine.high %v401, %v401
    %v733 = vunpack.c.l.s4 1966171168
    %v734 = vunpack.c.0.s8 %v733
    %v735 = vlaneseq
    %v736 = vshrl.u32 %v735, 7
    %v737 = vsub.s32 %v734, %v736
    %v738 = vrot.slane %v401, %v737
    %v740 = vunpack.c.l.s4 1966171168
    %v741 = vunpack.c.0.s8 %v740
    %v742 = vlaneseq
    %v743 = vshrl.u32 %v742, 7
    %v744 = vsub.s32 %v741, %v743
    %v745 = vrot.slane %v731, %v744
    %v746 = vcombine.high %v738, %v738
    %v747 = vcombine.high %v745, %v745
    %v749 = vunpack.c.l.s4 1966171168
    %v750 = vunpack.c.0.s8 %v749
    %v751 = vlaneseq
    %v752 = vshrl.u32 %v751, 7
    %v753 = vsub.s32 %v750, %v752
    %v754 = vrot.slane %v738, %v753
    %v756 = vunpack.c.l.s4 1966171168
    %v757 = vunpack.c.0.s8 %v756
    %v758 = vlaneseq
    %v759 = vshrl.u32 %v758, 7
    %v760 = vsub.s32 %v757, %v759
    %v761 = vrot.slane %v745, %v760
    %v763 = vunpack.c.l.s4 1966171168
    %v764 = vunpack.c.0.s8 %v763
    %v765 = vlaneseq
    %v766 = vshrl.u32 %v765, 7
    %v767 = vsub.s32 %v764, %v766
    %v768 = vrot.slane %v746, %v767
    %v770 = vunpack.c.l.s4 1966171168
    %v771 = vunpack.c.0.s8 %v770
    %v772 = vlaneseq
    %v773 = vshrl.u32 %v772, 7
    %v774 = vsub.s32 %v771, %v773
    %v775 = vrot.slane %v747, %v774
    %v776 = vcombine.high %v754, %v754
    %v777 = vcombine.high %v761, %v761
    %v778 = vcombine.high %v768, %v768
    %v779 = vcombine.high %v775, %v775
    %v780 = vcombine.high %v402, %v402
    %v782 = vunpack.c.l.s4 1966171168
    %v783 = vunpack.c.0.s8 %v782
    %v784 = vlaneseq
    %v785 = vshrl.u32 %v784, 7
    %v786 = vsub.s32 %v783, %v785
    %v787 = vrot.slane %v402, %v786
    %v789 = vunpack.c.l.s4 1966171168
    %v790 = vunpack.c.0.s8 %v789
    %v791 = vlaneseq
    %v792 = vshrl.u32 %v791, 7
    %v793 = vsub.s32 %v790, %v792
    %v794 = vrot.slane %v780, %v793
    %v795 = vcombine.high %v787, %v787
    %v796 = vcombine.high %v794, %v794
    %v798 = vunpack.c.l.s4 1966171168
    %v799 = vunpack.c.0.s8 %v798
    %v800 = vlaneseq
    %v801 = vshrl.u32 %v800, 7
    %v802 = vsub.s32 %v799, %v801
    %v803 = vrot.slane %v787, %v802
    %v805 = vunpack.c.l.s4 1966171168
    %v806 = vunpack.c.0.s8 %v805
    %v807 = vlaneseq
    %v808 = vshrl.u32 %v807, 7
    %v809 = vsub.s32 %v806, %v808
    %v810 = vrot.slane %v794, %v809
    %v812 = vunpack.c.l.s4 1966171168
    %v813 = vunpack.c.0.s8 %v812
    %v814 = vlaneseq
    %v815 = vshrl.u32 %v814, 7
    %v816 = vsub.s32 %v813, %v815
    %v817 = vrot.slane %v795, %v816
    %v819 = vunpack.c.l.s4 1966171168
    %v820 = vunpack.c.0.s8 %v819
    %v821 = vlaneseq
    %v822 = vshrl.u32 %v821, 7
    %v823 = vsub.s32 %v820, %v822
    %v824 = vrot.slane %v796, %v823
    %v825 = vcombine.high %v803, %v803
    %v826 = vcombine.high %v810, %v810
    %v827 = vcombine.high %v817, %v817
    %v828 = vcombine.high %v824, %v824
    %v829 = vlaneseq
    %v830 = vshrl.u32 %v829, 7
    %v831 = vsub.s32 0, %v830
    %v832 = vrot.slane %v460, %v831
    %v833 = vlaneseq
    %v834 = vshrl.u32 %v833, 7
    %v835 = vsub.s32 0, %v834
    %v836 = vrot.slane %v474, %v835
    %v837 = vlaneseq
    %v838 = vshrl.u32 %v837, 7
    %v839 = vsub.s32 0, %v838
    %v840 = vrot.slane %v482, %v839
    %v841 = vlaneseq
    %v842 = vshrl.u32 %v841, 7
    %v843 = vsub.s32 0, %v842
    %v844 = vrot.slane %v484, %v843
    %v845 = vlaneseq
    %v846 = vshrl.u32 %v845, 7
    %v847 = vsub.s32 0, %v846
    %v848 = vrot.slane %v467, %v847
    %v849 = vlaneseq
    %v850 = vshrl.u32 %v849, 7
    %v851 = vsub.s32 0, %v850
    %v852 = vrot.slane %v481, %v851
    %v853 = vlaneseq
    %v854 = vshrl.u32 %v853, 7
    %v855 = vsub.s32 0, %v854
    %v856 = vrot.slane %v483, %v855
    %v857 = vlaneseq
    %v858 = vshrl.u32 %v857, 7
    %v859 = vsub.s32 0, %v858
    %v860 = vrot.slane %v485, %v859
    %v861 = vlaneseq
    %v862 = vshrl.u32 %v861, 7
    %v863 = vsub.s32 0, %v862
    %v864 = vrot.slane %v509, %v863
    %v865 = vlaneseq
    %v866 = vshrl.u32 %v865, 7
    %v867 = vsub.s32 0, %v866
    %v868 = vrot.slane %v523, %v867
    %v869 = vlaneseq
    %v870 = vshrl.u32 %v869, 7
    %v871 = vsub.s32 0, %v870
    %v872 = vrot.slane %v531, %v871
    %v873 = vlaneseq
    %v874 = vshrl.u32 %v873, 7
    %v875 = vsub.s32 0, %v874
    %v876 = vrot.slane %v533, %v875
    %v877 = vlaneseq
    %v878 = vshrl.u32 %v877, 7
    %v879 = vsub.s32 0, %v878
    %v880 = vrot.slane %v516, %v879
    %v881 = vlaneseq
    %v882 = vshrl.u32 %v881, 7
    %v883 = vsub.s32 0, %v882
    %v884 = vrot.slane %v530, %v883
    %v885 = vlaneseq
    %v886 = vshrl.u32 %v885, 7
    %v887 = vsub.s32 0, %v886
    %v888 = vrot.slane %v532, %v887
    %v889 = vlaneseq
    %v890 = vshrl.u32 %v889, 7
    %v891 = vsub.s32 0, %v890
    %v892 = vrot.slane %v534, %v891
    %v893 = vlaneseq
    %v894 = vshrl.u32 %v893, 7
    %v895 = vsub.s32 0, %v894
    %v896 = vrot.slane %v558, %v895
    %v897 = vlaneseq
    %v898 = vshrl.u32 %v897, 7
    %v899 = vsub.s32 0, %v898
    %v900 = vrot.slane %v572, %v899
    %v901 = vlaneseq
    %v902 = vshrl.u32 %v901, 7
    %v903 = vsub.s32 0, %v902
    %v904 = vrot.slane %v580, %v903
    %v905 = vlaneseq
    %v906 = vshrl.u32 %v905, 7
    %v907 = vsub.s32 0, %v906
    %v908 = vrot.slane %v582, %v907
    %v909 = vlaneseq
    %v910 = vshrl.u32 %v909, 7
    %v911 = vsub.s32 0, %v910
    %v912 = vrot.slane %v565, %v911
    %v913 = vlaneseq
    %v914 = vshrl.u32 %v913, 7
    %v915 = vsub.s32 0, %v914
    %v916 = vrot.slane %v579, %v915
    %v917 = vlaneseq
    %v918 = vshrl.u32 %v917, 7
    %v919 = vsub.s32 0, %v918
    %v920 = vrot.slane %v581, %v919
    %v921 = vlaneseq
    %v922 = vshrl.u32 %v921, 7
    %v923 = vsub.s32 0, %v922
    %v924 = vrot.slane %v583, %v923
    %v925 = vlaneseq
    %v926 = vshrl.u32 %v925, 7
    %v927 = vsub.s32 0, %v926
    %v928 = vrot.slane %v607, %v927
    %v929 = vlaneseq
    %v930 = vshrl.u32 %v929, 7
    %v931 = vsub.s32 0, %v930
    %v932 = vrot.slane %v621, %v931
    %v933 = vlaneseq
    %v934 = vshrl.u32 %v933, 7
    %v935 = vsub.s32 0, %v934
    %v936 = vrot.slane %v629, %v935
    %v937 = vlaneseq
    %v938 = vshrl.u32 %v937, 7
    %v939 = vsub.s32 0, %v938
    %v940 = vrot.slane %v631, %v939
    %v941 = vlaneseq
    %v942 = vshrl.u32 %v941, 7
    %v943 = vsub.s32 0, %v942
    %v944 = vrot.slane %v614, %v943
    %v945 = vlaneseq
    %v946 = vshrl.u32 %v945, 7
    %v947 = vsub.s32 0, %v946
    %v948 = vrot.slane %v628, %v947
    %v949 = vlaneseq
    %v950 = vshrl.u32 %v949, 7
    %v951 = vsub.s32 0, %v950
    %v952 = vrot.slane %v630, %v951
    %v953 = vlaneseq
    %v954 = vshrl.u32 %v953, 7
    %v955 = vsub.s32 0, %v954
    %v956 = vrot.slane %v632, %v955
    %v957 = vlaneseq
    %v958 = vshrl.u32 %v957, 7
    %v959 = vsub.s32 0, %v958
    %v960 = vrot.slane %v656, %v959
    %v961 = vlaneseq
    %v962 = vshrl.u32 %v961, 7
    %v963 = vsub.s32 0, %v962
    %v964 = vrot.slane %v670, %v963
    %v965 = vlaneseq
    %v966 = vshrl.u32 %v965, 7
    %v967 = vsub.s32 0, %v966
    %v968 = vrot.slane %v678, %v967
    %v969 = vlaneseq
    %v970 = vshrl.u32 %v969, 7
    %v971 = vsub.s32 0, %v970
    %v972 = vrot.slane %v680, %v971
    %v973 = vlaneseq
    %v974 = vshrl.u32 %v973, 7
    %v975 = vsub.s32 0, %v974
    %v976 = vrot.slane %v663, %v975
    %v977 = vlaneseq
    %v978 = vshrl.u32 %v977, 7
    %v979 = vsub.s32 0, %v978
    %v980 = vrot.slane %v677, %v979
    %v981 = vlaneseq
    %v982 = vshrl.u32 %v981, 7
    %v983 = vsub.s32 0, %v982
    %v984 = vrot.slane %v679, %v983
    %v985 = vlaneseq
    %v986 = vshrl.u32 %v985, 7
    %v987 = vsub.s32 0, %v986
    %v988 = vrot.slane %v681, %v987
    %v989 = vlaneseq
    %v990 = vshrl.u32 %v989, 7
    %v991 = vsub.s32 0, %v990
    %v992 = vrot.slane %v705, %v991
    %v993 = vlaneseq
    %v994 = vshrl.u32 %v993, 7
    %v995 = vsub.s32 0, %v994
    %v996 = vrot.slane %v719, %v995
    %v997 = vlaneseq
    %v998 = vshrl.u32 %v997, 7
    %v999 = vsub.s32 0, %v998
    %v1000 = vrot.slane %v727, %v999
    %v1001 = vlaneseq
    %v1002 = vshrl.u32 %v1001, 7
    %v1003 = vsub.s32 0, %v1002
    %v1004 = vrot.slane %v729, %v1003
    %v1005 = vlaneseq
    %v1006 = vshrl.u32 %v1005, 7
    %v1007 = vsub.s32 0, %v1006
    %v1008 = vrot.slane %v712, %v1007
    %v1009 = vlaneseq
    %v1010 = vshrl.u32 %v1009, 7
    %v1011 = vsub.s32 0, %v1010
    %v1012 = vrot.slane %v726, %v1011
    %v1013 = vlaneseq
    %v1014 = vshrl.u32 %v1013, 7
    %v1015 = vsub.s32 0, %v1014
    %v1016 = vrot.slane %v728, %v1015
    %v1017 = vlaneseq
    %v1018 = vshrl.u32 %v1017, 7
    %v1019 = vsub.s32 0, %v1018
    %v1020 = vrot.slane %v730, %v1019
    %v1021 = vlaneseq
    %v1022 = vshrl.u32 %v1021, 7
    %v1023 = vsub.s32 0, %v1022
    %v1024 = vrot.slane %v754, %v1023
    %v1025 = vlaneseq
    %v1026 = vshrl.u32 %v1025, 7
    %v1027 = vsub.s32 0, %v1026
    %v1028 = vrot.slane %v768, %v1027
    %v1029 = vlaneseq
    %v1030 = vshrl.u32 %v1029, 7
    %v1031 = vsub.s32 0, %v1030
    %v1032 = vrot.slane %v776, %v1031
    %v1033 = vlaneseq
    %v1034 = vshrl.u32 %v1033, 7
    %v1035 = vsub.s32 0, %v1034
    %v1036 = vrot.slane %v778, %v1035
    %v1037 = vlaneseq
    %v1038 = vshrl.u32 %v1037, 7
    %v1039 = vsub.s32 0, %v1038
    %v1040 = vrot.slane %v761, %v1039
    %v1041 = vlaneseq
    %v1042 = vshrl.u32 %v1041, 7
    %v1043 = vsub.s32 0, %v1042
    %v1044 = vrot.slane %v775, %v1043
    %v1045 = vlaneseq
    %v1046 = vshrl.u32 %v1045, 7
    %v1047 = vsub.s32 0, %v1046
    %v1048 = vrot.slane %v777, %v1047
    %v1049 = vlaneseq
    %v1050 = vshrl.u32 %v1049, 7
    %v1051 = vsub.s32 0, %v1050
    %v1052 = vrot.slane %v779, %v1051
    %v1053 = vlaneseq
    %v1054 = vshrl.u32 %v1053, 7
    %v1055 = vsub.s32 0, %v1054
    %v1056 = vrot.slane %v803, %v1055
    %v1057 = vlaneseq
    %v1058 = vshrl.u32 %v1057, 7
    %v1059 = vsub.s32 0, %v1058
    %v1060 = vrot.slane %v817, %v1059
    %v1061 = vlaneseq
    %v1062 = vshrl.u32 %v1061, 7
    %v1063 = vsub.s32 0, %v1062
    %v1064 = vrot.slane %v825, %v1063
    %v1065 = vlaneseq
    %v1066 = vshrl.u32 %v1065, 7
    %v1067 = vsub.s32 0, %v1066
    %v1068 = vrot.slane %v827, %v1067
    %v1069 = vlaneseq
    %v1070 = vshrl.u32 %v1069, 7
    %v1071 = vsub.s32 0, %v1070
    %v1072 = vrot.slane %v810, %v1071
    %v1073 = vlaneseq
    %v1074 = vshrl.u32 %v1073, 7
    %v1075 = vsub.s32 0, %v1074
    %v1076 = vrot.slane %v824, %v1075
    %v1077 = vlaneseq
    %v1078 = vshrl.u32 %v1077, 7
    %v1079 = vsub.s32 0, %v1078
    %v1080 = vrot.slane %v826, %v1079
    %v1081 = vlaneseq
    %v1082 = vshrl.u32 %v1081, 7
    %v1083 = vsub.s32 0, %v1082
    %v1084 = vrot.slane %v828, %v1083
    %v1149 = vmul.f32 %v832, %v408
    %v1150 = vmul.f32 %v836, %v408
    %v1151 = vmul.f32 %v840, %v408
    %v1152 = vmul.f32 %v844, %v408
    %v1153 = vmul.f32 %v848, %v408
    %v1154 = vmul.f32 %v852, %v408
    %v1155 = vmul.f32 %v856, %v408
    %v1156 = vmul.f32 %v860, %v408
    %v1157 = vmul.f32 %v864, %v409
    %v1158 = vmul.f32 %v868, %v409
    %v1159 = vmul.f32 %v872, %v409
    %v1160 = vmul.f32 %v876, %v409
    %v1161 = vmul.f32 %v880, %v409
    %v1162 = vmul.f32 %v884, %v409
    %v1163 = vmul.f32 %v888, %v409
    %v1164 = vmul.f32 %v892, %v409
    %v1165 = vmul.f32 %v896, %v410
    %v1166 = vmul.f32 %v900, %v410
    %v1167 = vmul.f32 %v904, %v410
    %v1168 = vmul.f32 %v908, %v410
    %v1169 = vmul.f32 %v912, %v410
    %v1170 = vmul.f32 %v916, %v410
    %v1171 = vmul.f32 %v920, %v410
    %v1172 = vmul.f32 %v924, %v410
    %v1173 = vmul.f32 %v928, %v411
    %v1174 = vmul.f32 %v932, %v411
    %v1175 = vmul.f32 %v936, %v411
    %v1176 = vmul.f32 %v940, %v411
    %v1177 = vmul.f32 %v944, %v411
    %v1178 = vmul.f32 %v948, %v411
    %v1179 = vmul.f32 %v952, %v411
    %v1180 = vmul.f32 %v956, %v411
    %v1181 = vmul.f32 %v960, %v412
    %v1182 = vmul.f32 %v964, %v412
    %v1183 = vmul.f32 %v968, %v412
    %v1184 = vmul.f32 %v972, %v412
    %v1185 = vmul.f32 %v976, %v412
    %v1186 = vmul.f32 %v980, %v412
    %v1187 = vmul.f32 %v984, %v412
    %v1188 = vmul.f32 %v988, %v412
    %v1189 = vmul.f32 %v992, %v413
    %v1190 = vmul.f32 %v996, %v413
    %v1191 = vmul.f32 %v1000, %v413
    %v1192 = vmul.f32 %v1004, %v413
    %v1193 = vmul.f32 %v1008, %v413
    %v1194 = vmul.f32 %v1012, %v413
    %v1195 = vmul.f32 %v1016, %v413
    %v1196 = vmul.f32 %v1020, %v413
    %v1197 = vmul.f32 %v1024, %v414
    %v1198 = vmul.f32 %v1028, %v414
    %v1199 = vmul.f32 %v1032, %v414
    %v1200 = vmul.f32 %v1036, %v414
    %v1201 = vmul.f32 %v1040, %v414
    %v1202 = vmul.f32 %v1044, %v414
    %v1203 = vmul.f32 %v1048, %v414
    %v1204 = vmul.f32 %v1052, %v414
    %v1205 = vmul.f32 %v1056, %v415
    %v1206 = vmul.f32 %v1060, %v415
    %v1207 = vmul.f32 %v1064, %v415
    %v1208 = vmul.f32 %v1068, %v415
    %v1209 = vmul.f32 %v1072, %v415
    %v1210 = vmul.f32 %v1076, %v415
    %v1211 = vmul.f32 %v1080, %v415
    %v1212 = vmul.f32 %v1084, %v415
    %v1213 = vpack.c.bf16 %v1149, %v1149
    %v1214 = vpack.c.bf16 %v1150, %v1150
    %v1215 = vpack.c.bf16 %v1151, %v1151
    %v1216 = vpack.c.bf16 %v1152, %v1152
    %v1217 = vpack.c.bf16 %v1153, %v1153
    %v1218 = vpack.c.bf16 %v1154, %v1154
    %v1219 = vpack.c.bf16 %v1155, %v1155
    %v1220 = vpack.c.bf16 %v1156, %v1156
    %v1221 = vpack.c.bf16 %v1157, %v1157
    %v1222 = vpack.c.bf16 %v1158, %v1158
    %v1223 = vpack.c.bf16 %v1159, %v1159
    %v1224 = vpack.c.bf16 %v1160, %v1160
    %v1225 = vpack.c.bf16 %v1161, %v1161
    %v1226 = vpack.c.bf16 %v1162, %v1162
    %v1227 = vpack.c.bf16 %v1163, %v1163
    %v1228 = vpack.c.bf16 %v1164, %v1164
    %v1229 = vpack.c.bf16 %v1165, %v1165
    %v1230 = vpack.c.bf16 %v1166, %v1166
    %v1231 = vpack.c.bf16 %v1167, %v1167
    %v1232 = vpack.c.bf16 %v1168, %v1168
    %v1233 = vpack.c.bf16 %v1169, %v1169
    %v1234 = vpack.c.bf16 %v1170, %v1170
    %v1235 = vpack.c.bf16 %v1171, %v1171
    %v1236 = vpack.c.bf16 %v1172, %v1172
    %v1237 = vpack.c.bf16 %v1173, %v1173
    %v1238 = vpack.c.bf16 %v1174, %v1174
    %v1239 = vpack.c.bf16 %v1175, %v1175
    %v1240 = vpack.c.bf16 %v1176, %v1176
    %v1241 = vpack.c.bf16 %v1177, %v1177
    %v1242 = vpack.c.bf16 %v1178, %v1178
    %v1243 = vpack.c.bf16 %v1179, %v1179
    %v1244 = vpack.c.bf16 %v1180, %v1180
    %v1245 = vpack.c.bf16 %v1181, %v1181
    %v1246 = vpack.c.bf16 %v1182, %v1182
    %v1247 = vpack.c.bf16 %v1183, %v1183
    %v1248 = vpack.c.bf16 %v1184, %v1184
    %v1249 = vpack.c.bf16 %v1185, %v1185
    %v1250 = vpack.c.bf16 %v1186, %v1186
    %v1251 = vpack.c.bf16 %v1187, %v1187
    %v1252 = vpack.c.bf16 %v1188, %v1188
    %v1253 = vpack.c.bf16 %v1189, %v1189
    %v1254 = vpack.c.bf16 %v1190, %v1190
    %v1255 = vpack.c.bf16 %v1191, %v1191
    %v1256 = vpack.c.bf16 %v1192, %v1192
    %v1257 = vpack.c.bf16 %v1193, %v1193
    %v1258 = vpack.c.bf16 %v1194, %v1194
    %v1259 = vpack.c.bf16 %v1195, %v1195
    %v1260 = vpack.c.bf16 %v1196, %v1196
    %v1261 = vpack.c.bf16 %v1197, %v1197
    %v1262 = vpack.c.bf16 %v1198, %v1198
    %v1263 = vpack.c.bf16 %v1199, %v1199
    %v1264 = vpack.c.bf16 %v1200, %v1200
    %v1265 = vpack.c.bf16 %v1201, %v1201
    %v1266 = vpack.c.bf16 %v1202, %v1202
    %v1267 = vpack.c.bf16 %v1203, %v1203
    %v1268 = vpack.c.bf16 %v1204, %v1204
    %v1269 = vpack.c.bf16 %v1205, %v1205
    %v1270 = vpack.c.bf16 %v1206, %v1206
    %v1271 = vpack.c.bf16 %v1207, %v1207
    %v1272 = vpack.c.bf16 %v1208, %v1208
    %v1273 = vpack.c.bf16 %v1209, %v1209
    %v1274 = vpack.c.bf16 %v1210, %v1210
    %v1275 = vpack.c.bf16 %v1211, %v1211
    %v1276 = vpack.c.bf16 %v1212, %v1212
    %v1277 = vld [vmem:[#allocation8] sm:$0xf]
    %v1278 = vld [vmem:[#allocation8 + $0x4] sm:$0xf]
    %v1279 = vld [vmem:[#allocation8 + $0x8] sm:$0xf]
    %v1280 = vld [vmem:[#allocation8 + $0xc] sm:$0xf]
    %v1281 = vld [vmem:[#allocation8 + $0x10] sm:$0xf]
    %v1282 = vld [vmem:[#allocation8 + $0x14] sm:$0xf]
    %v1283 = vld [vmem:[#allocation8 + $0x18] sm:$0xf]
    %v1284 = vld [vmem:[#allocation8 + $0x1c] sm:$0xf]
    %v1285 = vld [vmem:[#allocation8 + $0x20] sm:$0xf]
    %v1286 = vld [vmem:[#allocation8 + $0x24] sm:$0xf]
    %v1287 = vld [vmem:[#allocation8 + $0x28] sm:$0xf]
    %v1288 = vld [vmem:[#allocation8 + $0x2c] sm:$0xf]
    %v1289 = vld [vmem:[#allocation8 + $0x30] sm:$0xf]
    %v1290 = vld [vmem:[#allocation8 + $0x34] sm:$0xf]
    %v1291 = vld [vmem:[#allocation8 + $0x38] sm:$0xf]
    %v1292 = vld [vmem:[#allocation8 + $0x3c] sm:$0xf]
    %v1357 = vunpack.c.l.b16 %v1213
    %v1358 = vunpack.c.l.b16 %v1214
    %v1359 = vunpack.c.l.b16 %v1215
    %v1360 = vunpack.c.l.b16 %v1216
    %v1361 = vunpack.c.l.b16 %v1217
    %v1362 = vunpack.c.l.b16 %v1218
    %v1363 = vunpack.c.l.b16 %v1219
    %v1364 = vunpack.c.l.b16 %v1220
    %v1365 = vunpack.c.l.b16 %v1221
    %v1366 = vunpack.c.l.b16 %v1222
    %v1367 = vunpack.c.l.b16 %v1223
    %v1368 = vunpack.c.l.b16 %v1224
    %v1369 = vunpack.c.l.b16 %v1225
    %v1370 = vunpack.c.l.b16 %v1226
    %v1371 = vunpack.c.l.b16 %v1227
    %v1372 = vunpack.c.l.b16 %v1228
    %v1373 = vunpack.c.l.b16 %v1229
    %v1374 = vunpack.c.l.b16 %v1230
    %v1375 = vunpack.c.l.b16 %v1231
    %v1376 = vunpack.c.l.b16 %v1232
    %v1377 = vunpack.c.l.b16 %v1233
    %v1378 = vunpack.c.l.b16 %v1234
    %v1379 = vunpack.c.l.b16 %v1235
    %v1380 = vunpack.c.l.b16 %v1236
    %v1381 = vunpack.c.l.b16 %v1237
    %v1382 = vunpack.c.l.b16 %v1238
    %v1383 = vunpack.c.l.b16 %v1239
    %v1384 = vunpack.c.l.b16 %v1240
    %v1385 = vunpack.c.l.b16 %v1241
    %v1386 = vunpack.c.l.b16 %v1242
    %v1387 = vunpack.c.l.b16 %v1243
    %v1388 = vunpack.c.l.b16 %v1244
    %v1389 = vunpack.c.l.b16 %v1245
    %v1390 = vunpack.c.l.b16 %v1246
    %v1391 = vunpack.c.l.b16 %v1247
    %v1392 = vunpack.c.l.b16 %v1248
    %v1393 = vunpack.c.l.b16 %v1249
    %v1394 = vunpack.c.l.b16 %v1250
    %v1395 = vunpack.c.l.b16 %v1251
    %v1396 = vunpack.c.l.b16 %v1252
    %v1397 = vunpack.c.l.b16 %v1253
    %v1398 = vunpack.c.l.b16 %v1254
    %v1399 = vunpack.c.l.b16 %v1255
    %v1400 = vunpack.c.l.b16 %v1256
    %v1401 = vunpack.c.l.b16 %v1257
    %v1402 = vunpack.c.l.b16 %v1258
    %v1403 = vunpack.c.l.b16 %v1259
    %v1404 = vunpack.c.l.b16 %v1260
    %v1405 = vunpack.c.l.b16 %v1261
    %v1406 = vunpack.c.l.b16 %v1262
    %v1407 = vunpack.c.l.b16 %v1263
    %v1408 = vunpack.c.l.b16 %v1264
    %v1409 = vunpack.c.l.b16 %v1265
    %v1410 = vunpack.c.l.b16 %v1266
    %v1411 = vunpack.c.l.b16 %v1267
    %v1412 = vunpack.c.l.b16 %v1268
    %v1413 = vunpack.c.l.b16 %v1269
    %v1414 = vunpack.c.l.b16 %v1270
    %v1415 = vunpack.c.l.b16 %v1271
    %v1416 = vunpack.c.l.b16 %v1272
    %v1417 = vunpack.c.l.b16 %v1273
    %v1418 = vunpack.c.l.b16 %v1274
    %v1419 = vunpack.c.l.b16 %v1275
    %v1420 = vunpack.c.l.b16 %v1276
    %v1421 = vpack.c.b16 %v1358, %v1357
    %v1422 = vpack.c.b16 %v1360, %v1359
    %v1423 = vpack.c.b16 %v1362, %v1361
    %v1424 = vpack.c.b16 %v1364, %v1363
    %v1425 = vpack.c.b16 %v1366, %v1365
    %v1426 = vpack.c.b16 %v1368, %v1367
    %v1427 = vpack.c.b16 %v1370, %v1369
    %v1428 = vpack.c.b16 %v1372, %v1371
    %v1429 = vpack.c.b16 %v1374, %v1373
    %v1430 = vpack.c.b16 %v1376, %v1375
    %v1431 = vpack.c.b16 %v1378, %v1377
    %v1432 = vpack.c.b16 %v1380, %v1379
    %v1433 = vpack.c.b16 %v1382, %v1381
    %v1434 = vpack.c.b16 %v1384, %v1383
    %v1435 = vpack.c.b16 %v1386, %v1385
    %v1436 = vpack.c.b16 %v1388, %v1387
    %v1437 = vpack.c.b16 %v1390, %v1389
    %v1438 = vpack.c.b16 %v1392, %v1391
    %v1439 = vpack.c.b16 %v1394, %v1393
    %v1440 = vpack.c.b16 %v1396, %v1395
    %v1441 = vpack.c.b16 %v1398, %v1397
    %v1442 = vpack.c.b16 %v1400, %v1399
    %v1443 = vpack.c.b16 %v1402, %v1401
    %v1444 = vpack.c.b16 %v1404, %v1403
    %v1445 = vpack.c.b16 %v1406, %v1405
    %v1446 = vpack.c.b16 %v1408, %v1407
    %v1447 = vpack.c.b16 %v1410, %v1409
    %v1448 = vpack.c.b16 %v1412, %v1411
    %v1449 = vpack.c.b16 %v1414, %v1413
    %v1450 = vpack.c.b16 %v1416, %v1415
    %v1451 = vpack.c.b16 %v1418, %v1417
    %v1452 = vpack.c.b16 %v1420, %v1419
    %v1501 = vunpack.c.l.b16 %v1277
    %v1502 = vunpack.c.l.b16 %v1278
    %v1503 = vunpack.c.l.b16 %v1279
    %v1504 = vunpack.c.l.b16 %v1280
    %v1505 = vunpack.c.l.b16 %v1281
    %v1506 = vunpack.c.l.b16 %v1282
    %v1507 = vunpack.c.l.b16 %v1283
    %v1508 = vunpack.c.l.b16 %v1284
    %v1509 = vunpack.c.l.b16 %v1285
    %v1510 = vunpack.c.l.b16 %v1286
    %v1511 = vunpack.c.l.b16 %v1287
    %v1512 = vunpack.c.l.b16 %v1288
    %v1513 = vunpack.c.l.b16 %v1289
    %v1514 = vunpack.c.l.b16 %v1290
    %v1515 = vunpack.c.l.b16 %v1291
    %v1516 = vunpack.c.l.b16 %v1292
    %v1517 = vpack.c.b16 %v1502, %v1501
    %v1518 = vpack.c.b16 %v1504, %v1503
    %v1519 = vpack.c.b16 %v1506, %v1505
    %v1520 = vpack.c.b16 %v1508, %v1507
    %v1521 = vpack.c.b16 %v1510, %v1509
    %v1522 = vpack.c.b16 %v1512, %v1511
    %v1523 = vpack.c.b16 %v1514, %v1513
    %v1524 = vpack.c.b16 %v1516, %v1515
    %1533 = vmatprep.subr.bf16.mxu0 0
    %1534 = vmatpush1.bf16.msra.mxu0 %v1517
    %1535 = vmatprep.subr.bf16.mxu0 0
    %1536 = vmatpush1.bf16.msra.mxu0 %v1518
    %1537 = vmatprep.subr.bf16.mxu0 0
    %1538 = vmatpush1.bf16.msra.mxu0 %v1519
    %1539 = vmatprep.subr.bf16.mxu0 0
    %1540 = vmatpush1.bf16.msra.mxu0 %v1520
    %1541 = vmatprep.subr.bf16.mxu0 0
    %1542 = vmatpush1.bf16.msra.mxu0 %v1521
    %1543 = vmatprep.subr.bf16.mxu0 0
    %1544 = vmatpush1.bf16.msra.mxu0 %v1522
    %1545 = vmatprep.subr.bf16.mxu0 0
    %1546 = vmatpush1.bf16.msra.mxu0 %v1523
    %1547 = vmatprep.subr.bf16.mxu0 0
    %1548 = vmatpush1.bf16.msra.mxu0 %v1524
    %1549 = vmatprep.subr.bf16.mxu0 0
    %1550 = vmatpush1.bf16.msra.mxu0 0
    %1551 = vmatprep.subr.bf16.mxu0 0
    %1552 = vmatpush1.bf16.msra.mxu0 0
    %1553 = vmatprep.subr.bf16.mxu0 0
    %1554 = vmatpush1.bf16.msra.mxu0 0
    %1555 = vmatprep.subr.bf16.mxu0 0
    %1556 = vmatpush1.bf16.msra.mxu0 0
    %1557 = vmatprep.subr.bf16.mxu0 0
    %1558 = vmatpush1.bf16.msra.mxu0 0
    %1559 = vmatprep.subr.bf16.mxu0 0
    %1560 = vmatpush1.bf16.msra.mxu0 0
    %1561 = vmatprep.subr.bf16.mxu0 0
    %1562 = vmatpush1.bf16.msra.mxu0 0
    %1563 = vmatprep.subr.bf16.mxu0 0
    %1564 = vmatpush1.bf16.msra.mxu0 0
    %1565 = vmatprep.mubr.bf16.mxu0 0
    %1566 = vmatmul.mubr.bf16.gmra.mrb[0].mxu0 %v1421
    %v1567 = vpop.f32.mrb[0].mxu0
    %v1568 = vadd.f32 0.0, %v1567
    %v1569 = vpop.f32.mrb[0].mxu0
    %v1570 = vpop.f32.mrb[0].mxu0
    %v1571 = vadd.f32 0.0, %v1570
    %v1572 = vpop.f32.mrb[0].mxu0
    %1573 = vmatprep.mubr.bf16.mxu0 0
    %1574 = vmatmul.mubr.bf16.gmra.mrb[0].mxu0 %v1422
    %v1575 = vpop.f32.mrb[0].mxu0
    %v1576 = vadd.f32 0.0, %v1575
    %v1577 = vpop.f32.mrb[0].mxu0
    %v1578 = vpop.f32.mrb[0].mxu0
    %v1579 = vadd.f32 0.0, %v1578
    %v1580 = vpop.f32.mrb[0].mxu0
    %1581 = vmatprep.mubr.bf16.mxu0 0
    %1582 = vmatmul.mubr.bf16.gmra.mrb[0].mxu0 %v1423
    %v1583 = vpop.f32.mrb[0].mxu0
    %v1584 = vadd.f32 0.0, %v1583
    %v1585 = vpop.f32.mrb[0].mxu0
    %v1586 = vpop.f32.mrb[0].mxu0
    %v1587 = vadd.f32 0.0, %v1586
    %v1588 = vpop.f32.mrb[0].mxu0
    %1589 = vmatprep.mubr.bf16.mxu0 0
    %1590 = vmatmul.mubr.bf16.gmra.mrb[0].mxu0 %v1424
    %v1591 = vpop.f32.mrb[0].mxu0
    %v1592 = vadd.f32 0.0, %v1591
    %v1593 = vpop.f32.mrb[0].mxu0
    %v1594 = vpop.f32.mrb[0].mxu0
    %v1595 = vadd.f32 0.0, %v1594
    %v1596 = vpop.f32.mrb[0].mxu0
    %1597 = vmatprep.mubr.bf16.mxu0 0
    %1598 = vmatmul.mubr.bf16.gmra.mrb[0].mxu0 %v1425
    %v1599 = vpop.f32.mrb[0].mxu0
    %v1600 = vadd.f32 0.0, %v1599
    %v1601 = vpop.f32.mrb[0].mxu0
    %v1602 = vpop.f32.mrb[0].mxu0
    %v1603 = vadd.f32 0.0, %v1602
    %v1604 = vpop.f32.mrb[0].mxu0
    %1605 = vmatprep.mubr.bf16.mxu0 0
    %1606 = vmatmul.mubr.bf16.gmra.mrb[0].mxu0 %v1426
    %v1607 = vpop.f32.mrb[0].mxu0
    %v1608 = vadd.f32 0.0, %v1607
    %v1609 = vpop.f32.mrb[0].mxu0
    %v1610 = vpop.f32.mrb[0].mxu0
    %v1611 = vadd.f32 0.0, %v1610
    %v1612 = vpop.f32.mrb[0].mxu0
    %1613 = vmatprep.mubr.bf16.mxu0 0
    %1614 = vmatmul.mubr.bf16.gmra.mrb[0].mxu0 %v1427
    %v1615 = vpop.f32.mrb[0].mxu0
    %v1616 = vadd.f32 0.0, %v1615
    %v1617 = vpop.f32.mrb[0].mxu0
    %v1618 = vpop.f32.mrb[0].mxu0
    %v1619 = vadd.f32 0.0, %v1618
    %v1620 = vpop.f32.mrb[0].mxu0
    %1621 = vmatprep.mubr.bf16.mxu0 0
    %1622 = vmatmul.mubr.bf16.gmra.mrb[0].mxu0 %v1428
    %v1623 = vpop.f32.mrb[0].mxu0
    %v1624 = vadd.f32 0.0, %v1623
    %v1625 = vpop.f32.mrb[0].mxu0
    %v1626 = vpop.f32.mrb[0].mxu0
    %v1627 = vadd.f32 0.0, %v1626
    %v1628 = vpop.f32.mrb[0].mxu0
    %1629 = vmatprep.mubr.bf16.mxu0 0
    %1630 = vmatmul.mubr.bf16.gmra.mrb[0].mxu0 %v1429
    %v1631 = vpop.f32.mrb[0].mxu0
    %v1632 = vadd.f32 0.0, %v1631
    %v1633 = vpop.f32.mrb[0].mxu0
    %v1634 = vpop.f32.mrb[0].mxu0
    %v1635 = vadd.f32 0.0, %v1634
    %v1636 = vpop.f32.mrb[0].mxu0
    %1637 = vmatprep.mubr.bf16.mxu0 0
    %1638 = vmatmul.mubr.bf16.gmra.mrb[0].mxu0 %v1430
    %v1639 = vpop.f32.mrb[0].mxu0
    %v1640 = vadd.f32 0.0, %v1639
    %v1641 = vpop.f32.mrb[0].mxu0
    %v1642 = vpop.f32.mrb[0].mxu0
    %v1643 = vadd.f32 0.0, %v1642
    %v1644 = vpop.f32.mrb[0].mxu0
    %1645 = vmatprep.mubr.bf16.mxu0 0
    %1646 = vmatmul.mubr.bf16.gmra.mrb[0].mxu0 %v1431
    %v1647 = vpop.f32.mrb[0].mxu0
    %v1648 = vadd.f32 0.0, %v1647
    %v1649 = vpop.f32.mrb[0].mxu0
    %v1650 = vpop.f32.mrb[0].mxu0
    %v1651 = vadd.f32 0.0, %v1650
    %v1652 = vpop.f32.mrb[0].mxu0
    %1653 = vmatprep.mubr.bf16.mxu0 0
    %1654 = vmatmul.mubr.bf16.gmra.mrb[0].mxu0 %v1432
    %v1655 = vpop.f32.mrb[0].mxu0
    %v1656 = vadd.f32 0.0, %v1655
    %v1657 = vpop.f32.mrb[0].mxu0
    %v1658 = vpop.f32.mrb[0].mxu0
    %v1659 = vadd.f32 0.0, %v1658
    %v1660 = vpop.f32.mrb[0].mxu0
    %1661 = vmatprep.mubr.bf16.mxu0 0
    %1662 = vmatmul.mubr.bf16.gmra.mrb[0].mxu0 %v1433
    %v1663 = vpop.f32.mrb[0].mxu0
    %v1664 = vadd.f32 0.0, %v1663
    %v1665 = vpop.f32.mrb[0].mxu0
    %v1666 = vpop.f32.mrb[0].mxu0
    %v1667 = vadd.f32 0.0, %v1666
    %v1668 = vpop.f32.mrb[0].mxu0
    %1669 = vmatprep.mubr.bf16.mxu0 0
    %1670 = vmatmul.mubr.bf16.gmra.mrb[0].mxu0 %v1434
    %v1671 = vpop.f32.mrb[0].mxu0
    %v1672 = vadd.f32 0.0, %v1671
    %v1673 = vpop.f32.mrb[0].mxu0
    %v1674 = vpop.f32.mrb[0].mxu0
    %v1675 = vadd.f32 0.0, %v1674
    %v1676 = vpop.f32.mrb[0].mxu0
    %1677 = vmatprep.mubr.bf16.mxu0 0
    %1678 = vmatmul.mubr.bf16.gmra.mrb[0].mxu0 %v1435
    %v1679 = vpop.f32.mrb[0].mxu0
    %v1680 = vadd.f32 0.0, %v1679
    %v1681 = vpop.f32.mrb[0].mxu0
    %v1682 = vpop.f32.mrb[0].mxu0
    %v1683 = vadd.f32 0.0, %v1682
    %v1684 = vpop.f32.mrb[0].mxu0
    %1685 = vmatprep.mubr.bf16.mxu0 0
    %1686 = vmatmul.mubr.bf16.gmra.mrb[0].mxu0 %v1436
    %v1687 = vpop.f32.mrb[0].mxu0
    %v1688 = vadd.f32 0.0, %v1687
    %v1689 = vpop.f32.mrb[0].mxu0
    %v1690 = vpop.f32.mrb[0].mxu0
    %v1691 = vadd.f32 0.0, %v1690
    %v1692 = vpop.f32.mrb[0].mxu0
    %1693 = vmatprep.mubr.bf16.mxu0 0
    %1694 = vmatmul.mubr.bf16.gmra.mrb[0].mxu0 %v1437
    %v1695 = vpop.f32.mrb[0].mxu0
    %v1696 = vadd.f32 0.0, %v1695
    %v1697 = vpop.f32.mrb[0].mxu0
    %v1698 = vpop.f32.mrb[0].mxu0
    %v1699 = vadd.f32 0.0, %v1698
    %v1700 = vpop.f32.mrb[0].mxu0
    %1701 = vmatprep.mubr.bf16.mxu0 0
    %1702 = vmatmul.mubr.bf16.gmra.mrb[0].mxu0 %v1438
    %v1703 = vpop.f32.mrb[0].mxu0
    %v1704 = vadd.f32 0.0, %v1703
    %v1705 = vpop.f32.mrb[0].mxu0
    %v1706 = vpop.f32.mrb[0].mxu0
    %v1707 = vadd.f32 0.0, %v1706
    %v1708 = vpop.f32.mrb[0].mxu0
    %1709 = vmatprep.mubr.bf16.mxu0 0
    %1710 = vmatmul.mubr.bf16.gmra.mrb[0].mxu0 %v1439
    %v1711 = vpop.f32.mrb[0].mxu0
    %v1712 = vadd.f32 0.0, %v1711
    %v1713 = vpop.f32.mrb[0].mxu0
    %v1714 = vpop.f32.mrb[0].mxu0
    %v1715 = vadd.f32 0.0, %v1714
    %v1716 = vpop.f32.mrb[0].mxu0
    %1717 = vmatprep.mubr.bf16.mxu0 0
    %1718 = vmatmul.mubr.bf16.gmra.mrb[0].mxu0 %v1440
    %v1719 = vpop.f32.mrb[0].mxu0
    %v1720 = vadd.f32 0.0, %v1719
    %v1721 = vpop.f32.mrb[0].mxu0
    %v1722 = vpop.f32.mrb[0].mxu0
    %v1723 = vadd.f32 0.0, %v1722
    %v1724 = vpop.f32.mrb[0].mxu0
    %1725 = vmatprep.mubr.bf16.mxu0 0
    %1726 = vmatmul.mubr.bf16.gmra.mrb[0].mxu0 %v1441
    %v1727 = vpop.f32.mrb[0].mxu0
    %v1728 = vadd.f32 0.0, %v1727
    %v1729 = vpop.f32.mrb[0].mxu0
    %v1730 = vpop.f32.mrb[0].mxu0
    %v1731 = vadd.f32 0.0, %v1730
    %v1732 = vpop.f32.mrb[0].mxu0
    %1733 = vmatprep.mubr.bf16.mxu0 0
    %1734 = vmatmul.mubr.bf16.gmra.mrb[0].mxu0 %v1442
    %v1735 = vpop.f32.mrb[0].mxu0
    %v1736 = vadd.f32 0.0, %v1735
    %v1737 = vpop.f32.mrb[0].mxu0
    %v1738 = vpop.f32.mrb[0].mxu0
    %v1739 = vadd.f32 0.0, %v1738
    %v1740 = vpop.f32.mrb[0].mxu0
    %1741 = vmatprep.mubr.bf16.mxu0 0
    %1742 = vmatmul.mubr.bf16.gmra.mrb[0].mxu0 %v1443
    %v1743 = vpop.f32.mrb[0].mxu0
    %v1744 = vadd.f32 0.0, %v1743
    %v1745 = vpop.f32.mrb[0].mxu0
    %v1746 = vpop.f32.mrb[0].mxu0
    %v1747 = vadd.f32 0.0, %v1746
    %v1748 = vpop.f32.mrb[0].mxu0
    %1749 = vmatprep.mubr.bf16.mxu0 0
    %1750 = vmatmul.mubr.bf16.gmra.mrb[0].mxu0 %v1444
    %v1751 = vpop.f32.mrb[0].mxu0
    %v1752 = vadd.f32 0.0, %v1751
    %v1753 = vpop.f32.mrb[0].mxu0
    %v1754 = vpop.f32.mrb[0].mxu0
    %v1755 = vadd.f32 0.0, %v1754
    %v1756 = vpop.f32.mrb[0].mxu0
    %1757 = vmatprep.mubr.bf16.mxu0 0
    %1758 = vmatmul.mubr.bf16.gmra.mrb[0].mxu0 %v1445
    %v1759 = vpop.f32.mrb[0].mxu0
    %v1760 = vadd.f32 0.0, %v1759
    %v1761 = vpop.f32.mrb[0].mxu0
    %v1762 = vpop.f32.mrb[0].mxu0
    %v1763 = vadd.f32 0.0, %v1762
    %v1764 = vpop.f32.mrb[0].mxu0
    %1765 = vmatprep.mubr.bf16.mxu0 0
    %1766 = vmatmul.mubr.bf16.gmra.mrb[0].mxu0 %v1446
    %v1767 = vpop.f32.mrb[0].mxu0
    %v1768 = vadd.f32 0.0, %v1767
    %v1769 = vpop.f32.mrb[0].mxu0
    %v1770 = vpop.f32.mrb[0].mxu0
    %v1771 = vadd.f32 0.0, %v1770
    %v1772 = vpop.f32.mrb[0].mxu0
    %1773 = vmatprep.mubr.bf16.mxu0 0
    %1774 = vmatmul.mubr.bf16.gmra.mrb[0].mxu0 %v1447
    %v1775 = vpop.f32.mrb[0].mxu0
    %v1776 = vadd.f32 0.0, %v1775
    %v1777 = vpop.f32.mrb[0].mxu0
    %v1778 = vpop.f32.mrb[0].mxu0
    %v1779 = vadd.f32 0.0, %v1778
    %v1780 = vpop.f32.mrb[0].mxu0
    %1781 = vmatprep.mubr.bf16.mxu0 0
    %1782 = vmatmul.mubr.bf16.gmra.mrb[0].mxu0 %v1448
    %v1783 = vpop.f32.mrb[0].mxu0
    %v1784 = vadd.f32 0.0, %v1783
    %v1785 = vpop.f32.mrb[0].mxu0
    %v1786 = vpop.f32.mrb[0].mxu0
    %v1787 = vadd.f32 0.0, %v1786
    %v1788 = vpop.f32.mrb[0].mxu0
    %1789 = vmatprep.mubr.bf16.mxu0 0
    %1790 = vmatmul.mubr.bf16.gmra.mrb[0].mxu0 %v1449
    %v1791 = vpop.f32.mrb[0].mxu0
    %v1792 = vadd.f32 0.0, %v1791
    %v1793 = vpop.f32.mrb[0].mxu0
    %v1794 = vpop.f32.mrb[0].mxu0
    %v1795 = vadd.f32 0.0, %v1794
    %v1796 = vpop.f32.mrb[0].mxu0
    %1797 = vmatprep.mubr.bf16.mxu0 0
    %1798 = vmatmul.mubr.bf16.gmra.mrb[0].mxu0 %v1450
    %v1799 = vpop.f32.mrb[0].mxu0
    %v1800 = vadd.f32 0.0, %v1799
    %v1801 = vpop.f32.mrb[0].mxu0
    %v1802 = vpop.f32.mrb[0].mxu0
    %v1803 = vadd.f32 0.0, %v1802
    %v1804 = vpop.f32.mrb[0].mxu0
    %1805 = vmatprep.mubr.bf16.mxu0 0
    %1806 = vmatmul.mubr.bf16.gmra.mrb[0].mxu0 %v1451
    %v1807 = vpop.f32.mrb[0].mxu0
    %v1808 = vadd.f32 0.0, %v1807
    %v1809 = vpop.f32.mrb[0].mxu0
    %v1810 = vpop.f32.mrb[0].mxu0
    %v1811 = vadd.f32 0.0, %v1810
    %v1812 = vpop.f32.mrb[0].mxu0
    %1813 = vmatprep.mubr.bf16.mxu0 0
    %1814 = vmatmul.mubr.bf16.gmra.mrb[0].mxu0 %v1452
    %v1815 = vpop.f32.mrb[0].mxu0
    %v1816 = vadd.f32 0.0, %v1815
    %v1817 = vpop.f32.mrb[0].mxu0
    %v1818 = vpop.f32.mrb[0].mxu0
    %v1819 = vadd.f32 0.0, %v1818
    %v1820 = vpop.f32.mrb[0].mxu0
    %1821 = vdwg.mxu0
    %v1822 = vrot.slane %v1568, 4
    %v1823 = vmax.f32 %v1568, %v1822
    %v1824 = vrot.slane %v1823, 2
    %v1825 = vmax.f32 %v1823, %v1824
    %v1826 = vrot.slane %v1825, 1
    %v1827 = vmax.f32 %v1825, %v1826
    %v1828 = vrot.slane %v1571, 4
    %v1829 = vmax.f32 %v1571, %v1828
    %v1830 = vrot.slane %v1829, 2
    %v1831 = vmax.f32 %v1829, %v1830
    %v1832 = vrot.slane %v1831, 1
    %v1833 = vmax.f32 %v1831, %v1832
    %v1834 = vrot.slane %v1576, 4
    %v1835 = vmax.f32 %v1576, %v1834
    %v1836 = vrot.slane %v1835, 2
    %v1837 = vmax.f32 %v1835, %v1836
    %v1838 = vrot.slane %v1837, 1
    %v1839 = vmax.f32 %v1837, %v1838
    %v1840 = vrot.slane %v1579, 4
    %v1841 = vmax.f32 %v1579, %v1840
    %v1842 = vrot.slane %v1841, 2
    %v1843 = vmax.f32 %v1841, %v1842
    %v1844 = vrot.slane %v1843, 1
    %v1845 = vmax.f32 %v1843, %v1844
    %v1846 = vrot.slane %v1584, 4
    %v1847 = vmax.f32 %v1584, %v1846
    %v1848 = vrot.slane %v1847, 2
    %v1849 = vmax.f32 %v1847, %v1848
    %v1850 = vrot.slane %v1849, 1
    %v1851 = vmax.f32 %v1849, %v1850
    %v1852 = vrot.slane %v1587, 4
    %v1853 = vmax.f32 %v1587, %v1852
    %v1854 = vrot.slane %v1853, 2
    %v1855 = vmax.f32 %v1853, %v1854
    %v1856 = vrot.slane %v1855, 1
    %v1857 = vmax.f32 %v1855, %v1856
    %v1858 = vrot.slane %v1592, 4
    %v1859 = vmax.f32 %v1592, %v1858
    %v1860 = vrot.slane %v1859, 2
    %v1861 = vmax.f32 %v1859, %v1860
    %v1862 = vrot.slane %v1861, 1
    %v1863 = vmax.f32 %v1861, %v1862
    %v1864 = vrot.slane %v1595, 4
    %v1865 = vmax.f32 %v1595, %v1864
    %v1866 = vrot.slane %v1865, 2
    %v1867 = vmax.f32 %v1865, %v1866
    %v1868 = vrot.slane %v1867, 1
    %v1869 = vmax.f32 %v1867, %v1868
    %v1870 = vrot.slane %v1600, 4
    %v1871 = vmax.f32 %v1600, %v1870
    %v1872 = vrot.slane %v1871, 2
    %v1873 = vmax.f32 %v1871, %v1872
    %v1874 = vrot.slane %v1873, 1
    %v1875 = vmax.f32 %v1873, %v1874
    %v1876 = vrot.slane %v1603, 4
    %v1877 = vmax.f32 %v1603, %v1876
    %v1878 = vrot.slane %v1877, 2
    %v1879 = vmax.f32 %v1877, %v1878
    %v1880 = vrot.slane %v1879, 1
    %v1881 = vmax.f32 %v1879, %v1880
    %v1882 = vrot.slane %v1608, 4
    %v1883 = vmax.f32 %v1608, %v1882
    %v1884 = vrot.slane %v1883, 2
    %v1885 = vmax.f32 %v1883, %v1884
    %v1886 = vrot.slane %v1885, 1
    %v1887 = vmax.f32 %v1885, %v1886
    %v1888 = vrot.slane %v1611, 4
    %v1889 = vmax.f32 %v1611, %v1888
    %v1890 = vrot.slane %v1889, 2
    %v1891 = vmax.f32 %v1889, %v1890
    %v1892 = vrot.slane %v1891, 1
    %v1893 = vmax.f32 %v1891, %v1892
    %v1894 = vrot.slane %v1616, 4
    %v1895 = vmax.f32 %v1616, %v1894
    %v1896 = vrot.slane %v1895, 2
    %v1897 = vmax.f32 %v1895, %v1896
    %v1898 = vrot.slane %v1897, 1
    %v1899 = vmax.f32 %v1897, %v1898
    %v1900 = vrot.slane %v1619, 4
    %v1901 = vmax.f32 %v1619, %v1900
    %v1902 = vrot.slane %v1901, 2
    %v1903 = vmax.f32 %v1901, %v1902
    %v1904 = vrot.slane %v1903, 1
    %v1905 = vmax.f32 %v1903, %v1904
    %v1906 = vrot.slane %v1624, 4
    %v1907 = vmax.f32 %v1624, %v1906
    %v1908 = vrot.slane %v1907, 2
    %v1909 = vmax.f32 %v1907, %v1908
    %v1910 = vrot.slane %v1909, 1
    %v1911 = vmax.f32 %v1909, %v1910
    %v1912 = vrot.slane %v1627, 4
    %v1913 = vmax.f32 %v1627, %v1912
    %v1914 = vrot.slane %v1913, 2
    %v1915 = vmax.f32 %v1913, %v1914
    %v1916 = vrot.slane %v1915, 1
    %v1917 = vmax.f32 %v1915, %v1916
    %v1918 = vrot.slane %v1632, 4
    %v1919 = vmax.f32 %v1632, %v1918
    %v1920 = vrot.slane %v1919, 2
    %v1921 = vmax.f32 %v1919, %v1920
    %v1922 = vrot.slane %v1921, 1
    %v1923 = vmax.f32 %v1921, %v1922
    %v1924 = vrot.slane %v1635, 4
    %v1925 = vmax.f32 %v1635, %v1924
    %v1926 = vrot.slane %v1925, 2
    %v1927 = vmax.f32 %v1925, %v1926
    %v1928 = vrot.slane %v1927, 1
    %v1929 = vmax.f32 %v1927, %v1928
    %v1930 = vrot.slane %v1640, 4
    %v1931 = vmax.f32 %v1640, %v1930
    %v1932 = vrot.slane %v1931, 2
    %v1933 = vmax.f32 %v1931, %v1932
    %v1934 = vrot.slane %v1933, 1
    %v1935 = vmax.f32 %v1933, %v1934
    %v1936 = vrot.slane %v1643, 4
    %v1937 = vmax.f32 %v1643, %v1936
    %v1938 = vrot.slane %v1937, 2
    %v1939 = vmax.f32 %v1937, %v1938
    %v1940 = vrot.slane %v1939, 1
    %v1941 = vmax.f32 %v1939, %v1940
    %v1942 = vrot.slane %v1648, 4
    %v1943 = vmax.f32 %v1648, %v1942
    %v1944 = vrot.slane %v1943, 2
    %v1945 = vmax.f32 %v1943, %v1944
    %v1946 = vrot.slane %v1945, 1
    %v1947 = vmax.f32 %v1945, %v1946
    %v1948 = vrot.slane %v1651, 4
    %v1949 = vmax.f32 %v1651, %v1948
    %v1950 = vrot.slane %v1949, 2
    %v1951 = vmax.f32 %v1949, %v1950
    %v1952 = vrot.slane %v1951, 1
    %v1953 = vmax.f32 %v1951, %v1952
    %v1954 = vrot.slane %v1656, 4
    %v1955 = vmax.f32 %v1656, %v1954
    %v1956 = vrot.slane %v1955, 2
    %v1957 = vmax.f32 %v1955, %v1956
    %v1958 = vrot.slane %v1957, 1
    %v1959 = vmax.f32 %v1957, %v1958
    %v1960 = vrot.slane %v1659, 4
    %v1961 = vmax.f32 %v1659, %v1960
    %v1962 = vrot.slane %v1961, 2
    %v1963 = vmax.f32 %v1961, %v1962
    %v1964 = vrot.slane %v1963, 1
    %v1965 = vmax.f32 %v1963, %v1964
    %v1966 = vrot.slane %v1664, 4
    %v1967 = vmax.f32 %v1664, %v1966
    %v1968 = vrot.slane %v1967, 2
    %v1969 = vmax.f32 %v1967, %v1968
    %v1970 = vrot.slane %v1969, 1
    %v1971 = vmax.f32 %v1969, %v1970
    %v1972 = vrot.slane %v1667, 4
    %v1973 = vmax.f32 %v1667, %v1972
    %v1974 = vrot.slane %v1973, 2
    %v1975 = vmax.f32 %v1973, %v1974
    %v1976 = vrot.slane %v1975, 1
    %v1977 = vmax.f32 %v1975, %v1976
    %v1978 = vrot.slane %v1672, 4
    %v1979 = vmax.f32 %v1672, %v1978
    %v1980 = vrot.slane %v1979, 2
    %v1981 = vmax.f32 %v1979, %v1980
    %v1982 = vrot.slane %v1981, 1
    %v1983 = vmax.f32 %v1981, %v1982
    %v1984 = vrot.slane %v1675, 4
    %v1985 = vmax.f32 %v1675, %v1984
    %v1986 = vrot.slane %v1985, 2
    %v1987 = vmax.f32 %v1985, %v1986
    %v1988 = vrot.slane %v1987, 1
    %v1989 = vmax.f32 %v1987, %v1988
    %v1990 = vrot.slane %v1680, 4
    %v1991 = vmax.f32 %v1680, %v1990
    %v1992 = vrot.slane %v1991, 2
    %v1993 = vmax.f32 %v1991, %v1992
    %v1994 = vrot.slane %v1993, 1
    %v1995 = vmax.f32 %v1993, %v1994
    %v1996 = vrot.slane %v1683, 4
    %v1997 = vmax.f32 %v1683, %v1996
    %v1998 = vrot.slane %v1997, 2
    %v1999 = vmax.f32 %v1997, %v1998
    %v2000 = vrot.slane %v1999, 1
    %v2001 = vmax.f32 %v1999, %v2000
    %v2002 = vrot.slane %v1688, 4
    %v2003 = vmax.f32 %v1688, %v2002
    %v2004 = vrot.slane %v2003, 2
    %v2005 = vmax.f32 %v2003, %v2004
    %v2006 = vrot.slane %v2005, 1
    %v2007 = vmax.f32 %v2005, %v2006
    %v2008 = vrot.slane %v1691, 4
    %v2009 = vmax.f32 %v1691, %v2008
    %v2010 = vrot.slane %v2009, 2
    %v2011 = vmax.f32 %v2009, %v2010
    %v2012 = vrot.slane %v2011, 1
    %v2013 = vmax.f32 %v2011, %v2012
    %v2014 = vrot.slane %v1696, 4
    %v2015 = vmax.f32 %v1696, %v2014
    %v2016 = vrot.slane %v2015, 2
    %v2017 = vmax.f32 %v2015, %v2016
    %v2018 = vrot.slane %v2017, 1
    %v2019 = vmax.f32 %v2017, %v2018
    %v2020 = vrot.slane %v1699, 4
    %v2021 = vmax.f32 %v1699, %v2020
    %v2022 = vrot.slane %v2021, 2
    %v2023 = vmax.f32 %v2021, %v2022
    %v2024 = vrot.slane %v2023, 1
    %v2025 = vmax.f32 %v2023, %v2024
    %v2026 = vrot.slane %v1704, 4
    %v2027 = vmax.f32 %v1704, %v2026
    %v2028 = vrot.slane %v2027, 2
    %v2029 = vmax.f32 %v2027, %v2028
    %v2030 = vrot.slane %v2029, 1
    %v2031 = vmax.f32 %v2029, %v2030
    %v2032 = vrot.slane %v1707, 4
    %v2033 = vmax.f32 %v1707, %v2032
    %v2034 = vrot.slane %v2033, 2
    %v2035 = vmax.f32 %v2033, %v2034
    %v2036 = vrot.slane %v2035, 1
    %v2037 = vmax.f32 %v2035, %v2036
    %v2038 = vrot.slane %v1712, 4
    %v2039 = vmax.f32 %v1712, %v2038
    %v2040 = vrot.slane %v2039, 2
    %v2041 = vmax.f32 %v2039, %v2040
    %v2042 = vrot.slane %v2041, 1
    %v2043 = vmax.f32 %v2041, %v2042
    %v2044 = vrot.slane %v1715, 4
    %v2045 = vmax.f32 %v1715, %v2044
    %v2046 = vrot.slane %v2045, 2
    %v2047 = vmax.f32 %v2045, %v2046
    %v2048 = vrot.slane %v2047, 1
    %v2049 = vmax.f32 %v2047, %v2048
    %v2050 = vrot.slane %v1720, 4
    %v2051 = vmax.f32 %v1720, %v2050
    %v2052 = vrot.slane %v2051, 2
    %v2053 = vmax.f32 %v2051, %v2052
    %v2054 = vrot.slane %v2053, 1
    %v2055 = vmax.f32 %v2053, %v2054
    %v2056 = vrot.slane %v1723, 4
    %v2057 = vmax.f32 %v1723, %v2056
    %v2058 = vrot.slane %v2057, 2
    %v2059 = vmax.f32 %v2057, %v2058
    %v2060 = vrot.slane %v2059, 1
    %v2061 = vmax.f32 %v2059, %v2060
    %v2062 = vrot.slane %v1728, 4
    %v2063 = vmax.f32 %v1728, %v2062
    %v2064 = vrot.slane %v2063, 2
    %v2065 = vmax.f32 %v2063, %v2064
    %v2066 = vrot.slane %v2065, 1
    %v2067 = vmax.f32 %v2065, %v2066
    %v2068 = vrot.slane %v1731, 4
    %v2069 = vmax.f32 %v1731, %v2068
    %v2070 = vrot.slane %v2069, 2
    %v2071 = vmax.f32 %v2069, %v2070
    %v2072 = vrot.slane %v2071, 1
    %v2073 = vmax.f32 %v2071, %v2072
    %v2074 = vrot.slane %v1736, 4
    %v2075 = vmax.f32 %v1736, %v2074
    %v2076 = vrot.slane %v2075, 2
    %v2077 = vmax.f32 %v2075, %v2076
    %v2078 = vrot.slane %v2077, 1
    %v2079 = vmax.f32 %v2077, %v2078
    %v2080 = vrot.slane %v1739, 4
    %v2081 = vmax.f32 %v1739, %v2080
    %v2082 = vrot.slane %v2081, 2
    %v2083 = vmax.f32 %v2081, %v2082
    %v2084 = vrot.slane %v2083, 1
    %v2085 = vmax.f32 %v2083, %v2084
    %v2086 = vrot.slane %v1744, 4
    %v2087 = vmax.f32 %v1744, %v2086
    %v2088 = vrot.slane %v2087, 2
    %v2089 = vmax.f32 %v2087, %v2088
    %v2090 = vrot.slane %v2089, 1
    %v2091 = vmax.f32 %v2089, %v2090
    %v2092 = vrot.slane %v1747, 4
    %v2093 = vmax.f32 %v1747, %v2092
    %v2094 = vrot.slane %v2093, 2
    %v2095 = vmax.f32 %v2093, %v2094
    %v2096 = vrot.slane %v2095, 1
    %v2097 = vmax.f32 %v2095, %v2096
    %v2098 = vrot.slane %v1752, 4
    %v2099 = vmax.f32 %v1752, %v2098
    %v2100 = vrot.slane %v2099, 2
    %v2101 = vmax.f32 %v2099, %v2100
    %v2102 = vrot.slane %v2101, 1
    %v2103 = vmax.f32 %v2101, %v2102
    %v2104 = vrot.slane %v1755, 4
    %v2105 = vmax.f32 %v1755, %v2104
    %v2106 = vrot.slane %v2105, 2
    %v2107 = vmax.f32 %v2105, %v2106
    %v2108 = vrot.slane %v2107, 1
    %v2109 = vmax.f32 %v2107, %v2108
    %v2110 = vrot.slane %v1760, 4
    %v2111 = vmax.f32 %v1760, %v2110
    %v2112 = vrot.slane %v2111, 2
    %v2113 = vmax.f32 %v2111, %v2112
    %v2114 = vrot.slane %v2113, 1
    %v2115 = vmax.f32 %v2113, %v2114
    %v2116 = vrot.slane %v1763, 4
    %v2117 = vmax.f32 %v1763, %v2116
    %v2118 = vrot.slane %v2117, 2
    %v2119 = vmax.f32 %v2117, %v2118
    %v2120 = vrot.slane %v2119, 1
    %v2121 = vmax.f32 %v2119, %v2120
    %v2122 = vrot.slane %v1768, 4
    %v2123 = vmax.f32 %v1768, %v2122
    %v2124 = vrot.slane %v2123, 2
    %v2125 = vmax.f32 %v2123, %v2124
    %v2126 = vrot.slane %v2125, 1
    %v2127 = vmax.f32 %v2125, %v2126
    %v2128 = vrot.slane %v1771, 4
    %v2129 = vmax.f32 %v1771, %v2128
    %v2130 = vrot.slane %v2129, 2
    %v2131 = vmax.f32 %v2129, %v2130
    %v2132 = vrot.slane %v2131, 1
    %v2133 = vmax.f32 %v2131, %v2132
    %v2134 = vrot.slane %v1776, 4
    %v2135 = vmax.f32 %v1776, %v2134
    %v2136 = vrot.slane %v2135, 2
    %v2137 = vmax.f32 %v2135, %v2136
    %v2138 = vrot.slane %v2137, 1
    %v2139 = vmax.f32 %v2137, %v2138
    %v2140 = vrot.slane %v1779, 4
    %v2141 = vmax.f32 %v1779, %v2140
    %v2142 = vrot.slane %v2141, 2
    %v2143 = vmax.f32 %v2141, %v2142
    %v2144 = vrot.slane %v2143, 1
    %v2145 = vmax.f32 %v2143, %v2144
    %v2146 = vrot.slane %v1784, 4
    %v2147 = vmax.f32 %v1784, %v2146
    %v2148 = vrot.slane %v2147, 2
    %v2149 = vmax.f32 %v2147, %v2148
    %v2150 = vrot.slane %v2149, 1
    %v2151 = vmax.f32 %v2149, %v2150
    %v2152 = vrot.slane %v1787, 4
    %v2153 = vmax.f32 %v1787, %v2152
    %v2154 = vrot.slane %v2153, 2
    %v2155 = vmax.f32 %v2153, %v2154
    %v2156 = vrot.slane %v2155, 1
    %v2157 = vmax.f32 %v2155, %v2156
    %v2158 = vrot.slane %v1792, 4
    %v2159 = vmax.f32 %v1792, %v2158
    %v2160 = vrot.slane %v2159, 2
    %v2161 = vmax.f32 %v2159, %v2160
    %v2162 = vrot.slane %v2161, 1
    %v2163 = vmax.f32 %v2161, %v2162
    %v2164 = vrot.slane %v1795, 4
    %v2165 = vmax.f32 %v1795, %v2164
    %v2166 = vrot.slane %v2165, 2
    %v2167 = vmax.f32 %v2165, %v2166
    %v2168 = vrot.slane %v2167, 1
    %v2169 = vmax.f32 %v2167, %v2168
    %v2170 = vrot.slane %v1800, 4
    %v2171 = vmax.f32 %v1800, %v2170
    %v2172 = vrot.slane %v2171, 2
    %v2173 = vmax.f32 %v2171, %v2172
    %v2174 = vrot.slane %v2173, 1
    %v2175 = vmax.f32 %v2173, %v2174
    %v2176 = vrot.slane %v1803, 4
    %v2177 = vmax.f32 %v1803, %v2176
    %v2178 = vrot.slane %v2177, 2
    %v2179 = vmax.f32 %v2177, %v2178
    %v2180 = vrot.slane %v2179, 1
    %v2181 = vmax.f32 %v2179, %v2180
    %v2182 = vrot.slane %v1808, 4
    %v2183 = vmax.f32 %v1808, %v2182
    %v2184 = vrot.slane %v2183, 2
    %v2185 = vmax.f32 %v2183, %v2184
    %v2186 = vrot.slane %v2185, 1
    %v2187 = vmax.f32 %v2185, %v2186
    %v2188 = vrot.slane %v1811, 4
    %v2189 = vmax.f32 %v1811, %v2188
    %v2190 = vrot.slane %v2189, 2
    %v2191 = vmax.f32 %v2189, %v2190
    %v2192 = vrot.slane %v2191, 1
    %v2193 = vmax.f32 %v2191, %v2192
    %v2194 = vrot.slane %v1816, 4
    %v2195 = vmax.f32 %v1816, %v2194
    %v2196 = vrot.slane %v2195, 2
    %v2197 = vmax.f32 %v2195, %v2196
    %v2198 = vrot.slane %v2197, 1
    %v2199 = vmax.f32 %v2197, %v2198
    %v2200 = vrot.slane %v1819, 4
    %v2201 = vmax.f32 %v1819, %v2200
    %v2202 = vrot.slane %v2201, 2
    %v2203 = vmax.f32 %v2201, %v2202
    %v2204 = vrot.slane %v2203, 1
    %v2205 = vmax.f32 %v2203, %v2204
    %v2206 = vsub.f32 %v1568, %v1827
    %v2207 = vsub.f32 %v1571, %v1833
    %v2208 = vsub.f32 %v1576, %v1839
    %v2209 = vsub.f32 %v1579, %v1845
    %v2210 = vsub.f32 %v1584, %v1851
    %v2211 = vsub.f32 %v1587, %v1857
    %v2212 = vsub.f32 %v1592, %v1863
    %v2213 = vsub.f32 %v1595, %v1869
    %v2214 = vsub.f32 %v1600, %v1875
    %v2215 = vsub.f32 %v1603, %v1881
    %v2216 = vsub.f32 %v1608, %v1887
    %v2217 = vsub.f32 %v1611, %v1893
    %v2218 = vsub.f32 %v1616, %v1899
    %v2219 = vsub.f32 %v1619, %v1905
    %v2220 = vsub.f32 %v1624, %v1911
    %v2221 = vsub.f32 %v1627, %v1917
    %v2222 = vsub.f32 %v1632, %v1923
    %v2223 = vsub.f32 %v1635, %v1929
    %v2224 = vsub.f32 %v1640, %v1935
    %v2225 = vsub.f32 %v1643, %v1941
    %v2226 = vsub.f32 %v1648, %v1947
    %v2227 = vsub.f32 %v1651, %v1953
    %v2228 = vsub.f32 %v1656, %v1959
    %v2229 = vsub.f32 %v1659, %v1965
    %v2230 = vsub.f32 %v1664, %v1971
    %v2231 = vsub.f32 %v1667, %v1977
    %v2232 = vsub.f32 %v1672, %v1983
    %v2233 = vsub.f32 %v1675, %v1989
    %v2234 = vsub.f32 %v1680, %v1995
    %v2235 = vsub.f32 %v1683, %v2001
    %v2236 = vsub.f32 %v1688, %v2007
    %v2237 = vsub.f32 %v1691, %v2013
    %v2238 = vsub.f32 %v1696, %v2019
    %v2239 = vsub.f32 %v1699, %v2025
    %v2240 = vsub.f32 %v1704, %v2031
    %v2241 = vsub.f32 %v1707, %v2037
    %v2242 = vsub.f32 %v1712, %v2043
    %v2243 = vsub.f32 %v1715, %v2049
    %v2244 = vsub.f32 %v1720, %v2055
    %v2245 = vsub.f32 %v1723, %v2061
    %v2246 = vsub.f32 %v1728, %v2067
    %v2247 = vsub.f32 %v1731, %v2073
    %v2248 = vsub.f32 %v1736, %v2079
    %v2249 = vsub.f32 %v1739, %v2085
    %v2250 = vsub.f32 %v1744, %v2091
    %v2251 = vsub.f32 %v1747, %v2097
    %v2252 = vsub.f32 %v1752, %v2103
    %v2253 = vsub.f32 %v1755, %v2109
    %v2254 = vsub.f32 %v1760, %v2115
    %v2255 = vsub.f32 %v1763, %v2121
    %v2256 = vsub.f32 %v1768, %v2127
    %v2257 = vsub.f32 %v1771, %v2133
    %v2258 = vsub.f32 %v1776, %v2139
    %v2259 = vsub.f32 %v1779, %v2145
    %v2260 = vsub.f32 %v1784, %v2151
    %v2261 = vsub.f32 %v1787, %v2157
    %v2262 = vsub.f32 %v1792, %v2163
    %v2263 = vsub.f32 %v1795, %v2169
    %v2264 = vsub.f32 %v1800, %v2175
    %v2265 = vsub.f32 %v1803, %v2181
    %v2266 = vsub.f32 %v1808, %v2187
    %v2267 = vsub.f32 %v1811, %v2193
    %v2268 = vsub.f32 %v1816, %v2199
    %v2269 = vsub.f32 %v1819, %v2205
    %v2270 = vmul.f32 %v2206, 1.442695
    %v2271 = vpow.pop %v2270
    %v2272 = vmul.f32 %v2207, 1.442695
    %v2273 = vpow.pop %v2272
    %v2274 = vmul.f32 %v2208, 1.442695
    %v2275 = vpow.pop %v2274
    %v2276 = vmul.f32 %v2209, 1.442695
    %v2277 = vpow.pop %v2276
    %v2278 = vmul.f32 %v2210, 1.442695
    %v2279 = vpow.pop %v2278
    %v2280 = vmul.f32 %v2211, 1.442695
    %v2281 = vpow.pop %v2280
    %v2282 = vmul.f32 %v2212, 1.442695
    %v2283 = vpow.pop %v2282
    %v2284 = vmul.f32 %v2213, 1.442695
    %v2285 = vpow.pop %v2284
    %v2286 = vmul.f32 %v2214, 1.442695
    %v2287 = vpow.pop %v2286
    %v2288 = vmul.f32 %v2215, 1.442695
    %v2289 = vpow.pop %v2288
    %v2290 = vmul.f32 %v2216, 1.442695
    %v2291 = vpow.pop %v2290
    %v2292 = vmul.f32 %v2217, 1.442695
    %v2293 = vpow.pop %v2292
    %v2294 = vmul.f32 %v2218, 1.442695
    %v2295 = vpow.pop %v2294
    %v2296 = vmul.f32 %v2219, 1.442695
    %v2297 = vpow.pop %v2296
    %v2298 = vmul.f32 %v2220, 1.442695
    %v2299 = vpow.pop %v2298
    %v2300 = vmul.f32 %v2221, 1.442695
    %v2301 = vpow.pop %v2300
    %v2302 = vmul.f32 %v2222, 1.442695
    %v2303 = vpow.pop %v2302
    %v2304 = vmul.f32 %v2223, 1.442695
    %v2305 = vpow.pop %v2304
    %v2306 = vmul.f32 %v2224, 1.442695
    %v2307 = vpow.pop %v2306
    %v2308 = vmul.f32 %v2225, 1.442695
    %v2309 = vpow.pop %v2308
    %v2310 = vmul.f32 %v2226, 1.442695
    %v2311 = vpow.pop %v2310
    %v2312 = vmul.f32 %v2227, 1.442695
    %v2313 = vpow.pop %v2312
    %v2314 = vmul.f32 %v2228, 1.442695
    %v2315 = vpow.pop %v2314
    %v2316 = vmul.f32 %v2229, 1.442695
    %v2317 = vpow.pop %v2316
    %v2318 = vmul.f32 %v2230, 1.442695
    %v2319 = vpow.pop %v2318
    %v2320 = vmul.f32 %v2231, 1.442695
    %v2321 = vpow.pop %v2320
    %v2322 = vmul.f32 %v2232, 1.442695
    %v2323 = vpow.pop %v2322
    %v2324 = vmul.f32 %v2233, 1.442695
    %v2325 = vpow.pop %v2324
    %v2326 = vmul.f32 %v2234, 1.442695
    %v2327 = vpow.pop %v2326
    %v2328 = vmul.f32 %v2235, 1.442695
    %v2329 = vpow.pop %v2328
    %v2330 = vmul.f32 %v2236, 1.442695
    %v2331 = vpow.pop %v2330
    %v2332 = vmul.f32 %v2237, 1.442695
    %v2333 = vpow.pop %v2332
    %v2334 = vmul.f32 %v2238, 1.442695
    %v2335 = vpow.pop %v2334
    %v2336 = vmul.f32 %v2239, 1.442695
    %v2337 = vpow.pop %v2336
    %v2338 = vmul.f32 %v2240, 1.442695
    %v2339 = vpow.pop %v2338
    %v2340 = vmul.f32 %v2241, 1.442695
    %v2341 = vpow.pop %v2340
    %v2342 = vmul.f32 %v2242, 1.442695
    %v2343 = vpow.pop %v2342
    %v2344 = vmul.f32 %v2243, 1.442695
    %v2345 = vpow.pop %v2344
    %v2346 = vmul.f32 %v2244, 1.442695
    %v2347 = vpow.pop %v2346
    %v2348 = vmul.f32 %v2245, 1.442695
    %v2349 = vpow.pop %v2348
    %v2350 = vmul.f32 %v2246, 1.442695
    %v2351 = vpow.pop %v2350
    %v2352 = vmul.f32 %v2247, 1.442695
    %v2353 = vpow.pop %v2352
    %v2354 = vmul.f32 %v2248, 1.442695
    %v2355 = vpow.pop %v2354
    %v2356 = vmul.f32 %v2249, 1.442695
    %v2357 = vpow.pop %v2356
    %v2358 = vmul.f32 %v2250, 1.442695
    %v2359 = vpow.pop %v2358
    %v2360 = vmul.f32 %v2251, 1.442695
    %v2361 = vpow.pop %v2360
    %v2362 = vmul.f32 %v2252, 1.442695
    %v2363 = vpow.pop %v2362
    %v2364 = vmul.f32 %v2253, 1.442695
    %v2365 = vpow.pop %v2364
    %v2366 = vmul.f32 %v2254, 1.442695
    %v2367 = vpow.pop %v2366
    %v2368 = vmul.f32 %v2255, 1.442695
    %v2369 = vpow.pop %v2368
    %v2370 = vmul.f32 %v2256, 1.442695
    %v2371 = vpow.pop %v2370
    %v2372 = vmul.f32 %v2257, 1.442695
    %v2373 = vpow.pop %v2372
    %v2374 = vmul.f32 %v2258, 1.442695
    %v2375 = vpow.pop %v2374
    %v2376 = vmul.f32 %v2259, 1.442695
    %v2377 = vpow.pop %v2376
    %v2378 = vmul.f32 %v2260, 1.442695
    %v2379 = vpow.pop %v2378
    %v2380 = vmul.f32 %v2261, 1.442695
    %v2381 = vpow.pop %v2380
    %v2382 = vmul.f32 %v2262, 1.442695
    %v2383 = vpow.pop %v2382
    %v2384 = vmul.f32 %v2263, 1.442695
    %v2385 = vpow.pop %v2384
    %v2386 = vmul.f32 %v2264, 1.442695
    %v2387 = vpow.pop %v2386
    %v2388 = vmul.f32 %v2265, 1.442695
    %v2389 = vpow.pop %v2388
    %v2390 = vmul.f32 %v2266, 1.442695
    %v2391 = vpow.pop %v2390
    %v2392 = vmul.f32 %v2267, 1.442695
    %v2393 = vpow.pop %v2392
    %v2394 = vmul.f32 %v2268, 1.442695
    %v2395 = vpow.pop %v2394
    %v2396 = vmul.f32 %v2269, 1.442695
    %v2397 = vpow.pop %v2396
    %v2398 = vrot.slane %v2271, 4
    %v2399 = vadd.f32 %v2271, %v2398
    %v2400 = vrot.slane %v2399, 2
    %v2401 = vadd.f32 %v2399, %v2400
    %v2402 = vrot.slane %v2401, 1
    %v2403 = vadd.f32 %v2401, %v2402
    %v2404 = vrot.slane %v2273, 4
    %v2405 = vadd.f32 %v2273, %v2404
    %v2406 = vrot.slane %v2405, 2
    %v2407 = vadd.f32 %v2405, %v2406
    %v2408 = vrot.slane %v2407, 1
    %v2409 = vadd.f32 %v2407, %v2408
    %v2410 = vrot.slane %v2275, 4
    %v2411 = vadd.f32 %v2275, %v2410
    %v2412 = vrot.slane %v2411, 2
    %v2413 = vadd.f32 %v2411, %v2412
    %v2414 = vrot.slane %v2413, 1
    %v2415 = vadd.f32 %v2413, %v2414
    %v2416 = vrot.slane %v2277, 4
    %v2417 = vadd.f32 %v2277, %v2416
    %v2418 = vrot.slane %v2417, 2
    %v2419 = vadd.f32 %v2417, %v2418
    %v2420 = vrot.slane %v2419, 1
    %v2421 = vadd.f32 %v2419, %v2420
    %v2422 = vrot.slane %v2279, 4
    %v2423 = vadd.f32 %v2279, %v2422
    %v2424 = vrot.slane %v2423, 2
    %v2425 = vadd.f32 %v2423, %v2424
    %v2426 = vrot.slane %v2425, 1
    %v2427 = vadd.f32 %v2425, %v2426
    %v2428 = vrot.slane %v2281, 4
    %v2429 = vadd.f32 %v2281, %v2428
    %v2430 = vrot.slane %v2429, 2
    %v2431 = vadd.f32 %v2429, %v2430
    %v2432 = vrot.slane %v2431, 1
    %v2433 = vadd.f32 %v2431, %v2432
    %v2434 = vrot.slane %v2283, 4
    %v2435 = vadd.f32 %v2283, %v2434
    %v2436 = vrot.slane %v2435, 2
    %v2437 = vadd.f32 %v2435, %v2436
    %v2438 = vrot.slane %v2437, 1
    %v2439 = vadd.f32 %v2437, %v2438
    %v2440 = vrot.slane %v2285, 4
    %v2441 = vadd.f32 %v2285, %v2440
    %v2442 = vrot.slane %v2441, 2
    %v2443 = vadd.f32 %v2441, %v2442
    %v2444 = vrot.slane %v2443, 1
    %v2445 = vadd.f32 %v2443, %v2444
    %v2446 = vrot.slane %v2287, 4
    %v2447 = vadd.f32 %v2287, %v2446
    %v2448 = vrot.slane %v2447, 2
    %v2449 = vadd.f32 %v2447, %v2448
    %v2450 = vrot.slane %v2449, 1
    %v2451 = vadd.f32 %v2449, %v2450
    %v2452 = vrot.slane %v2289, 4
    %v2453 = vadd.f32 %v2289, %v2452
    %v2454 = vrot.slane %v2453, 2
    %v2455 = vadd.f32 %v2453, %v2454
    %v2456 = vrot.slane %v2455, 1
    %v2457 = vadd.f32 %v2455, %v2456
    %v2458 = vrot.slane %v2291, 4
    %v2459 = vadd.f32 %v2291, %v2458
    %v2460 = vrot.slane %v2459, 2
    %v2461 = vadd.f32 %v2459, %v2460
    %v2462 = vrot.slane %v2461, 1
    %v2463 = vadd.f32 %v2461, %v2462
    %v2464 = vrot.slane %v2293, 4
    %v2465 = vadd.f32 %v2293, %v2464
    %v2466 = vrot.slane %v2465, 2
    %v2467 = vadd.f32 %v2465, %v2466
    %v2468 = vrot.slane %v2467, 1
    %v2469 = vadd.f32 %v2467, %v2468
    %v2470 = vrot.slane %v2295, 4
    %v2471 = vadd.f32 %v2295, %v2470
    %v2472 = vrot.slane %v2471, 2
    %v2473 = vadd.f32 %v2471, %v2472
    %v2474 = vrot.slane %v2473, 1
    %v2475 = vadd.f32 %v2473, %v2474
    %v2476 = vrot.slane %v2297, 4
    %v2477 = vadd.f32 %v2297, %v2476
    %v2478 = vrot.slane %v2477, 2
    %v2479 = vadd.f32 %v2477, %v2478
    %v2480 = vrot.slane %v2479, 1
    %v2481 = vadd.f32 %v2479, %v2480
    %v2482 = vrot.slane %v2299, 4
    %v2483 = vadd.f32 %v2299, %v2482
    %v2484 = vrot.slane %v2483, 2
    %v2485 = vadd.f32 %v2483, %v2484
    %v2486 = vrot.slane %v2485, 1
    %v2487 = vadd.f32 %v2485, %v2486
    %v2488 = vrot.slane %v2301, 4
    %v2489 = vadd.f32 %v2301, %v2488
    %v2490 = vrot.slane %v2489, 2
    %v2491 = vadd.f32 %v2489, %v2490
    %v2492 = vrot.slane %v2491, 1
    %v2493 = vadd.f32 %v2491, %v2492
    %v2494 = vrot.slane %v2303, 4
    %v2495 = vadd.f32 %v2303, %v2494
    %v2496 = vrot.slane %v2495, 2
    %v2497 = vadd.f32 %v2495, %v2496
    %v2498 = vrot.slane %v2497, 1
    %v2499 = vadd.f32 %v2497, %v2498
    %v2500 = vrot.slane %v2305, 4
    %v2501 = vadd.f32 %v2305, %v2500
    %v2502 = vrot.slane %v2501, 2
    %v2503 = vadd.f32 %v2501, %v2502
    %v2504 = vrot.slane %v2503, 1
    %v2505 = vadd.f32 %v2503, %v2504
    %v2506 = vrot.slane %v2307, 4
    %v2507 = vadd.f32 %v2307, %v2506
    %v2508 = vrot.slane %v2507, 2
    %v2509 = vadd.f32 %v2507, %v2508
    %v2510 = vrot.slane %v2509, 1
    %v2511 = vadd.f32 %v2509, %v2510
    %v2512 = vrot.slane %v2309, 4
    %v2513 = vadd.f32 %v2309, %v2512
    %v2514 = vrot.slane %v2513, 2
    %v2515 = vadd.f32 %v2513, %v2514
    %v2516 = vrot.slane %v2515, 1
    %v2517 = vadd.f32 %v2515, %v2516
    %v2518 = vrot.slane %v2311, 4
    %v2519 = vadd.f32 %v2311, %v2518
    %v2520 = vrot.slane %v2519, 2
    %v2521 = vadd.f32 %v2519, %v2520
    %v2522 = vrot.slane %v2521, 1
    %v2523 = vadd.f32 %v2521, %v2522
    %v2524 = vrot.slane %v2313, 4
    %v2525 = vadd.f32 %v2313, %v2524
    %v2526 = vrot.slane %v2525, 2
    %v2527 = vadd.f32 %v2525, %v2526
    %v2528 = vrot.slane %v2527, 1
    %v2529 = vadd.f32 %v2527, %v2528
    %v2530 = vrot.slane %v2315, 4
    %v2531 = vadd.f32 %v2315, %v2530
    %v2532 = vrot.slane %v2531, 2
    %v2533 = vadd.f32 %v2531, %v2532
    %v2534 = vrot.slane %v2533, 1
    %v2535 = vadd.f32 %v2533, %v2534
    %v2536 = vrot.slane %v2317, 4
    %v2537 = vadd.f32 %v2317, %v2536
    %v2538 = vrot.slane %v2537, 2
    %v2539 = vadd.f32 %v2537, %v2538
    %v2540 = vrot.slane %v2539, 1
    %v2541 = vadd.f32 %v2539, %v2540
    %v2542 = vrot.slane %v2319, 4
    %v2543 = vadd.f32 %v2319, %v2542
    %v2544 = vrot.slane %v2543, 2
    %v2545 = vadd.f32 %v2543, %v2544
    %v2546 = vrot.slane %v2545, 1
    %v2547 = vadd.f32 %v2545, %v2546
    %v2548 = vrot.slane %v2321, 4
    %v2549 = vadd.f32 %v2321, %v2548
    %v2550 = vrot.slane %v2549, 2
    %v2551 = vadd.f32 %v2549, %v2550
    %v2552 = vrot.slane %v2551, 1
    %v2553 = vadd.f32 %v2551, %v2552
    %v2554 = vrot.slane %v2323, 4
    %v2555 = vadd.f32 %v2323, %v2554
    %v2556 = vrot.slane %v2555, 2
    %v2557 = vadd.f32 %v2555, %v2556
    %v2558 = vrot.slane %v2557, 1
    %v2559 = vadd.f32 %v2557, %v2558
    %v2560 = vrot.slane %v2325, 4
    %v2561 = vadd.f32 %v2325, %v2560
    %v2562 = vrot.slane %v2561, 2
    %v2563 = vadd.f32 %v2561, %v2562
    %v2564 = vrot.slane %v2563, 1
    %v2565 = vadd.f32 %v2563, %v2564
    %v2566 = vrot.slane %v2327, 4
    %v2567 = vadd.f32 %v2327, %v2566
    %v2568 = vrot.slane %v2567, 2
    %v2569 = vadd.f32 %v2567, %v2568
    %v2570 = vrot.slane %v2569, 1
    %v2571 = vadd.f32 %v2569, %v2570
    %v2572 = vrot.slane %v2329, 4
    %v2573 = vadd.f32 %v2329, %v2572
    %v2574 = vrot.slane %v2573, 2
    %v2575 = vadd.f32 %v2573, %v2574
    %v2576 = vrot.slane %v2575, 1
    %v2577 = vadd.f32 %v2575, %v2576
    %v2578 = vrot.slane %v2331, 4
    %v2579 = vadd.f32 %v2331, %v2578
    %v2580 = vrot.slane %v2579, 2
    %v2581 = vadd.f32 %v2579, %v2580
    %v2582 = vrot.slane %v2581, 1
    %v2583 = vadd.f32 %v2581, %v2582
    %v2584 = vrot.slane %v2333, 4
    %v2585 = vadd.f32 %v2333, %v2584
    %v2586 = vrot.slane %v2585, 2
    %v2587 = vadd.f32 %v2585, %v2586
    %v2588 = vrot.slane %v2587, 1
    %v2589 = vadd.f32 %v2587, %v2588
    %v2590 = vrot.slane %v2335, 4
    %v2591 = vadd.f32 %v2335, %v2590
    %v2592 = vrot.slane %v2591, 2
    %v2593 = vadd.f32 %v2591, %v2592
    %v2594 = vrot.slane %v2593, 1
    %v2595 = vadd.f32 %v2593, %v2594
    %v2596 = vrot.slane %v2337, 4
    %v2597 = vadd.f32 %v2337, %v2596
    %v2598 = vrot.slane %v2597, 2
    %v2599 = vadd.f32 %v2597, %v2598
    %v2600 = vrot.slane %v2599, 1
    %v2601 = vadd.f32 %v2599, %v2600
    %v2602 = vrot.slane %v2339, 4
    %v2603 = vadd.f32 %v2339, %v2602
    %v2604 = vrot.slane %v2603, 2
    %v2605 = vadd.f32 %v2603, %v2604
    %v2606 = vrot.slane %v2605, 1
    %v2607 = vadd.f32 %v2605, %v2606
    %v2608 = vrot.slane %v2341, 4
    %v2609 = vadd.f32 %v2341, %v2608
    %v2610 = vrot.slane %v2609, 2
    %v2611 = vadd.f32 %v2609, %v2610
    %v2612 = vrot.slane %v2611, 1
    %v2613 = vadd.f32 %v2611, %v2612
    %v2614 = vrot.slane %v2343, 4
    %v2615 = vadd.f32 %v2343, %v2614
    %v2616 = vrot.slane %v2615, 2
    %v2617 = vadd.f32 %v2615, %v2616
    %v2618 = vrot.slane %v2617, 1
    %v2619 = vadd.f32 %v2617, %v2618
    %v2620 = vrot.slane %v2345, 4
    %v2621 = vadd.f32 %v2345, %v2620
    %v2622 = vrot.slane %v2621, 2
    %v2623 = vadd.f32 %v2621, %v2622
    %v2624 = vrot.slane %v2623, 1
    %v2625 = vadd.f32 %v2623, %v2624
    %v2626 = vrot.slane %v2347, 4
    %v2627 = vadd.f32 %v2347, %v2626
    %v2628 = vrot.slane %v2627, 2
    %v2629 = vadd.f32 %v2627, %v2628
    %v2630 = vrot.slane %v2629, 1
    %v2631 = vadd.f32 %v2629, %v2630
    %v2632 = vrot.slane %v2349, 4
    %v2633 = vadd.f32 %v2349, %v2632
    %v2634 = vrot.slane %v2633, 2
    %v2635 = vadd.f32 %v2633, %v2634
    %v2636 = vrot.slane %v2635, 1
    %v2637 = vadd.f32 %v2635, %v2636
    %v2638 = vrot.slane %v2351, 4
    %v2639 = vadd.f32 %v2351, %v2638
    %v2640 = vrot.slane %v2639, 2
    %v2641 = vadd.f32 %v2639, %v2640
    %v2642 = vrot.slane %v2641, 1
    %v2643 = vadd.f32 %v2641, %v2642
    %v2644 = vrot.slane %v2353, 4
    %v2645 = vadd.f32 %v2353, %v2644
    %v2646 = vrot.slane %v2645, 2
    %v2647 = vadd.f32 %v2645, %v2646
    %v2648 = vrot.slane %v2647, 1
    %v2649 = vadd.f32 %v2647, %v2648
    %v2650 = vrot.slane %v2355, 4
    %v2651 = vadd.f32 %v2355, %v2650
    %v2652 = vrot.slane %v2651, 2
    %v2653 = vadd.f32 %v2651, %v2652
    %v2654 = vrot.slane %v2653, 1
    %v2655 = vadd.f32 %v2653, %v2654
    %v2656 = vrot.slane %v2357, 4
    %v2657 = vadd.f32 %v2357, %v2656
    %v2658 = vrot.slane %v2657, 2
    %v2659 = vadd.f32 %v2657, %v2658
    %v2660 = vrot.slane %v2659, 1
    %v2661 = vadd.f32 %v2659, %v2660
    %v2662 = vrot.slane %v2359, 4
    %v2663 = vadd.f32 %v2359, %v2662
    %v2664 = vrot.slane %v2663, 2
    %v2665 = vadd.f32 %v2663, %v2664
    %v2666 = vrot.slane %v2665, 1
    %v2667 = vadd.f32 %v2665, %v2666
    %v2668 = vrot.slane %v2361, 4
    %v2669 = vadd.f32 %v2361, %v2668
    %v2670 = vrot.slane %v2669, 2
    %v2671 = vadd.f32 %v2669, %v2670
    %v2672 = vrot.slane %v2671, 1
    %v2673 = vadd.f32 %v2671, %v2672
    %v2674 = vrot.slane %v2363, 4
    %v2675 = vadd.f32 %v2363, %v2674
    %v2676 = vrot.slane %v2675, 2
    %v2677 = vadd.f32 %v2675, %v2676
    %v2678 = vrot.slane %v2677, 1
    %v2679 = vadd.f32 %v2677, %v2678
    %v2680 = vrot.slane %v2365, 4
    %v2681 = vadd.f32 %v2365, %v2680
    %v2682 = vrot.slane %v2681, 2
    %v2683 = vadd.f32 %v2681, %v2682
    %v2684 = vrot.slane %v2683, 1
    %v2685 = vadd.f32 %v2683, %v2684
    %v2686 = vrot.slane %v2367, 4
    %v2687 = vadd.f32 %v2367, %v2686
    %v2688 = vrot.slane %v2687, 2
    %v2689 = vadd.f32 %v2687, %v2688
    %v2690 = vrot.slane %v2689, 1
    %v2691 = vadd.f32 %v2689, %v2690
    %v2692 = vrot.slane %v2369, 4
    %v2693 = vadd.f32 %v2369, %v2692
    %v2694 = vrot.slane %v2693, 2
    %v2695 = vadd.f32 %v2693, %v2694
    %v2696 = vrot.slane %v2695, 1
    %v2697 = vadd.f32 %v2695, %v2696
    %v2698 = vrot.slane %v2371, 4
    %v2699 = vadd.f32 %v2371, %v2698
    %v2700 = vrot.slane %v2699, 2
    %v2701 = vadd.f32 %v2699, %v2700
    %v2702 = vrot.slane %v2701, 1
    %v2703 = vadd.f32 %v2701, %v2702
    %v2704 = vrot.slane %v2373, 4
    %v2705 = vadd.f32 %v2373, %v2704
    %v2706 = vrot.slane %v2705, 2
    %v2707 = vadd.f32 %v2705, %v2706
    %v2708 = vrot.slane %v2707, 1
    %v2709 = vadd.f32 %v2707, %v2708
    %v2710 = vrot.slane %v2375, 4
    %v2711 = vadd.f32 %v2375, %v2710
    %v2712 = vrot.slane %v2711, 2
    %v2713 = vadd.f32 %v2711, %v2712
    %v2714 = vrot.slane %v2713, 1
    %v2715 = vadd.f32 %v2713, %v2714
    %v2716 = vrot.slane %v2377, 4
    %v2717 = vadd.f32 %v2377, %v2716
    %v2718 = vrot.slane %v2717, 2
    %v2719 = vadd.f32 %v2717, %v2718
    %v2720 = vrot.slane %v2719, 1
    %v2721 = vadd.f32 %v2719, %v2720
    %v2722 = vrot.slane %v2379, 4
    %v2723 = vadd.f32 %v2379, %v2722
    %v2724 = vrot.slane %v2723, 2
    %v2725 = vadd.f32 %v2723, %v2724
    %v2726 = vrot.slane %v2725, 1
    %v2727 = vadd.f32 %v2725, %v2726
    %v2728 = vrot.slane %v2381, 4
    %v2729 = vadd.f32 %v2381, %v2728
    %v2730 = vrot.slane %v2729, 2
    %v2731 = vadd.f32 %v2729, %v2730
    %v2732 = vrot.slane %v2731, 1
    %v2733 = vadd.f32 %v2731, %v2732
    %v2734 = vrot.slane %v2383, 4
    %v2735 = vadd.f32 %v2383, %v2734
    %v2736 = vrot.slane %v2735, 2
    %v2737 = vadd.f32 %v2735, %v2736
    %v2738 = vrot.slane %v2737, 1
    %v2739 = vadd.f32 %v2737, %v2738
    %v2740 = vrot.slane %v2385, 4
    %v2741 = vadd.f32 %v2385, %v2740
    %v2742 = vrot.slane %v2741, 2
    %v2743 = vadd.f32 %v2741, %v2742
    %v2744 = vrot.slane %v2743, 1
    %v2745 = vadd.f32 %v2743, %v2744
    %v2746 = vrot.slane %v2387, 4
    %v2747 = vadd.f32 %v2387, %v2746
    %v2748 = vrot.slane %v2747, 2
    %v2749 = vadd.f32 %v2747, %v2748
    %v2750 = vrot.slane %v2749, 1
    %v2751 = vadd.f32 %v2749, %v2750
    %v2752 = vrot.slane %v2389, 4
    %v2753 = vadd.f32 %v2389, %v2752
    %v2754 = vrot.slane %v2753, 2
    %v2755 = vadd.f32 %v2753, %v2754
    %v2756 = vrot.slane %v2755, 1
    %v2757 = vadd.f32 %v2755, %v2756
    %v2758 = vrot.slane %v2391, 4
    %v2759 = vadd.f32 %v2391, %v2758
    %v2760 = vrot.slane %v2759, 2
    %v2761 = vadd.f32 %v2759, %v2760
    %v2762 = vrot.slane %v2761, 1
    %v2763 = vadd.f32 %v2761, %v2762
    %v2764 = vrot.slane %v2393, 4
    %v2765 = vadd.f32 %v2393, %v2764
    %v2766 = vrot.slane %v2765, 2
    %v2767 = vadd.f32 %v2765, %v2766
    %v2768 = vrot.slane %v2767, 1
    %v2769 = vadd.f32 %v2767, %v2768
    %v2770 = vrot.slane %v2395, 4
    %v2771 = vadd.f32 %v2395, %v2770
    %v2772 = vrot.slane %v2771, 2
    %v2773 = vadd.f32 %v2771, %v2772
    %v2774 = vrot.slane %v2773, 1
    %v2775 = vadd.f32 %v2773, %v2774
    %v2776 = vrot.slane %v2397, 4
    %v2777 = vadd.f32 %v2397, %v2776
    %v2778 = vrot.slane %v2777, 2
    %v2779 = vadd.f32 %v2777, %v2778
    %v2780 = vrot.slane %v2779, 1
    %v2781 = vadd.f32 %v2779, %v2780
    %v2782 = vrcp.pop %v2403
    %v2783 = vmul.f32 %v2271, %v2782
    %v2784 = vrcp.pop %v2409
    %v2785 = vmul.f32 %v2273, %v2784
    %v2786 = vrcp.pop %v2415
    %v2787 = vmul.f32 %v2275, %v2786
    %v2788 = vrcp.pop %v2421
    %v2789 = vmul.f32 %v2277, %v2788
    %v2790 = vrcp.pop %v2427
    %v2791 = vmul.f32 %v2279, %v2790
    %v2792 = vrcp.pop %v2433
    %v2793 = vmul.f32 %v2281, %v2792
    %v2794 = vrcp.pop %v2439
    %v2795 = vmul.f32 %v2283, %v2794
    %v2796 = vrcp.pop %v2445
    %v2797 = vmul.f32 %v2285, %v2796
    %v2798 = vrcp.pop %v2451
    %v2799 = vmul.f32 %v2287, %v2798
    %v2800 = vrcp.pop %v2457
    %v2801 = vmul.f32 %v2289, %v2800
    %v2802 = vrcp.pop %v2463
    %v2803 = vmul.f32 %v2291, %v2802
    %v2804 = vrcp.pop %v2469
    %v2805 = vmul.f32 %v2293, %v2804
    %v2806 = vrcp.pop %v2475
    %v2807 = vmul.f32 %v2295, %v2806
    %v2808 = vrcp.pop %v2481
    %v2809 = vmul.f32 %v2297, %v2808
    %v2810 = vrcp.pop %v2487
    %v2811 = vmul.f32 %v2299, %v2810
    %v2812 = vrcp.pop %v2493
    %v2813 = vmul.f32 %v2301, %v2812
    %v2814 = vrcp.pop %v2499
    %v2815 = vmul.f32 %v2303, %v2814
    %v2816 = vrcp.pop %v2505
    %v2817 = vmul.f32 %v2305, %v2816
    %v2818 = vrcp.pop %v2511
    %v2819 = vmul.f32 %v2307, %v2818
    %v2820 = vrcp.pop %v2517
    %v2821 = vmul.f32 %v2309, %v2820
    %v2822 = vrcp.pop %v2523
    %v2823 = vmul.f32 %v2311, %v2822
    %v2824 = vrcp.pop %v2529
    %v2825 = vmul.f32 %v2313, %v2824
    %v2826 = vrcp.pop %v2535
    %v2827 = vmul.f32 %v2315, %v2826
    %v2828 = vrcp.pop %v2541
    %v2829 = vmul.f32 %v2317, %v2828
    %v2830 = vrcp.pop %v2547
    %v2831 = vmul.f32 %v2319, %v2830
    %v2832 = vrcp.pop %v2553
    %v2833 = vmul.f32 %v2321, %v2832
    %v2834 = vrcp.pop %v2559
    %v2835 = vmul.f32 %v2323, %v2834
    %v2836 = vrcp.pop %v2565
    %v2837 = vmul.f32 %v2325, %v2836
    %v2838 = vrcp.pop %v2571
    %v2839 = vmul.f32 %v2327, %v2838
    %v2840 = vrcp.pop %v2577
    %v2841 = vmul.f32 %v2329, %v2840
    %v2842 = vrcp.pop %v2583
    %v2843 = vmul.f32 %v2331, %v2842
    %v2844 = vrcp.pop %v2589
    %v2845 = vmul.f32 %v2333, %v2844
    %v2846 = vrcp.pop %v2595
    %v2847 = vmul.f32 %v2335, %v2846
    %v2848 = vrcp.pop %v2601
    %v2849 = vmul.f32 %v2337, %v2848
    %v2850 = vrcp.pop %v2607
    %v2851 = vmul.f32 %v2339, %v2850
    %v2852 = vrcp.pop %v2613
    %v2853 = vmul.f32 %v2341, %v2852
    %v2854 = vrcp.pop %v2619
    %v2855 = vmul.f32 %v2343, %v2854
    %v2856 = vrcp.pop %v2625
    %v2857 = vmul.f32 %v2345, %v2856
    %v2858 = vrcp.pop %v2631
    %v2859 = vmul.f32 %v2347, %v2858
    %v2860 = vrcp.pop %v2637
    %v2861 = vmul.f32 %v2349, %v2860
    %v2862 = vrcp.pop %v2643
    %v2863 = vmul.f32 %v2351, %v2862
    %v2864 = vrcp.pop %v2649
    %v2865 = vmul.f32 %v2353, %v2864
    %v2866 = vrcp.pop %v2655
    %v2867 = vmul.f32 %v2355, %v2866
    %v2868 = vrcp.pop %v2661
    %v2869 = vmul.f32 %v2357, %v2868
    %v2870 = vrcp.pop %v2667
    %v2871 = vmul.f32 %v2359, %v2870
    %v2872 = vrcp.pop %v2673
    %v2873 = vmul.f32 %v2361, %v2872
    %v2874 = vrcp.pop %v2679
    %v2875 = vmul.f32 %v2363, %v2874
    %v2876 = vrcp.pop %v2685
    %v2877 = vmul.f32 %v2365, %v2876
    %v2878 = vrcp.pop %v2691
    %v2879 = vmul.f32 %v2367, %v2878
    %v2880 = vrcp.pop %v2697
    %v2881 = vmul.f32 %v2369, %v2880
    %v2882 = vrcp.pop %v2703
    %v2883 = vmul.f32 %v2371, %v2882
    %v2884 = vrcp.pop %v2709
    %v2885 = vmul.f32 %v2373, %v2884
    %v2886 = vrcp.pop %v2715
    %v2887 = vmul.f32 %v2375, %v2886
    %v2888 = vrcp.pop %v2721
    %v2889 = vmul.f32 %v2377, %v2888
    %v2890 = vrcp.pop %v2727
    %v2891 = vmul.f32 %v2379, %v2890
    %v2892 = vrcp.pop %v2733
    %v2893 = vmul.f32 %v2381, %v2892
    %v2894 = vrcp.pop %v2739
    %v2895 = vmul.f32 %v2383, %v2894
    %v2896 = vrcp.pop %v2745
    %v2897 = vmul.f32 %v2385, %v2896
    %v2898 = vrcp.pop %v2751
    %v2899 = vmul.f32 %v2387, %v2898
    %v2900 = vrcp.pop %v2757
    %v2901 = vmul.f32 %v2389, %v2900
    %v2902 = vrcp.pop %v2763
    %v2903 = vmul.f32 %v2391, %v2902
    %v2904 = vrcp.pop %v2769
    %v2905 = vmul.f32 %v2393, %v2904
    %v2906 = vrcp.pop %v2775
    %v2907 = vmul.f32 %v2395, %v2906
    %v2908 = vrcp.pop %v2781
    %v2909 = vmul.f32 %v2397, %v2908
    %v2910 = vmul.f32 %v2783, %v421
    %v2911 = vmul.f32 %v2785, %v421
    %v2912 = vmul.f32 %v2787, %v421
    %v2913 = vmul.f32 %v2789, %v421
    %v2914 = vmul.f32 %v2791, %v421
    %v2915 = vmul.f32 %v2793, %v421
    %v2916 = vmul.f32 %v2795, %v421
    %v2917 = vmul.f32 %v2797, %v421
    %v2918 = vmul.f32 %v2799, %v422
    %v2919 = vmul.f32 %v2801, %v422
    %v2920 = vmul.f32 %v2803, %v422
    %v2921 = vmul.f32 %v2805, %v422
    %v2922 = vmul.f32 %v2807, %v422
    %v2923 = vmul.f32 %v2809, %v422
    %v2924 = vmul.f32 %v2811, %v422
    %v2925 = vmul.f32 %v2813, %v422
    %v2926 = vmul.f32 %v2815, %v423
    %v2927 = vmul.f32 %v2817, %v423
    %v2928 = vmul.f32 %v2819, %v423
    %v2929 = vmul.f32 %v2821, %v423
    %v2930 = vmul.f32 %v2823, %v423
    %v2931 = vmul.f32 %v2825, %v423
    %v2932 = vmul.f32 %v2827, %v423
    %v2933 = vmul.f32 %v2829, %v423
    %v2934 = vmul.f32 %v2831, %v424
    %v2935 = vmul.f32 %v2833, %v424
    %v2936 = vmul.f32 %v2835, %v424
    %v2937 = vmul.f32 %v2837, %v424
    %v2938 = vmul.f32 %v2839, %v424
    %v2939 = vmul.f32 %v2841, %v424
    %v2940 = vmul.f32 %v2843, %v424
    %v2941 = vmul.f32 %v2845, %v424
    %v2942 = vmul.f32 %v2847, %v425
    %v2943 = vmul.f32 %v2849, %v425
    %v2944 = vmul.f32 %v2851, %v425
    %v2945 = vmul.f32 %v2853, %v425
    %v2946 = vmul.f32 %v2855, %v425
    %v2947 = vmul.f32 %v2857, %v425
    %v2948 = vmul.f32 %v2859, %v425
    %v2949 = vmul.f32 %v2861, %v425
    %v2950 = vmul.f32 %v2863, %v426
    %v2951 = vmul.f32 %v2865, %v426
    %v2952 = vmul.f32 %v2867, %v426
    %v2953 = vmul.f32 %v2869, %v426
    %v2954 = vmul.f32 %v2871, %v426
    %v2955 = vmul.f32 %v2873, %v426
    %v2956 = vmul.f32 %v2875, %v426
    %v2957 = vmul.f32 %v2877, %v426
    %v2958 = vmul.f32 %v2879, %v427
    %v2959 = vmul.f32 %v2881, %v427
    %v2960 = vmul.f32 %v2883, %v427
    %v2961 = vmul.f32 %v2885, %v427
    %v2962 = vmul.f32 %v2887, %v427
    %v2963 = vmul.f32 %v2889, %v427
    %v2964 = vmul.f32 %v2891, %v427
    %v2965 = vmul.f32 %v2893, %v427
    %v2966 = vmul.f32 %v2895, %v428
    %v2967 = vmul.f32 %v2897, %v428
    %v2968 = vmul.f32 %v2899, %v428
    %v2969 = vmul.f32 %v2901, %v428
    %v2970 = vmul.f32 %v2903, %v428
    %v2971 = vmul.f32 %v2905, %v428
    %v2972 = vmul.f32 %v2907, %v428
    %v2973 = vmul.f32 %v2909, %v428
    %v2974 = vrot.slane %v2910, 4
    %v2975 = vadd.f32 %v2910, %v2974
    %v2976 = vrot.slane %v2975, 2
    %v2977 = vadd.f32 %v2975, %v2976
    %v2978 = vrot.slane %v2977, 1
    %v2979 = vadd.f32 %v2977, %v2978
    %v2980 = vrot.slane %v2911, 4
    %v2981 = vadd.f32 %v2911, %v2980
    %v2982 = vrot.slane %v2981, 2
    %v2983 = vadd.f32 %v2981, %v2982
    %v2984 = vrot.slane %v2983, 1
    %v2985 = vadd.f32 %v2983, %v2984
    %v2986 = vrot.slane %v2912, 4
    %v2987 = vadd.f32 %v2912, %v2986
    %v2988 = vrot.slane %v2987, 2
    %v2989 = vadd.f32 %v2987, %v2988
    %v2990 = vrot.slane %v2989, 1
    %v2991 = vadd.f32 %v2989, %v2990
    %v2992 = vrot.slane %v2913, 4
    %v2993 = vadd.f32 %v2913, %v2992
    %v2994 = vrot.slane %v2993, 2
    %v2995 = vadd.f32 %v2993, %v2994
    %v2996 = vrot.slane %v2995, 1
    %v2997 = vadd.f32 %v2995, %v2996
    %v2998 = vrot.slane %v2914, 4
    %v2999 = vadd.f32 %v2914, %v2998
    %v3000 = vrot.slane %v2999, 2
    %v3001 = vadd.f32 %v2999, %v3000
    %v3002 = vrot.slane %v3001, 1
    %v3003 = vadd.f32 %v3001, %v3002
    %v3004 = vrot.slane %v2915, 4
    %v3005 = vadd.f32 %v2915, %v3004
    %v3006 = vrot.slane %v3005, 2
    %v3007 = vadd.f32 %v3005, %v3006
    %v3008 = vrot.slane %v3007, 1
    %v3009 = vadd.f32 %v3007, %v3008
    %v3010 = vrot.slane %v2916, 4
    %v3011 = vadd.f32 %v2916, %v3010
    %v3012 = vrot.slane %v3011, 2
    %v3013 = vadd.f32 %v3011, %v3012
    %v3014 = vrot.slane %v3013, 1
    %v3015 = vadd.f32 %v3013, %v3014
    %v3016 = vrot.slane %v2917, 4
    %v3017 = vadd.f32 %v2917, %v3016
    %v3018 = vrot.slane %v3017, 2
    %v3019 = vadd.f32 %v3017, %v3018
    %v3020 = vrot.slane %v3019, 1
    %v3021 = vadd.f32 %v3019, %v3020
    %v3022 = vrot.slane %v2918, 4
    %v3023 = vadd.f32 %v2918, %v3022
    %v3024 = vrot.slane %v3023, 2
    %v3025 = vadd.f32 %v3023, %v3024
    %v3026 = vrot.slane %v3025, 1
    %v3027 = vadd.f32 %v3025, %v3026
    %v3028 = vrot.slane %v2919, 4
    %v3029 = vadd.f32 %v2919, %v3028
    %v3030 = vrot.slane %v3029, 2
    %v3031 = vadd.f32 %v3029, %v3030
    %v3032 = vrot.slane %v3031, 1
    %v3033 = vadd.f32 %v3031, %v3032
    %v3034 = vrot.slane %v2920, 4
    %v3035 = vadd.f32 %v2920, %v3034
    %v3036 = vrot.slane %v3035, 2
    %v3037 = vadd.f32 %v3035, %v3036
    %v3038 = vrot.slane %v3037, 1
    %v3039 = vadd.f32 %v3037, %v3038
    %v3040 = vrot.slane %v2921, 4
    %v3041 = vadd.f32 %v2921, %v3040
    %v3042 = vrot.slane %v3041, 2
    %v3043 = vadd.f32 %v3041, %v3042
    %v3044 = vrot.slane %v3043, 1
    %v3045 = vadd.f32 %v3043, %v3044
    %v3046 = vrot.slane %v2922, 4
    %v3047 = vadd.f32 %v2922, %v3046
    %v3048 = vrot.slane %v3047, 2
    %v3049 = vadd.f32 %v3047, %v3048
    %v3050 = vrot.slane %v3049, 1
    %v3051 = vadd.f32 %v3049, %v3050
    %v3052 = vrot.slane %v2923, 4
    %v3053 = vadd.f32 %v2923, %v3052
    %v3054 = vrot.slane %v3053, 2
    %v3055 = vadd.f32 %v3053, %v3054
    %v3056 = vrot.slane %v3055, 1
    %v3057 = vadd.f32 %v3055, %v3056
    %v3058 = vrot.slane %v2924, 4
    %v3059 = vadd.f32 %v2924, %v3058
    %v3060 = vrot.slane %v3059, 2
    %v3061 = vadd.f32 %v3059, %v3060
    %v3062 = vrot.slane %v3061, 1
    %v3063 = vadd.f32 %v3061, %v3062
    %v3064 = vrot.slane %v2925, 4
    %v3065 = vadd.f32 %v2925, %v3064
    %v3066 = vrot.slane %v3065, 2
    %v3067 = vadd.f32 %v3065, %v3066
    %v3068 = vrot.slane %v3067, 1
    %v3069 = vadd.f32 %v3067, %v3068
    %v3070 = vrot.slane %v2926, 4
    %v3071 = vadd.f32 %v2926, %v3070
    %v3072 = vrot.slane %v3071, 2
    %v3073 = vadd.f32 %v3071, %v3072
    %v3074 = vrot.slane %v3073, 1
    %v3075 = vadd.f32 %v3073, %v3074
    %v3076 = vrot.slane %v2927, 4
    %v3077 = vadd.f32 %v2927, %v3076
    %v3078 = vrot.slane %v3077, 2
    %v3079 = vadd.f32 %v3077, %v3078
    %v3080 = vrot.slane %v3079, 1
    %v3081 = vadd.f32 %v3079, %v3080
    %v3082 = vrot.slane %v2928, 4
    %v3083 = vadd.f32 %v2928, %v3082
    %v3084 = vrot.slane %v3083, 2
    %v3085 = vadd.f32 %v3083, %v3084
    %v3086 = vrot.slane %v3085, 1
    %v3087 = vadd.f32 %v3085, %v3086
    %v3088 = vrot.slane %v2929, 4
    %v3089 = vadd.f32 %v2929, %v3088
    %v3090 = vrot.slane %v3089, 2
    %v3091 = vadd.f32 %v3089, %v3090
    %v3092 = vrot.slane %v3091, 1
    %v3093 = vadd.f32 %v3091, %v3092
    %v3094 = vrot.slane %v2930, 4
    %v3095 = vadd.f32 %v2930, %v3094
    %v3096 = vrot.slane %v3095, 2
    %v3097 = vadd.f32 %v3095, %v3096
    %v3098 = vrot.slane %v3097, 1
    %v3099 = vadd.f32 %v3097, %v3098
    %v3100 = vrot.slane %v2931, 4
    %v3101 = vadd.f32 %v2931, %v3100
    %v3102 = vrot.slane %v3101, 2
    %v3103 = vadd.f32 %v3101, %v3102
    %v3104 = vrot.slane %v3103, 1
    %v3105 = vadd.f32 %v3103, %v3104
    %v3106 = vrot.slane %v2932, 4
    %v3107 = vadd.f32 %v2932, %v3106
    %v3108 = vrot.slane %v3107, 2
    %v3109 = vadd.f32 %v3107, %v3108
    %v3110 = vrot.slane %v3109, 1
    %v3111 = vadd.f32 %v3109, %v3110
    %v3112 = vrot.slane %v2933, 4
    %v3113 = vadd.f32 %v2933, %v3112
    %v3114 = vrot.slane %v3113, 2
    %v3115 = vadd.f32 %v3113, %v3114
    %v3116 = vrot.slane %v3115, 1
    %v3117 = vadd.f32 %v3115, %v3116
    %v3118 = vrot.slane %v2934, 4
    %v3119 = vadd.f32 %v2934, %v3118
    %v3120 = vrot.slane %v3119, 2
    %v3121 = vadd.f32 %v3119, %v3120
    %v3122 = vrot.slane %v3121, 1
    %v3123 = vadd.f32 %v3121, %v3122
    %v3124 = vrot.slane %v2935, 4
    %v3125 = vadd.f32 %v2935, %v3124
    %v3126 = vrot.slane %v3125, 2
    %v3127 = vadd.f32 %v3125, %v3126
    %v3128 = vrot.slane %v3127, 1
    %v3129 = vadd.f32 %v3127, %v3128
    %v3130 = vrot.slane %v2936, 4
    %v3131 = vadd.f32 %v2936, %v3130
    %v3132 = vrot.slane %v3131, 2
    %v3133 = vadd.f32 %v3131, %v3132
    %v3134 = vrot.slane %v3133, 1
    %v3135 = vadd.f32 %v3133, %v3134
    %v3136 = vrot.slane %v2937, 4
    %v3137 = vadd.f32 %v2937, %v3136
    %v3138 = vrot.slane %v3137, 2
    %v3139 = vadd.f32 %v3137, %v3138
    %v3140 = vrot.slane %v3139, 1
    %v3141 = vadd.f32 %v3139, %v3140
    %v3142 = vrot.slane %v2938, 4
    %v3143 = vadd.f32 %v2938, %v3142
    %v3144 = vrot.slane %v3143, 2
    %v3145 = vadd.f32 %v3143, %v3144
    %v3146 = vrot.slane %v3145, 1
    %v3147 = vadd.f32 %v3145, %v3146
    %v3148 = vrot.slane %v2939, 4
    %v3149 = vadd.f32 %v2939, %v3148
    %v3150 = vrot.slane %v3149, 2
    %v3151 = vadd.f32 %v3149, %v3150
    %v3152 = vrot.slane %v3151, 1
    %v3153 = vadd.f32 %v3151, %v3152
    %v3154 = vrot.slane %v2940, 4
    %v3155 = vadd.f32 %v2940, %v3154
    %v3156 = vrot.slane %v3155, 2
    %v3157 = vadd.f32 %v3155, %v3156
    %v3158 = vrot.slane %v3157, 1
    %v3159 = vadd.f32 %v3157, %v3158
    %v3160 = vrot.slane %v2941, 4
    %v3161 = vadd.f32 %v2941, %v3160
    %v3162 = vrot.slane %v3161, 2
    %v3163 = vadd.f32 %v3161, %v3162
    %v3164 = vrot.slane %v3163, 1
    %v3165 = vadd.f32 %v3163, %v3164
    %v3166 = vrot.slane %v2942, 4
    %v3167 = vadd.f32 %v2942, %v3166
    %v3168 = vrot.slane %v3167, 2
    %v3169 = vadd.f32 %v3167, %v3168
    %v3170 = vrot.slane %v3169, 1
    %v3171 = vadd.f32 %v3169, %v3170
    %v3172 = vrot.slane %v2943, 4
    %v3173 = vadd.f32 %v2943, %v3172
    %v3174 = vrot.slane %v3173, 2
    %v3175 = vadd.f32 %v3173, %v3174
    %v3176 = vrot.slane %v3175, 1
    %v3177 = vadd.f32 %v3175, %v3176
    %v3178 = vrot.slane %v2944, 4
    %v3179 = vadd.f32 %v2944, %v3178
    %v3180 = vrot.slane %v3179, 2
    %v3181 = vadd.f32 %v3179, %v3180
    %v3182 = vrot.slane %v3181, 1
    %v3183 = vadd.f32 %v3181, %v3182
    %v3184 = vrot.slane %v2945, 4
    %v3185 = vadd.f32 %v2945, %v3184
    %v3186 = vrot.slane %v3185, 2
    %v3187 = vadd.f32 %v3185, %v3186
    %v3188 = vrot.slane %v3187, 1
    %v3189 = vadd.f32 %v3187, %v3188
    %v3190 = vrot.slane %v2946, 4
    %v3191 = vadd.f32 %v2946, %v3190
    %v3192 = vrot.slane %v3191, 2
    %v3193 = vadd.f32 %v3191, %v3192
    %v3194 = vrot.slane %v3193, 1
    %v3195 = vadd.f32 %v3193, %v3194
    %v3196 = vrot.slane %v2947, 4
    %v3197 = vadd.f32 %v2947, %v3196
    %v3198 = vrot.slane %v3197, 2
    %v3199 = vadd.f32 %v3197, %v3198
    %v3200 = vrot.slane %v3199, 1
    %v3201 = vadd.f32 %v3199, %v3200
    %v3202 = vrot.slane %v2948, 4
    %v3203 = vadd.f32 %v2948, %v3202
    %v3204 = vrot.slane %v3203, 2
    %v3205 = vadd.f32 %v3203, %v3204
    %v3206 = vrot.slane %v3205, 1
    %v3207 = vadd.f32 %v3205, %v3206
    %v3208 = vrot.slane %v2949, 4
    %v3209 = vadd.f32 %v2949, %v3208
    %v3210 = vrot.slane %v3209, 2
    %v3211 = vadd.f32 %v3209, %v3210
    %v3212 = vrot.slane %v3211, 1
    %v3213 = vadd.f32 %v3211, %v3212
    %v3214 = vrot.slane %v2950, 4
    %v3215 = vadd.f32 %v2950, %v3214
    %v3216 = vrot.slane %v3215, 2
    %v3217 = vadd.f32 %v3215, %v3216
    %v3218 = vrot.slane %v3217, 1
    %v3219 = vadd.f32 %v3217, %v3218
    %v3220 = vrot.slane %v2951, 4
    %v3221 = vadd.f32 %v2951, %v3220
    %v3222 = vrot.slane %v3221, 2
    %v3223 = vadd.f32 %v3221, %v3222
    %v3224 = vrot.slane %v3223, 1
    %v3225 = vadd.f32 %v3223, %v3224
    %v3226 = vrot.slane %v2952, 4
    %v3227 = vadd.f32 %v2952, %v3226
    %v3228 = vrot.slane %v3227, 2
    %v3229 = vadd.f32 %v3227, %v3228
    %v3230 = vrot.slane %v3229, 1
    %v3231 = vadd.f32 %v3229, %v3230
    %v3232 = vrot.slane %v2953, 4
    %v3233 = vadd.f32 %v2953, %v3232
    %v3234 = vrot.slane %v3233, 2
    %v3235 = vadd.f32 %v3233, %v3234
    %v3236 = vrot.slane %v3235, 1
    %v3237 = vadd.f32 %v3235, %v3236
    %v3238 = vrot.slane %v2954, 4
    %v3239 = vadd.f32 %v2954, %v3238
    %v3240 = vrot.slane %v3239, 2
    %v3241 = vadd.f32 %v3239, %v3240
    %v3242 = vrot.slane %v3241, 1
    %v3243 = vadd.f32 %v3241, %v3242
    %v3244 = vrot.slane %v2955, 4
    %v3245 = vadd.f32 %v2955, %v3244
    %v3246 = vrot.slane %v3245, 2
    %v3247 = vadd.f32 %v3245, %v3246
    %v3248 = vrot.slane %v3247, 1
    %v3249 = vadd.f32 %v3247, %v3248
    %v3250 = vrot.slane %v2956, 4
    %v3251 = vadd.f32 %v2956, %v3250
    %v3252 = vrot.slane %v3251, 2
    %v3253 = vadd.f32 %v3251, %v3252
    %v3254 = vrot.slane %v3253, 1
    %v3255 = vadd.f32 %v3253, %v3254
    %v3256 = vrot.slane %v2957, 4
    %v3257 = vadd.f32 %v2957, %v3256
    %v3258 = vrot.slane %v3257, 2
    %v3259 = vadd.f32 %v3257, %v3258
    %v3260 = vrot.slane %v3259, 1
    %v3261 = vadd.f32 %v3259, %v3260
    %v3262 = vrot.slane %v2958, 4
    %v3263 = vadd.f32 %v2958, %v3262
    %v3264 = vrot.slane %v3263, 2
    %v3265 = vadd.f32 %v3263, %v3264
    %v3266 = vrot.slane %v3265, 1
    %v3267 = vadd.f32 %v3265, %v3266
    %v3268 = vrot.slane %v2959, 4
    %v3269 = vadd.f32 %v2959, %v3268
    %v3270 = vrot.slane %v3269, 2
    %v3271 = vadd.f32 %v3269, %v3270
    %v3272 = vrot.slane %v3271, 1
    %v3273 = vadd.f32 %v3271, %v3272
    %v3274 = vrot.slane %v2960, 4
    %v3275 = vadd.f32 %v2960, %v3274
    %v3276 = vrot.slane %v3275, 2
    %v3277 = vadd.f32 %v3275, %v3276
    %v3278 = vrot.slane %v3277, 1
    %v3279 = vadd.f32 %v3277, %v3278
    %v3280 = vrot.slane %v2961, 4
    %v3281 = vadd.f32 %v2961, %v3280
    %v3282 = vrot.slane %v3281, 2
    %v3283 = vadd.f32 %v3281, %v3282
    %v3284 = vrot.slane %v3283, 1
    %v3285 = vadd.f32 %v3283, %v3284
    %v3286 = vrot.slane %v2962, 4
    %v3287 = vadd.f32 %v2962, %v3286
    %v3288 = vrot.slane %v3287, 2
    %v3289 = vadd.f32 %v3287, %v3288
    %v3290 = vrot.slane %v3289, 1
    %v3291 = vadd.f32 %v3289, %v3290
    %v3292 = vrot.slane %v2963, 4
    %v3293 = vadd.f32 %v2963, %v3292
    %v3294 = vrot.slane %v3293, 2
    %v3295 = vadd.f32 %v3293, %v3294
    %v3296 = vrot.slane %v3295, 1
    %v3297 = vadd.f32 %v3295, %v3296
    %v3298 = vrot.slane %v2964, 4
    %v3299 = vadd.f32 %v2964, %v3298
    %v3300 = vrot.slane %v3299, 2
    %v3301 = vadd.f32 %v3299, %v3300
    %v3302 = vrot.slane %v3301, 1
    %v3303 = vadd.f32 %v3301, %v3302
    %v3304 = vrot.slane %v2965, 4
    %v3305 = vadd.f32 %v2965, %v3304
    %v3306 = vrot.slane %v3305, 2
    %v3307 = vadd.f32 %v3305, %v3306
    %v3308 = vrot.slane %v3307, 1
    %v3309 = vadd.f32 %v3307, %v3308
    %v3310 = vrot.slane %v2966, 4
    %v3311 = vadd.f32 %v2966, %v3310
    %v3312 = vrot.slane %v3311, 2
    %v3313 = vadd.f32 %v3311, %v3312
    %v3314 = vrot.slane %v3313, 1
    %v3315 = vadd.f32 %v3313, %v3314
    %v3316 = vrot.slane %v2967, 4
    %v3317 = vadd.f32 %v2967, %v3316
    %v3318 = vrot.slane %v3317, 2
    %v3319 = vadd.f32 %v3317, %v3318
    %v3320 = vrot.slane %v3319, 1
    %v3321 = vadd.f32 %v3319, %v3320
    %v3322 = vrot.slane %v2968, 4
    %v3323 = vadd.f32 %v2968, %v3322
    %v3324 = vrot.slane %v3323, 2
    %v3325 = vadd.f32 %v3323, %v3324
    %v3326 = vrot.slane %v3325, 1
    %v3327 = vadd.f32 %v3325, %v3326
    %v3328 = vrot.slane %v2969, 4
    %v3329 = vadd.f32 %v2969, %v3328
    %v3330 = vrot.slane %v3329, 2
    %v3331 = vadd.f32 %v3329, %v3330
    %v3332 = vrot.slane %v3331, 1
    %v3333 = vadd.f32 %v3331, %v3332
    %v3334 = vrot.slane %v2970, 4
    %v3335 = vadd.f32 %v2970, %v3334
    %v3336 = vrot.slane %v3335, 2
    %v3337 = vadd.f32 %v3335, %v3336
    %v3338 = vrot.slane %v3337, 1
    %v3339 = vadd.f32 %v3337, %v3338
    %v3340 = vrot.slane %v2971, 4
    %v3341 = vadd.f32 %v2971, %v3340
    %v3342 = vrot.slane %v3341, 2
    %v3343 = vadd.f32 %v3341, %v3342
    %v3344 = vrot.slane %v3343, 1
    %v3345 = vadd.f32 %v3343, %v3344
    %v3346 = vrot.slane %v2972, 4
    %v3347 = vadd.f32 %v2972, %v3346
    %v3348 = vrot.slane %v3347, 2
    %v3349 = vadd.f32 %v3347, %v3348
    %v3350 = vrot.slane %v3349, 1
    %v3351 = vadd.f32 %v3349, %v3350
    %v3352 = vrot.slane %v2973, 4
    %v3353 = vadd.f32 %v2973, %v3352
    %v3354 = vrot.slane %v3353, 2
    %v3355 = vadd.f32 %v3353, %v3354
    %v3356 = vrot.slane %v3355, 1
    %v3357 = vadd.f32 %v3355, %v3356
    %v3358 = vld [vmem:[#allocation10] sm:$0xff]
    %v3359 = vld [vmem:[#allocation10 + $0x8] sm:$0xff]
    %v3360 = vld [vmem:[#allocation10 + $0x10] sm:$0xff]
    %v3361 = vld [vmem:[#allocation10 + $0x18] sm:$0xff]
    %v3362 = vld [vmem:[#allocation10 + $0x20] sm:$0xff]
    %v3363 = vld [vmem:[#allocation10 + $0x28] sm:$0xff]
    %v3364 = vld [vmem:[#allocation10 + $0x30] sm:$0xff]
    %v3365 = vld [vmem:[#allocation10 + $0x38] sm:$0xff]
    %v3366 = vld [vmem:[#allocation10 + $0x40] sm:$0xff]
    %v3367 = vld [vmem:[#allocation10 + $0x48] sm:$0xff]
    %v3368 = vld [vmem:[#allocation10 + $0x50] sm:$0xff]
    %v3369 = vld [vmem:[#allocation10 + $0x58] sm:$0xff]
    %v3370 = vld [vmem:[#allocation10 + $0x60] sm:$0xff]
    %v3371 = vld [vmem:[#allocation10 + $0x68] sm:$0xff]
    %v3372 = vld [vmem:[#allocation10 + $0x70] sm:$0xff]
    %v3373 = vld [vmem:[#allocation10 + $0x78] sm:$0xff]
    %v3374 = vld [vmem:[#allocation7] sm:$0xff]
    %v3375 = vld [vmem:[#allocation7 + $0x8] sm:$0xff]
    %v3376 = vld [vmem:[#allocation7 + $0x10] sm:$0xff]
    %v3377 = vld [vmem:[#allocation7 + $0x18] sm:$0xff]
    %v3378 = vld [vmem:[#allocation7 + $0x20] sm:$0xff]
    %v3379 = vld [vmem:[#allocation7 + $0x28] sm:$0xff]
    %v3380 = vld [vmem:[#allocation7 + $0x30] sm:$0xff]
    %v3381 = vld [vmem:[#allocation7 + $0x38] sm:$0xff]
    %v3382 = vld [vmem:[#allocation7 + $0x40] sm:$0xff]
    %v3383 = vld [vmem:[#allocation7 + $0x48] sm:$0xff]
    %v3384 = vld [vmem:[#allocation7 + $0x50] sm:$0xff]
    %v3385 = vld [vmem:[#allocation7 + $0x58] sm:$0xff]
    %v3386 = vld [vmem:[#allocation7 + $0x60] sm:$0xff]
    %v3387 = vld [vmem:[#allocation7 + $0x68] sm:$0xff]
    %v3388 = vld [vmem:[#allocation7 + $0x70] sm:$0xff]
    %v3389 = vld [vmem:[#allocation7 + $0x78] sm:$0xff]
    %v3390 = vld [vmem:[#allocation11 + $0x3] sm:$0x1]
    %v3391 = vlaneseq
    %v3392 = vshrl.u32 %v3391, 7
    %v3393 = vsub.s32 0, %v3392
    %v3394 = vrot.slane %v3390, %v3393
    %vm3459 = vcmask 1041409
    %v3460 = vsel %vm3459, %v2985, %v2979
    %vm3461 = vcmask 1042434
    %v3462 = vsel %vm3461, %v2991, %v3460
    %vm3463 = vcmask 1043459
    %v3464 = vsel %vm3463, %v2997, %v3462
    %vm3465 = vcmask 1044484
    %v3466 = vsel %vm3465, %v3003, %v3464
    %vm3467 = vcmask 1045509
    %v3468 = vsel %vm3467, %v3009, %v3466
    %vm3469 = vcmask 1046534
    %v3470 = vsel %vm3469, %v3015, %v3468
    %vm3471 = vcmask 1047559
    %v3472 = vsel %vm3471, %v3021, %v3470
    %v3473 = vsel %vm3459, %v3033, %v3027
    %v3474 = vsel %vm3461, %v3039, %v3473
    %v3475 = vsel %vm3463, %v3045, %v3474
    %v3476 = vsel %vm3465, %v3051, %v3475
    %v3477 = vsel %vm3467, %v3057, %v3476
    %v3478 = vsel %vm3469, %v3063, %v3477
    %v3479 = vsel %vm3471, %v3069, %v3478
    %v3480 = vsel %vm3459, %v3081, %v3075
    %v3481 = vsel %vm3461, %v3087, %v3480
    %v3482 = vsel %vm3463, %v3093, %v3481
    %v3483 = vsel %vm3465, %v3099, %v3482
    %v3484 = vsel %vm3467, %v3105, %v3483
    %v3485 = vsel %vm3469, %v3111, %v3484
    %v3486 = vsel %vm3471, %v3117, %v3485
    %v3487 = vsel %vm3459, %v3129, %v3123
    %v3488 = vsel %vm3461, %v3135, %v3487
    %v3489 = vsel %vm3463, %v3141, %v3488
    %v3490 = vsel %vm3465, %v3147, %v3489
    %v3491 = vsel %vm3467, %v3153, %v3490
    %v3492 = vsel %vm3469, %v3159, %v3491
    %v3493 = vsel %vm3471, %v3165, %v3492
    %v3494 = vsel %vm3459, %v3177, %v3171
    %v3495 = vsel %vm3461, %v3183, %v3494
    %v3496 = vsel %vm3463, %v3189, %v3495
    %v3497 = vsel %vm3465, %v3195, %v3496
    %v3498 = vsel %vm3467, %v3201, %v3497
    %v3499 = vsel %vm3469, %v3207, %v3498
    %v3500 = vsel %vm3471, %v3213, %v3499
    %v3501 = vsel %vm3459, %v3225, %v3219
    %v3502 = vsel %vm3461, %v3231, %v3501
    %v3503 = vsel %vm3463, %v3237, %v3502
    %v3504 = vsel %vm3465, %v3243, %v3503
    %v3505 = vsel %vm3467, %v3249, %v3504
    %v3506 = vsel %vm3469, %v3255, %v3505
    %v3507 = vsel %vm3471, %v3261, %v3506
    %v3508 = vsel %vm3459, %v3273, %v3267
    %v3509 = vsel %vm3461, %v3279, %v3508
    %v3510 = vsel %vm3463, %v3285, %v3509
    %v3511 = vsel %vm3465, %v3291, %v3510
    %v3512 = vsel %vm3467, %v3297, %v3511
    %v3513 = vsel %vm3469, %v3303, %v3512
    %v3514 = vsel %vm3471, %v3309, %v3513
    %v3515 = vsel %vm3459, %v3321, %v3315
    %v3516 = vsel %vm3461, %v3327, %v3515
    %v3517 = vsel %vm3463, %v3333, %v3516
    %v3518 = vsel %vm3465, %v3339, %v3517
    %v3519 = vsel %vm3467, %v3345, %v3518
    %v3520 = vsel %vm3469, %v3351, %v3519
    %v3521 = vsel %vm3471, %v3357, %v3520
    %3530 = vmatprep.subr.mxu0 0.0
    %3531 = vmatpush1.msra.mxu0 %v3374
    %3532 = vmatprep.subr.mxu0 0.0
    %3533 = vmatpush1.msra.mxu0 %v3375
    %3534 = vmatprep.subr.mxu0 0.0
    %3535 = vmatpush1.msra.mxu0 %v3376
    %3536 = vmatprep.subr.mxu0 0.0
    %3537 = vmatpush1.msra.mxu0 %v3377
    %3538 = vmatprep.subr.mxu0 0.0
    %3539 = vmatpush1.msra.mxu0 %v3378
    %3540 = vmatprep.subr.mxu0 0.0
    %3541 = vmatpush1.msra.mxu0 %v3379
    %3542 = vmatprep.subr.mxu0 0.0
    %3543 = vmatpush1.msra.mxu0 %v3380
    %3544 = vmatprep.subr.mxu0 0.0
    %3545 = vmatpush1.msra.mxu0 %v3381
    %3546 = vmatprep.subr.mxu0 0.0
    %3547 = vmatpush1.msra.mxu0 %v3382
    %3548 = vmatprep.subr.mxu0 0.0
    %3549 = vmatpush1.msra.mxu0 %v3383
    %3550 = vmatprep.subr.mxu0 0.0
    %3551 = vmatpush1.msra.mxu0 %v3384
    %3552 = vmatprep.subr.mxu0 0.0
    %3553 = vmatpush1.msra.mxu0 %v3385
    %3554 = vmatprep.subr.mxu0 0.0
    %3555 = vmatpush1.msra.mxu0 %v3386
    %3556 = vmatprep.subr.mxu0 0.0
    %3557 = vmatpush1.msra.mxu0 %v3387
    %3558 = vmatprep.subr.mxu0 0.0
    %3559 = vmatpush1.msra.mxu0 %v3388
    %3560 = vmatprep.subr.mxu0 0.0
    %3561 = vmatpush1.msra.mxu0 %v3389
    %3562 = vmatprep.subr.mxu0 0.0
    %3563 = vmatpush1.msra.mxu0 0.0
    %3564 = vmatprep.subr.mxu0 0.0
    %3565 = vmatpush1.msra.mxu0 0.0
    %3566 = vmatprep.subr.mxu0 0.0
    %3567 = vmatpush1.msra.mxu0 0.0
    %3568 = vmatprep.subr.mxu0 0.0
    %3569 = vmatpush1.msra.mxu0 0.0
    %3570 = vmatprep.subr.mxu0 0.0
    %3571 = vmatpush1.msra.mxu0 0.0
    %3572 = vmatprep.subr.mxu0 0.0
    %3573 = vmatpush1.msra.mxu0 0.0
    %3574 = vmatprep.subr.mxu0 0.0
    %3575 = vmatpush1.msra.mxu0 0.0
    %3576 = vmatprep.subr.mxu0 0.0
    %3577 = vmatpush1.msra.mxu0 0.0
    %3578 = vmatprep.subr.mxu0 0.0
    %3579 = vmatpush1.msra.mxu0 0.0
    %3580 = vmatprep.subr.mxu0 0.0
    %3581 = vmatpush1.msra.mxu0 0.0
    %3582 = vmatprep.subr.mxu0 0.0
    %3583 = vmatpush1.msra.mxu0 0.0
    %3584 = vmatprep.subr.mxu0 0.0
    %3585 = vmatpush1.msra.mxu0 0.0
    %3586 = vmatprep.subr.mxu0 0.0
    %3587 = vmatpush1.msra.mxu0 0.0
    %3588 = vmatprep.subr.mxu0 0.0
    %3589 = vmatpush1.msra.mxu0 0.0
    %3590 = vmatprep.subr.mxu0 0.0
    %3591 = vmatpush1.msra.mxu0 0.0
    %3592 = vmatprep.subr.mxu0 0.0
    %3593 = vmatpush1.msra.mxu0 0.0
    %3594 = vmatprep.mubr.f32.mxu0 0.0
    %3595 = vmatmul.mubr.f32.gmra.mrb[0].mxu0 %v3472
    %v3596 = vpop.f32.mrb[0].mxu0
    %v3597 = vadd.f32 %v3394, %v3596
    %v3598 = vpop.f32.mrb[0].mxu0
    %3599 = vmatprep.mubr.f32.mxu0 0.0
    %3600 = vmatmul.mubr.f32.gmra.mrb[0].mxu0 %v3479
    %v3601 = vpop.f32.mrb[0].mxu0
    %v3602 = vadd.f32 %v3394, %v3601
    %v3603 = vpop.f32.mrb[0].mxu0
    %3604 = vmatprep.mubr.f32.mxu0 0.0
    %3605 = vmatmul.mubr.f32.gmra.mrb[0].mxu0 %v3486
    %v3606 = vpop.f32.mrb[0].mxu0
    %v3607 = vadd.f32 %v3394, %v3606
    %v3608 = vpop.f32.mrb[0].mxu0
    %3609 = vmatprep.mubr.f32.mxu0 0.0
    %3610 = vmatmul.mubr.f32.gmra.mrb[0].mxu0 %v3493
    %v3611 = vpop.f32.mrb[0].mxu0
    %v3612 = vadd.f32 %v3394, %v3611
    %v3613 = vpop.f32.mrb[0].mxu0
    %3614 = vmatprep.mubr.f32.mxu0 0.0
    %3615 = vmatmul.mubr.f32.gmra.mrb[0].mxu0 %v3500
    %v3616 = vpop.f32.mrb[0].mxu0
    %v3617 = vadd.f32 %v3394, %v3616
    %v3618 = vpop.f32.mrb[0].mxu0
    %3619 = vmatprep.mubr.f32.mxu0 0.0
    %3620 = vmatmul.mubr.f32.gmra.mrb[0].mxu0 %v3507
    %v3621 = vpop.f32.mrb[0].mxu0
    %v3622 = vadd.f32 %v3394, %v3621
    %v3623 = vpop.f32.mrb[0].mxu0
    %3624 = vmatprep.mubr.f32.mxu0 0.0
    %3625 = vmatmul.mubr.f32.gmra.mrb[0].mxu0 %v3514
    %v3626 = vpop.f32.mrb[0].mxu0
    %v3627 = vadd.f32 %v3394, %v3626
    %v3628 = vpop.f32.mrb[0].mxu0
    %3629 = vmatprep.mubr.f32.mxu0 0.0
    %3630 = vmatmul.mubr.f32.gmra.mrb[0].mxu0 %v3521
    %v3631 = vpop.f32.mrb[0].mxu0
    %v3632 = vadd.f32 %v3394, %v3631
    %v3633 = vpop.f32.mrb[0].mxu0
    %3634 = vdwg.mxu0
    %v3635 = vadd.f32 %v3597, %v108
    %v3636 = vadd.f32 %v3602, %v109
    %v3637 = vadd.f32 %v3607, %v110
    %v3638 = vadd.f32 %v3612, %v111
    %v3639 = vadd.f32 %v3617, %v112
    %v3640 = vadd.f32 %v3622, %v113
    %v3641 = vadd.f32 %v3627, %v114
    %v3642 = vadd.f32 %v3632, %v115
    %3643 = vmatprep.subr.mxu0 0.0
    %3644 = vmatpush1.msra.mxu0 %v3358
    %3645 = vmatprep.subr.mxu0 0.0
    %3646 = vmatpush1.msra.mxu0 %v3359
    %3647 = vmatprep.subr.mxu0 0.0
    %3648 = vmatpush1.msra.mxu0 %v3360
    %3649 = vmatprep.subr.mxu0 0.0
    %3650 = vmatpush1.msra.mxu0 %v3361
    %3651 = vmatprep.subr.mxu0 0.0
    %3652 = vmatpush1.msra.mxu0 %v3362
    %3653 = vmatprep.subr.mxu0 0.0
    %3654 = vmatpush1.msra.mxu0 %v3363
    %3655 = vmatprep.subr.mxu0 0.0
    %3656 = vmatpush1.msra.mxu0 %v3364
    %3657 = vmatprep.subr.mxu0 0.0
    %3658 = vmatpush1.msra.mxu0 %v3365
    %3659 = vmatprep.subr.mxu0 0.0
    %3660 = vmatpush1.msra.mxu0 %v3366
    %3661 = vmatprep.subr.mxu0 0.0
    %3662 = vmatpush1.msra.mxu0 %v3367
    %3663 = vmatprep.subr.mxu0 0.0
    %3664 = vmatpush1.msra.mxu0 %v3368
    %3665 = vmatprep.subr.mxu0 0.0
    %3666 = vmatpush1.msra.mxu0 %v3369
    %3667 = vmatprep.subr.mxu0 0.0
    %3668 = vmatpush1.msra.mxu0 %v3370
    %3669 = vmatprep.subr.mxu0 0.0
    %3670 = vmatpush1.msra.mxu0 %v3371
    %3671 = vmatprep.subr.mxu0 0.0
    %3672 = vmatpush1.msra.mxu0 %v3372
    %3673 = vmatprep.subr.mxu0 0.0
    %3674 = vmatpush1.msra.mxu0 %v3373
    %3675 = vmatprep.subr.mxu0 0.0
    %3676 = vmatpush1.msra.mxu0 0.0
    %3677 = vmatprep.subr.mxu0 0.0
    %3678 = vmatpush1.msra.mxu0 0.0
    %3679 = vmatprep.subr.mxu0 0.0
    %3680 = vmatpush1.msra.mxu0 0.0
    %3681 = vmatprep.subr.mxu0 0.0
    %3682 = vmatpush1.msra.mxu0 0.0
    %3683 = vmatprep.subr.mxu0 0.0
    %3684 = vmatpush1.msra.mxu0 0.0
    %3685 = vmatprep.subr.mxu0 0.0
    %3686 = vmatpush1.msra.mxu0 0.0
    %3687 = vmatprep.subr.mxu0 0.0
    %3688 = vmatpush1.msra.mxu0 0.0
    %3689 = vmatprep.subr.mxu0 0.0
    %3690 = vmatpush1.msra.mxu0 0.0
    %3691 = vmatprep.subr.mxu0 0.0
    %3692 = vmatpush1.msra.mxu0 0.0
    %3693 = vmatprep.subr.mxu0 0.0
    %3694 = vmatpush1.msra.mxu0 0.0
    %3695 = vmatprep.subr.mxu0 0.0
    %3696 = vmatpush1.msra.mxu0 0.0
    %3697 = vmatprep.subr.mxu0 0.0
    %3698 = vmatpush1.msra.mxu0 0.0
    %3699 = vmatprep.subr.mxu0 0.0
    %3700 = vmatpush1.msra.mxu0 0.0
    %3701 = vmatprep.subr.mxu0 0.0
    %3702 = vmatpush1.msra.mxu0 0.0
    %3703 = vmatprep.subr.mxu0 0.0
    %3704 = vmatpush1.msra.mxu0 0.0
    %3705 = vmatprep.subr.mxu0 0.0
    %3706 = vmatpush1.msra.mxu0 0.0
    %3707 = vmatprep.mubr.f32.mxu0 0.0
    %3708 = vmatmul.mubr.f32.gmra.mrb[0].mxu0 %v3635
    %v3709 = vpop.f32.mrb[0].mxu0
    %v3710 = vadd.f32 0.0, %v3709
    %v3711 = vpop.f32.mrb[0].mxu0
    %3712 = vmatprep.mubr.f32.mxu0 0.0
    %3713 = vmatmul.mubr.f32.gmra.mrb[0].mxu0 %v3636
    %v3714 = vpop.f32.mrb[0].mxu0
    %v3715 = vadd.f32 0.0, %v3714
    %v3716 = vpop.f32.mrb[0].mxu0
    %3717 = vmatprep.mubr.f32.mxu0 0.0
    %3718 = vmatmul.mubr.f32.gmra.mrb[0].mxu0 %v3637
    %v3719 = vpop.f32.mrb[0].mxu0
    %v3720 = vadd.f32 0.0, %v3719
    %v3721 = vpop.f32.mrb[0].mxu0
    %3722 = vmatprep.mubr.f32.mxu0 0.0
    %3723 = vmatmul.mubr.f32.gmra.mrb[0].mxu0 %v3638
    %v3724 = vpop.f32.mrb[0].mxu0
    %v3725 = vadd.f32 0.0, %v3724
    %v3726 = vpop.f32.mrb[0].mxu0
    %3727 = vmatprep.mubr.f32.mxu0 0.0
    %3728 = vmatmul.mubr.f32.gmra.mrb[0].mxu0 %v3639
    %v3729 = vpop.f32.mrb[0].mxu0
    %v3730 = vadd.f32 0.0, %v3729
    %v3731 = vpop.f32.mrb[0].mxu0
    %3732 = vmatprep.mubr.f32.mxu0 0.0
    %3733 = vmatmul.mubr.f32.gmra.mrb[0].mxu0 %v3640
    %v3734 = vpop.f32.mrb[0].mxu0
    %v3735 = vadd.f32 0.0, %v3734
    %v3736 = vpop.f32.mrb[0].mxu0
    %3737 = vmatprep.mubr.f32.mxu0 0.0
    %3738 = vmatmul.mubr.f32.gmra.mrb[0].mxu0 %v3641
    %v3739 = vpop.f32.mrb[0].mxu0
    %v3740 = vadd.f32 0.0, %v3739
    %v3741 = vpop.f32.mrb[0].mxu0
    %3742 = vmatprep.mubr.f32.mxu0 0.0
    %3743 = vmatmul.mubr.f32.gmra.mrb[0].mxu0 %v3642
    %v3744 = vpop.f32.mrb[0].mxu0
    %v3745 = vadd.f32 0.0, %v3744
    %v3746 = vpop.f32.mrb[0].mxu0
    %3747 = vdwg.mxu0
    %v3748 = vmul.f32 %v3710, 0.03125
    %v3749 = vmul.f32 %v3715, 0.03125
    %v3750 = vmul.f32 %v3720, 0.03125
    %v3751 = vmul.f32 %v3725, 0.03125
    %v3752 = vmul.f32 %v3730, 0.03125
    %v3753 = vmul.f32 %v3735, 0.03125
    %v3754 = vmul.f32 %v3740, 0.03125
    %v3755 = vmul.f32 %v3745, 0.03125
    %v3756 = vsub.f32 %v3635, %v3748
    %v3757 = vsub.f32 %v3636, %v3749
    %v3758 = vsub.f32 %v3637, %v3750
    %v3759 = vsub.f32 %v3638, %v3751
    %v3760 = vsub.f32 %v3639, %v3752
    %v3761 = vsub.f32 %v3640, %v3753
    %v3762 = vsub.f32 %v3641, %v3754
    %v3763 = vsub.f32 %v3642, %v3755
    %v3764 = vmul.f32 %v3756, %v3756
    %v3765 = vmul.f32 %v3757, %v3757
    %v3766 = vmul.f32 %v3758, %v3758
    %v3767 = vmul.f32 %v3759, %v3759
    %v3768 = vmul.f32 %v3760, %v3760
    %v3769 = vmul.f32 %v3761, %v3761
    %v3770 = vmul.f32 %v3762, %v3762
    %v3771 = vmul.f32 %v3763, %v3763
    %3772 = vmatprep.subr.mxu0 0.0
    %3773 = vmatpush1.msra.mxu0 %v3358
    %3774 = vmatprep.subr.mxu0 0.0
    %3775 = vmatpush1.msra.mxu0 %v3359
    %3776 = vmatprep.subr.mxu0 0.0
    %3777 = vmatpush1.msra.mxu0 %v3360
    %3778 = vmatprep.subr.mxu0 0.0
    %3779 = vmatpush1.msra.mxu0 %v3361
    %3780 = vmatprep.subr.mxu0 0.0
    %3781 = vmatpush1.msra.mxu0 %v3362
    %3782 = vmatprep.subr.mxu0 0.0
    %3783 = vmatpush1.msra.mxu0 %v3363
    %3784 = vmatprep.subr.mxu0 0.0
    %3785 = vmatpush1.msra.mxu0 %v3364
    %3786 = vmatprep.subr.mxu0 0.0
    %3787 = vmatpush1.msra.mxu0 %v3365
    %3788 = vmatprep.subr.mxu0 0.0
    %3789 = vmatpush1.msra.mxu0 %v3366
    %3790 = vmatprep.subr.mxu0 0.0
    %3791 = vmatpush1.msra.mxu0 %v3367
    %3792 = vmatprep.subr.mxu0 0.0
    %3793 = vmatpush1.msra.mxu0 %v3368
    %3794 = vmatprep.subr.mxu0 0.0
    %3795 = vmatpush1.msra.mxu0 %v3369
    %3796 = vmatprep.subr.mxu0 0.0
    %3797 = vmatpush1.msra.mxu0 %v3370
    %3798 = vmatprep.subr.mxu0 0.0
    %3799 = vmatpush1.msra.mxu0 %v3371
    %3800 = vmatprep.subr.mxu0 0.0
    %3801 = vmatpush1.msra.mxu0 %v3372
    %3802 = vmatprep.subr.mxu0 0.0
    %3803 = vmatpush1.msra.mxu0 %v3373
    %3804 = vmatprep.subr.mxu0 0.0
    %3805 = vmatpush1.msra.mxu0 0.0
    %3806 = vmatprep.subr.mxu0 0.0
    %3807 = vmatpush1.msra.mxu0 0.0
    %3808 = vmatprep.subr.mxu0 0.0
    %3809 = vmatpush1.msra.mxu0 0.0
    %3810 = vmatprep.subr.mxu0 0.0
    %3811 = vmatpush1.msra.mxu0 0.0
    %3812 = vmatprep.subr.mxu0 0.0
    %3813 = vmatpush1.msra.mxu0 0.0
    %3814 = vmatprep.subr.mxu0 0.0
    %3815 = vmatpush1.msra.mxu0 0.0
    %3816 = vmatprep.subr.mxu0 0.0
    %3817 = vmatpush1.msra.mxu0 0.0
    %3818 = vmatprep.subr.mxu0 0.0
    %3819 = vmatpush1.msra.mxu0 0.0
    %3820 = vmatprep.subr.mxu0 0.0
    %3821 = vmatpush1.msra.mxu0 0.0
    %3822 = vmatprep.subr.mxu0 0.0
    %3823 = vmatpush1.msra.mxu0 0.0
    %3824 = vmatprep.subr.mxu0 0.0
    %3825 = vmatpush1.msra.mxu0 0.0
    %3826 = vmatprep.subr.mxu0 0.0
    %3827 = vmatpush1.msra.mxu0 0.0
    %3828 = vmatprep.subr.mxu0 0.0
    %3829 = vmatpush1.msra.mxu0 0.0
    %3830 = vmatprep.subr.mxu0 0.0
    %3831 = vmatpush1.msra.mxu0 0.0
    %3832 = vmatprep.subr.mxu0 0.0
    %3833 = vmatpush1.msra.mxu0 0.0
    %3834 = vmatprep.subr.mxu0 0.0
    %3835 = vmatpush1.msra.mxu0 0.0
    %3836 = vmatprep.mubr.f32.mxu0 0.0
    %3837 = vmatmul.mubr.f32.gmra.mrb[0].mxu0 %v3764
    %v3838 = vpop.f32.mrb[0].mxu0
    %v3839 = vadd.f32 0.0, %v3838
    %v3840 = vpop.f32.mrb[0].mxu0
    %3841 = vmatprep.mubr.f32.mxu0 0.0
    %3842 = vmatmul.mubr.f32.gmra.mrb[0].mxu0 %v3765
    %v3843 = vpop.f32.mrb[0].mxu0
    %v3844 = vadd.f32 0.0, %v3843
    %v3845 = vpop.f32.mrb[0].mxu0
    %3846 = vmatprep.mubr.f32.mxu0 0.0
    %3847 = vmatmul.mubr.f32.gmra.mrb[0].mxu0 %v3766
    %v3848 = vpop.f32.mrb[0].mxu0
    %v3849 = vadd.f32 0.0, %v3848
    %v3850 = vpop.f32.mrb[0].mxu0
    %3851 = vmatprep.mubr.f32.mxu0 0.0
    %3852 = vmatmul.mubr.f32.gmra.mrb[0].mxu0 %v3767
    %v3853 = vpop.f32.mrb[0].mxu0
    %v3854 = vadd.f32 0.0, %v3853
    %v3855 = vpop.f32.mrb[0].mxu0
    %3856 = vmatprep.mubr.f32.mxu0 0.0
    %3857 = vmatmul.mubr.f32.gmra.mrb[0].mxu0 %v3768
    %v3858 = vpop.f32.mrb[0].mxu0
    %v3859 = vadd.f32 0.0, %v3858
    %v3860 = vpop.f32.mrb[0].mxu0
    %3861 = vmatprep.mubr.f32.mxu0 0.0
    %3862 = vmatmul.mubr.f32.gmra.mrb[0].mxu0 %v3769
    %v3863 = vpop.f32.mrb[0].mxu0
    %v3864 = vadd.f32 0.0, %v3863
    %v3865 = vpop.f32.mrb[0].mxu0
    %3866 = vmatprep.mubr.f32.mxu0 0.0
    %3867 = vmatmul.mubr.f32.gmra.mrb[0].mxu0 %v3770
    %v3868 = vpop.f32.mrb[0].mxu0
    %v3869 = vadd.f32 0.0, %v3868
    %v3870 = vpop.f32.mrb[0].mxu0
    %3871 = vmatprep.mubr.f32.mxu0 0.0
    %3872 = vmatmul.mubr.f32.gmra.mrb[0].mxu0 %v3771
    %v3873 = vpop.f32.mrb[0].mxu0
    %v3874 = vadd.f32 0.0, %v3873
    %v3875 = vpop.f32.mrb[0].mxu0
    %3876 = vdwg.mxu0
    %v3877 = vmul.f32 %v3839, 0.03125
    %v3878 = vmul.f32 %v3844, 0.03125
    %v3879 = vmul.f32 %v3849, 0.03125
    %v3880 = vmul.f32 %v3854, 0.03125
    %v3881 = vmul.f32 %v3859, 0.03125
    %v3882 = vmul.f32 %v3864, 0.03125
    %v3883 = vmul.f32 %v3869, 0.03125
    %v3884 = vmul.f32 %v3874, 0.03125
    %v3885 = vadd.f32 %v3877, 1e-12
    %v3886 = vadd.f32 %v3878, 1e-12
    %v3887 = vadd.f32 %v3879, 1e-12
    %v3888 = vadd.f32 %v3880, 1e-12
    %v3889 = vadd.f32 %v3881, 1e-12
    %v3890 = vadd.f32 %v3882, 1e-12
    %v3891 = vadd.f32 %v3883, 1e-12
    %v3892 = vadd.f32 %v3884, 1e-12
    %v3893 = vrsqrt.pop %v3885
    %v3894 = vrsqrt.pop %v3886
    %v3895 = vrsqrt.pop %v3887
    %v3896 = vrsqrt.pop %v3888
    %v3897 = vrsqrt.pop %v3889
    %v3898 = vrsqrt.pop %v3890
    %v3899 = vrsqrt.pop %v3891
    %v3900 = vrsqrt.pop %v3892
    %v3901 = vmul.f32 %v3756, %v3893
    %v3902 = vmul.f32 %v3757, %v3894
    %v3903 = vmul.f32 %v3758, %v3895
    %v3904 = vmul.f32 %v3759, %v3896
    %v3905 = vmul.f32 %v3760, %v3897
    %v3906 = vmul.f32 %v3761, %v3898
    %v3907 = vmul.f32 %v3762, %v3899
    %v3908 = vmul.f32 %v3763, %v3900
    %v3909 = vld [vmem:[#allocation11 + $0x4] sm:$0x1]
    %v3910 = vlaneseq
    %v3911 = vshrl.u32 %v3910, 7
    %v3912 = vsub.s32 0, %v3911
    %v3913 = vrot.slane %v3909, %v3912
    %v3914 = vmul.f32 %v3901, %v3913
    %v3915 = vmul.f32 %v3902, %v3913
    %v3916 = vmul.f32 %v3903, %v3913
    %v3917 = vmul.f32 %v3904, %v3913
    %v3918 = vmul.f32 %v3905, %v3913
    %v3919 = vmul.f32 %v3906, %v3913
    %v3920 = vmul.f32 %v3907, %v3913
    %v3921 = vmul.f32 %v3908, %v3913
    %v3922 = vld [vmem:[#allocation11 + $0x5] sm:$0x1]
    %v3923 = vlaneseq
    %v3924 = vshrl.u32 %v3923, 7
    %v3925 = vsub.s32 0, %v3924
    %v3926 = vrot.slane %v3922, %v3925
    %v3927 = vadd.f32 %v3914, %v3926
    %v3928 = vadd.f32 %v3915, %v3926
    %v3929 = vadd.f32 %v3916, %v3926
    %v3930 = vadd.f32 %v3917, %v3926
    %v3931 = vadd.f32 %v3918, %v3926
    %v3932 = vadd.f32 %v3919, %v3926
    %v3933 = vadd.f32 %v3920, %v3926
    %v3934 = vadd.f32 %v3921, %v3926
    %v3935 = vld [vmem:[#allocation11 + $0x6] sm:$0x1]
    %v3936 = vlaneseq
    %v3937 = vshrl.u32 %v3936, 7
    %v3938 = vsub.s32 0, %v3937
    %v3939 = vrot.slane %v3935, %v3938
    %v3940 = vmul.f32 %v3927, %v3939
    %v3941 = vmul.f32 %v3928, %v3939
    %v3942 = vmul.f32 %v3929, %v3939
    %v3943 = vmul.f32 %v3930, %v3939
    %v3944 = vmul.f32 %v3931, %v3939
    %v3945 = vmul.f32 %v3932, %v3939
    %v3946 = vmul.f32 %v3933, %v3939
    %v3947 = vmul.f32 %v3934, %v3939
    %3948 = vmatprep.subr.mxu0 0.0
    %3949 = vmatpush1.msra.mxu0 %v3358
    %3950 = vmatprep.subr.mxu0 0.0
    %3951 = vmatpush1.msra.mxu0 %v3359
    %3952 = vmatprep.subr.mxu0 0.0
    %3953 = vmatpush1.msra.mxu0 %v3360
    %3954 = vmatprep.subr.mxu0 0.0
    %3955 = vmatpush1.msra.mxu0 %v3361
    %3956 = vmatprep.subr.mxu0 0.0
    %3957 = vmatpush1.msra.mxu0 %v3362
    %3958 = vmatprep.subr.mxu0 0.0
    %3959 = vmatpush1.msra.mxu0 %v3363
    %3960 = vmatprep.subr.mxu0 0.0
    %3961 = vmatpush1.msra.mxu0 %v3364
    %3962 = vmatprep.subr.mxu0 0.0
    %3963 = vmatpush1.msra.mxu0 %v3365
    %3964 = vmatprep.subr.mxu0 0.0
    %3965 = vmatpush1.msra.mxu0 %v3366
    %3966 = vmatprep.subr.mxu0 0.0
    %3967 = vmatpush1.msra.mxu0 %v3367
    %3968 = vmatprep.subr.mxu0 0.0
    %3969 = vmatpush1.msra.mxu0 %v3368
    %3970 = vmatprep.subr.mxu0 0.0
    %3971 = vmatpush1.msra.mxu0 %v3369
    %3972 = vmatprep.subr.mxu0 0.0
    %3973 = vmatpush1.msra.mxu0 %v3370
    %3974 = vmatprep.subr.mxu0 0.0
    %3975 = vmatpush1.msra.mxu0 %v3371
    %3976 = vmatprep.subr.mxu0 0.0
    %3977 = vmatpush1.msra.mxu0 %v3372
    %3978 = vmatprep.subr.mxu0 0.0
    %3979 = vmatpush1.msra.mxu0 %v3373
    %3980 = vmatprep.subr.mxu0 0.0
    %3981 = vmatpush1.msra.mxu0 0.0
    %3982 = vmatprep.subr.mxu0 0.0
    %3983 = vmatpush1.msra.mxu0 0.0
    %3984 = vmatprep.subr.mxu0 0.0
    %3985 = vmatpush1.msra.mxu0 0.0
    %3986 = vmatprep.subr.mxu0 0.0
    %3987 = vmatpush1.msra.mxu0 0.0
    %3988 = vmatprep.subr.mxu0 0.0
    %3989 = vmatpush1.msra.mxu0 0.0
    %3990 = vmatprep.subr.mxu0 0.0
    %3991 = vmatpush1.msra.mxu0 0.0
    %3992 = vmatprep.subr.mxu0 0.0
    %3993 = vmatpush1.msra.mxu0 0.0
    %3994 = vmatprep.subr.mxu0 0.0
    %3995 = vmatpush1.msra.mxu0 0.0
    %3996 = vmatprep.subr.mxu0 0.0
    %3997 = vmatpush1.msra.mxu0 0.0
    %3998 = vmatprep.subr.mxu0 0.0
    %3999 = vmatpush1.msra.mxu0 0.0
    %4000 = vmatprep.subr.mxu0 0.0
    %4001 = vmatpush1.msra.mxu0 0.0
    %4002 = vmatprep.subr.mxu0 0.0
    %4003 = vmatpush1.msra.mxu0 0.0
    %4004 = vmatprep.subr.mxu0 0.0
    %4005 = vmatpush1.msra.mxu0 0.0
    %4006 = vmatprep.subr.mxu0 0.0
    %4007 = vmatpush1.msra.mxu0 0.0
    %4008 = vmatprep.subr.mxu0 0.0
    %4009 = vmatpush1.msra.mxu0 0.0
    %4010 = vmatprep.subr.mxu0 0.0
    %4011 = vmatpush1.msra.mxu0 0.0
    %4012 = vmatprep.mubr.f32.mxu0 0.0
    %4013 = vmatmul.mubr.f32.gmra.mrb[0].mxu0 %v3940
    %v4014 = vpop.f32.mrb[0].mxu0
    %v4015 = vadd.f32 0.0, %v4014
    %v4016 = vpop.f32.mrb[0].mxu0
    %4017 = vmatprep.mubr.f32.mxu0 0.0
    %4018 = vmatmul.mubr.f32.gmra.mrb[0].mxu0 %v3941
    %v4019 = vpop.f32.mrb[0].mxu0
    %v4020 = vadd.f32 0.0, %v4019
    %v4021 = vpop.f32.mrb[0].mxu0
    %4022 = vmatprep.mubr.f32.mxu0 0.0
    %4023 = vmatmul.mubr.f32.gmra.mrb[0].mxu0 %v3942
    %v4024 = vpop.f32.mrb[0].mxu0
    %v4025 = vadd.f32 0.0, %v4024
    %v4026 = vpop.f32.mrb[0].mxu0
    %4027 = vmatprep.mubr.f32.mxu0 0.0
    %4028 = vmatmul.mubr.f32.gmra.mrb[0].mxu0 %v3943
    %v4029 = vpop.f32.mrb[0].mxu0
    %v4030 = vadd.f32 0.0, %v4029
    %v4031 = vpop.f32.mrb[0].mxu0
    %4032 = vmatprep.mubr.f32.mxu0 0.0
    %4033 = vmatmul.mubr.f32.gmra.mrb[0].mxu0 %v3944
    %v4034 = vpop.f32.mrb[0].mxu0
    %v4035 = vadd.f32 0.0, %v4034
    %v4036 = vpop.f32.mrb[0].mxu0
    %4037 = vmatprep.mubr.f32.mxu0 0.0
    %4038 = vmatmul.mubr.f32.gmra.mrb[0].mxu0 %v3945
    %v4039 = vpop.f32.mrb[0].mxu0
    %v4040 = vadd.f32 0.0, %v4039
    %v4041 = vpop.f32.mrb[0].mxu0
    %4042 = vmatprep.mubr.f32.mxu0 0.0
    %4043 = vmatmul.mubr.f32.gmra.mrb[0].mxu0 %v3946
    %v4044 = vpop.f32.mrb[0].mxu0
    %v4045 = vadd.f32 0.0, %v4044
    %v4046 = vpop.f32.mrb[0].mxu0
    %4047 = vmatprep.mubr.f32.mxu0 0.0
    %4048 = vmatmul.mubr.f32.gmra.mrb[0].mxu0 %v3947
    %v4049 = vpop.f32.mrb[0].mxu0
    %v4050 = vadd.f32 0.0, %v4049
    %v4051 = vpop.f32.mrb[0].mxu0
    %4052 = vdwg.mxu0
    %v4053 = vlaneseq
    %v4054 = vshrl.u32 %v4053, 7
    %vm4055 = vcmp.eq.s32.totalorder %v4054, 0
    %v4056 = vsel %vm4055, 1, 0
    %vm4057 = vcmp.eq.s32.totalorder %v4056, 1
    %v4058 = vsel %vm4057, -1e+30, %v4015
    %v4059 = vsel %vm4057, -1e+30, %v4020
    %v4060 = vsel %vm4057, -1e+30, %v4025
    %v4061 = vsel %vm4057, -1e+30, %v4030
    %v4062 = vsel %vm4057, -1e+30, %v4035
    %v4063 = vsel %vm4057, -1e+30, %v4040
    %v4064 = vsel %vm4057, -1e+30, %v4045
    %v4065 = vsel %vm4057, -1e+30, %v4050
    %v4066 = vrot.slane %v4058, 4
    %v4067 = vmax.f32 %v4058, %v4066
    %v4068 = vrot.slane %v4067, 2
    %v4069 = vmax.f32 %v4067, %v4068
    %v4070 = vrot.slane %v4069, 1
    %v4071 = vmax.f32 %v4069, %v4070
    %v4072 = vrot.slane %v4059, 4
    %v4073 = vmax.f32 %v4059, %v4072
    %v4074 = vrot.slane %v4073, 2
    %v4075 = vmax.f32 %v4073, %v4074
    %v4076 = vrot.slane %v4075, 1
    %v4077 = vmax.f32 %v4075, %v4076
    %v4078 = vrot.slane %v4060, 4
    %v4079 = vmax.f32 %v4060, %v4078
    %v4080 = vrot.slane %v4079, 2
    %v4081 = vmax.f32 %v4079, %v4080
    %v4082 = vrot.slane %v4081, 1
    %v4083 = vmax.f32 %v4081, %v4082
    %v4084 = vrot.slane %v4061, 4
    %v4085 = vmax.f32 %v4061, %v4084
    %v4086 = vrot.slane %v4085, 2
    %v4087 = vmax.f32 %v4085, %v4086
    %v4088 = vrot.slane %v4087, 1
    %v4089 = vmax.f32 %v4087, %v4088
    %v4090 = vrot.slane %v4062, 4
    %v4091 = vmax.f32 %v4062, %v4090
    %v4092 = vrot.slane %v4091, 2
    %v4093 = vmax.f32 %v4091, %v4092
    %v4094 = vrot.slane %v4093, 1
    %v4095 = vmax.f32 %v4093, %v4094
    %v4096 = vrot.slane %v4063, 4
    %v4097 = vmax.f32 %v4063, %v4096
    %v4098 = vrot.slane %v4097, 2
    %v4099 = vmax.f32 %v4097, %v4098
    %v4100 = vrot.slane %v4099, 1
    %v4101 = vmax.f32 %v4099, %v4100
    %v4102 = vrot.slane %v4064, 4
    %v4103 = vmax.f32 %v4064, %v4102
    %v4104 = vrot.slane %v4103, 2
    %v4105 = vmax.f32 %v4103, %v4104
    %v4106 = vrot.slane %v4105, 1
    %v4107 = vmax.f32 %v4105, %v4106
    %v4108 = vrot.slane %v4065, 4
    %v4109 = vmax.f32 %v4065, %v4108
    %v4110 = vrot.slane %v4109, 2
    %v4111 = vmax.f32 %v4109, %v4110
    %v4112 = vrot.slane %v4111, 1
    %v4113 = vmax.f32 %v4111, %v4112
    %v4114 = vsub.f32 %v4058, %v4071
    %v4115 = vsub.f32 %v4059, %v4077
    %v4116 = vsub.f32 %v4060, %v4083
    %v4117 = vsub.f32 %v4061, %v4089
    %v4118 = vsub.f32 %v4062, %v4095
    %v4119 = vsub.f32 %v4063, %v4101
    %v4120 = vsub.f32 %v4064, %v4107
    %v4121 = vsub.f32 %v4065, %v4113
    %v4122 = vmul.f32 %v4114, 1.442695
    %v4123 = vpow.pop %v4122
    %v4124 = vmul.f32 %v4115, 1.442695
    %v4125 = vpow.pop %v4124
    %v4126 = vmul.f32 %v4116, 1.442695
    %v4127 = vpow.pop %v4126
    %v4128 = vmul.f32 %v4117, 1.442695
    %v4129 = vpow.pop %v4128
    %v4130 = vmul.f32 %v4118, 1.442695
    %v4131 = vpow.pop %v4130
    %v4132 = vmul.f32 %v4119, 1.442695
    %v4133 = vpow.pop %v4132
    %v4134 = vmul.f32 %v4120, 1.442695
    %v4135 = vpow.pop %v4134
    %v4136 = vmul.f32 %v4121, 1.442695
    %v4137 = vpow.pop %v4136
    %v4138 = vrot.slane %v4123, 4
    %v4139 = vadd.f32 %v4123, %v4138
    %v4140 = vrot.slane %v4139, 2
    %v4141 = vadd.f32 %v4139, %v4140
    %v4142 = vrot.slane %v4141, 1
    %v4143 = vadd.f32 %v4141, %v4142
    %v4144 = vrot.slane %v4125, 4
    %v4145 = vadd.f32 %v4125, %v4144
    %v4146 = vrot.slane %v4145, 2
    %v4147 = vadd.f32 %v4145, %v4146
    %v4148 = vrot.slane %v4147, 1
    %v4149 = vadd.f32 %v4147, %v4148
    %v4150 = vrot.slane %v4127, 4
    %v4151 = vadd.f32 %v4127, %v4150
    %v4152 = vrot.slane %v4151, 2
    %v4153 = vadd.f32 %v4151, %v4152
    %v4154 = vrot.slane %v4153, 1
    %v4155 = vadd.f32 %v4153, %v4154
    %v4156 = vrot.slane %v4129, 4
    %v4157 = vadd.f32 %v4129, %v4156
    %v4158 = vrot.slane %v4157, 2
    %v4159 = vadd.f32 %v4157, %v4158
    %v4160 = vrot.slane %v4159, 1
    %v4161 = vadd.f32 %v4159, %v4160
    %v4162 = vrot.slane %v4131, 4
    %v4163 = vadd.f32 %v4131, %v4162
    %v4164 = vrot.slane %v4163, 2
    %v4165 = vadd.f32 %v4163, %v4164
    %v4166 = vrot.slane %v4165, 1
    %v4167 = vadd.f32 %v4165, %v4166
    %v4168 = vrot.slane %v4133, 4
    %v4169 = vadd.f32 %v4133, %v4168
    %v4170 = vrot.slane %v4169, 2
    %v4171 = vadd.f32 %v4169, %v4170
    %v4172 = vrot.slane %v4171, 1
    %v4173 = vadd.f32 %v4171, %v4172
    %v4174 = vrot.slane %v4135, 4
    %v4175 = vadd.f32 %v4135, %v4174
    %v4176 = vrot.slane %v4175, 2
    %v4177 = vadd.f32 %v4175, %v4176
    %v4178 = vrot.slane %v4177, 1
    %v4179 = vadd.f32 %v4177, %v4178
    %v4180 = vrot.slane %v4137, 4
    %v4181 = vadd.f32 %v4137, %v4180
    %v4182 = vrot.slane %v4181, 2
    %v4183 = vadd.f32 %v4181, %v4182
    %v4184 = vrot.slane %v4183, 1
    %v4185 = vadd.f32 %v4183, %v4184
    %v4186 = vrcp.pop %v4143
    %v4187 = vmul.f32 %v4123, %v4186
    %v4188 = vrcp.pop %v4149
    %v4189 = vmul.f32 %v4125, %v4188
    %v4190 = vrcp.pop %v4155
    %v4191 = vmul.f32 %v4127, %v4190
    %v4192 = vrcp.pop %v4161
    %v4193 = vmul.f32 %v4129, %v4192
    %v4194 = vrcp.pop %v4167
    %v4195 = vmul.f32 %v4131, %v4194
    %v4196 = vrcp.pop %v4173
    %v4197 = vmul.f32 %v4133, %v4196
    %v4198 = vrcp.pop %v4179
    %v4199 = vmul.f32 %v4135, %v4198
    %v4200 = vrcp.pop %v4185
    %v4201 = vmul.f32 %v4137, %v4200
    %v4202 = vlaneseq
    %v4203 = vshrl.u32 %v4202, 7
    %v4204 = vsub.s32 0, %v4203
    %v4205 = vrot.slane %v108, %v4204
    %v4206 = vlaneseq
    %v4207 = vshrl.u32 %v4206, 7
    %v4208 = vsub.s32 0, %v4207
    %v4209 = vrot.slane %v109, %v4208
    %v4210 = vlaneseq
    %v4211 = vshrl.u32 %v4210, 7
    %v4212 = vsub.s32 0, %v4211
    %v4213 = vrot.slane %v110, %v4212
    %v4214 = vlaneseq
    %v4215 = vshrl.u32 %v4214, 7
    %v4216 = vsub.s32 0, %v4215
    %v4217 = vrot.slane %v111, %v4216
    %v4218 = vlaneseq
    %v4219 = vshrl.u32 %v4218, 7
    %v4220 = vsub.s32 0, %v4219
    %v4221 = vrot.slane %v112, %v4220
    %v4222 = vlaneseq
    %v4223 = vshrl.u32 %v4222, 7
    %v4224 = vsub.s32 0, %v4223
    %v4225 = vrot.slane %v113, %v4224
    %v4226 = vlaneseq
    %v4227 = vshrl.u32 %v4226, 7
    %v4228 = vsub.s32 0, %v4227
    %v4229 = vrot.slane %v114, %v4228
    %v4230 = vlaneseq
    %v4231 = vshrl.u32 %v4230, 7
    %v4232 = vsub.s32 0, %v4231
    %v4233 = vrot.slane %v115, %v4232
    %v4234 = vmul.f32 %v4205, %v108
    %v4235 = vmul.f32 %v4209, %v109
    %v4236 = vmul.f32 %v4213, %v110
    %v4237 = vmul.f32 %v4217, %v111
    %v4238 = vmul.f32 %v4221, %v112
    %v4239 = vmul.f32 %v4225, %v113
    %v4240 = vmul.f32 %v4229, %v114
    %v4241 = vmul.f32 %v4233, %v115
    %4242 = vmatprep.subr.mxu0 0.0
    %v4243 = vand.u32 %v3358, 4294901760
    %4244 = vmatpush1.msra.mxu0 %v4243
    %4245 = vmatprep.subr.mxu0 0.0
    %v4246 = vand.u32 %v3359, 4294901760
    %4247 = vmatpush1.msra.mxu0 %v4246
    %4248 = vmatprep.subr.mxu0 0.0
    %v4249 = vand.u32 %v3360, 4294901760
    %4250 = vmatpush1.msra.mxu0 %v4249
    %4251 = vmatprep.subr.mxu0 0.0
    %v4252 = vand.u32 %v3361, 4294901760
    %4253 = vmatpush1.msra.mxu0 %v4252
    %4254 = vmatprep.subr.mxu0 0.0
    %v4255 = vand.u32 %v3362, 4294901760
    %4256 = vmatpush1.msra.mxu0 %v4255
    %4257 = vmatprep.subr.mxu0 0.0
    %v4258 = vand.u32 %v3363, 4294901760
    %4259 = vmatpush1.msra.mxu0 %v4258
    %4260 = vmatprep.subr.mxu0 0.0
    %v4261 = vand.u32 %v3364, 4294901760
    %4262 = vmatpush1.msra.mxu0 %v4261
    %4263 = vmatprep.subr.mxu0 0.0
    %v4264 = vand.u32 %v3365, 4294901760
    %4265 = vmatpush1.msra.mxu0 %v4264
    %4266 = vmatprep.subr.mxu0 0.0
    %v4267 = vand.u32 %v3366, 4294901760
    %4268 = vmatpush1.msra.mxu0 %v4267
    %4269 = vmatprep.subr.mxu0 0.0
    %v4270 = vand.u32 %v3367, 4294901760
    %4271 = vmatpush1.msra.mxu0 %v4270
    %4272 = vmatprep.subr.mxu0 0.0
    %v4273 = vand.u32 %v3368, 4294901760
    %4274 = vmatpush1.msra.mxu0 %v4273
    %4275 = vmatprep.subr.mxu0 0.0
    %v4276 = vand.u32 %v3369, 4294901760
    %4277 = vmatpush1.msra.mxu0 %v4276
    %4278 = vmatprep.subr.mxu0 0.0
    %v4279 = vand.u32 %v3370, 4294901760
    %4280 = vmatpush1.msra.mxu0 %v4279
    %4281 = vmatprep.subr.mxu0 0.0
    %v4282 = vand.u32 %v3371, 4294901760
    %4283 = vmatpush1.msra.mxu0 %v4282
    %4284 = vmatprep.subr.mxu0 0.0
    %v4285 = vand.u32 %v3372, 4294901760
    %4286 = vmatpush1.msra.mxu0 %v4285
    %4287 = vmatprep.subr.mxu0 0.0
    %v4288 = vand.u32 %v3373, 4294901760
    %4289 = vmatpush1.msra.mxu0 %v4288
    %4290 = vmatprep.subr.mxu0 0.0
    %4291 = vmatpush1.msra.mxu0 0.0
    %4292 = vmatprep.subr.mxu0 0.0
    %4293 = vmatpush1.msra.mxu0 0.0
    %4294 = vmatprep.subr.mxu0 0.0
    %4295 = vmatpush1.msra.mxu0 0.0
    %4296 = vmatprep.subr.mxu0 0.0
    %4297 = vmatpush1.msra.mxu0 0.0
    %4298 = vmatprep.subr.mxu0 0.0
    %4299 = vmatpush1.msra.mxu0 0.0
    %4300 = vmatprep.subr.mxu0 0.0
    %4301 = vmatpush1.msra.mxu0 0.0
    %4302 = vmatprep.subr.mxu0 0.0
    %4303 = vmatpush1.msra.mxu0 0.0
    %4304 = vmatprep.subr.mxu0 0.0
    %4305 = vmatpush1.msra.mxu0 0.0
    %4306 = vmatprep.subr.mxu0 0.0
    %4307 = vmatpush1.msra.mxu0 0.0
    %4308 = vmatprep.subr.mxu0 0.0
    %4309 = vmatpush1.msra.mxu0 0.0
    %4310 = vmatprep.subr.mxu0 0.0
    %4311 = vmatpush1.msra.mxu0 0.0
    %4312 = vmatprep.subr.mxu0 0.0
    %4313 = vmatpush1.msra.mxu0 0.0
    %4314 = vmatprep.subr.mxu0 0.0
    %4315 = vmatpush1.msra.mxu0 0.0
    %4316 = vmatprep.subr.mxu0 0.0
    %4317 = vmatpush1.msra.mxu0 0.0
    %4318 = vmatprep.subr.mxu0 0.0
    %4319 = vmatpush1.msra.mxu0 0.0
    %4320 = vmatprep.subr.mxu0 0.0
    %4321 = vmatpush1.msra.mxu0 0.0
    %4322 = vmatprep.mubr.f32.mxu0 0.0
    %v4323 = vand.u32 %v4234, 4294901760
    %v4324 = vsub.f32 %v4234, %v4323
    %v4325 = vand.u32 %v4324, 4294901760
    %v4326 = vsub.f32 %v4324, %v4325
    %v4327 = vand.u32 %v4326, 4294901760
    %4328 = vmatmul.mubr.f32.gmra.mrb[0].mxu0 %v4327
    %v4329 = vpop.f32.mrb[0].mxu0
    %v4330 = vadd.f32 0.0, %v4329
    %v4331 = vpop.f32.mrb[0].mxu0
    %4332 = vmatprep.mubr.f32.mxu0 0.0
    %v4333 = vand.u32 %v4235, 4294901760
    %v4334 = vsub.f32 %v4235, %v4333
    %v4335 = vand.u32 %v4334, 4294901760
    %v4336 = vsub.f32 %v4334, %v4335
    %v4337 = vand.u32 %v4336, 4294901760
    %4338 = vmatmul.mubr.f32.gmra.mrb[0].mxu0 %v4337
    %v4339 = vpop.f32.mrb[0].mxu0
    %v4340 = vadd.f32 0.0, %v4339
    %v4341 = vpop.f32.mrb[0].mxu0
    %4342 = vmatprep.mubr.f32.mxu0 0.0
    %v4343 = vand.u32 %v4236, 4294901760
    %v4344 = vsub.f32 %v4236, %v4343
    %v4345 = vand.u32 %v4344, 4294901760
    %v4346 = vsub.f32 %v4344, %v4345
    %v4347 = vand.u32 %v4346, 4294901760
    %4348 = vmatmul.mubr.f32.gmra.mrb[0].mxu0 %v4347
    %v4349 = vpop.f32.mrb[0].mxu0
    %v4350 = vadd.f32 0.0, %v4349
    %v4351 = vpop.f32.mrb[0].mxu0
    %4352 = vmatprep.mubr.f32.mxu0 0.0
    %v4353 = vand.u32 %v4237, 4294901760
    %v4354 = vsub.f32 %v4237, %v4353
    %v4355 = vand.u32 %v4354, 4294901760
    %v4356 = vsub.f32 %v4354, %v4355
    %v4357 = vand.u32 %v4356, 4294901760
    %4358 = vmatmul.mubr.f32.gmra.mrb[0].mxu0 %v4357
    %v4359 = vpop.f32.mrb[0].mxu0
    %v4360 = vadd.f32 0.0, %v4359
    %v4361 = vpop.f32.mrb[0].mxu0
    %4362 = vmatprep.mubr.f32.mxu0 0.0
    %v4363 = vand.u32 %v4238, 4294901760
    %v4364 = vsub.f32 %v4238, %v4363
    %v4365 = vand.u32 %v4364, 4294901760
    %v4366 = vsub.f32 %v4364, %v4365
    %v4367 = vand.u32 %v4366, 4294901760
    %4368 = vmatmul.mubr.f32.gmra.mrb[0].mxu0 %v4367
    %v4369 = vpop.f32.mrb[0].mxu0
    %v4370 = vadd.f32 0.0, %v4369
    %v4371 = vpop.f32.mrb[0].mxu0
    %4372 = vmatprep.mubr.f32.mxu0 0.0
    %v4373 = vand.u32 %v4239, 4294901760
    %v4374 = vsub.f32 %v4239, %v4373
    %v4375 = vand.u32 %v4374, 4294901760
    %v4376 = vsub.f32 %v4374, %v4375
    %v4377 = vand.u32 %v4376, 4294901760
    %4378 = vmatmul.mubr.f32.gmra.mrb[0].mxu0 %v4377
    %v4379 = vpop.f32.mrb[0].mxu0
    %v4380 = vadd.f32 0.0, %v4379
    %v4381 = vpop.f32.mrb[0].mxu0
    %4382 = vmatprep.mubr.f32.mxu0 0.0
    %v4383 = vand.u32 %v4240, 4294901760
    %v4384 = vsub.f32 %v4240, %v4383
    %v4385 = vand.u32 %v4384, 4294901760
    %v4386 = vsub.f32 %v4384, %v4385
    %v4387 = vand.u32 %v4386, 4294901760
    %4388 = vmatmul.mubr.f32.gmra.mrb[0].mxu0 %v4387
    %v4389 = vpop.f32.mrb[0].mxu0
    %v4390 = vadd.f32 0.0, %v4389
    %v4391 = vpop.f32.mrb[0].mxu0
    %4392 = vmatprep.mubr.f32.mxu0 0.0
    %v4393 = vand.u32 %v4241, 4294901760
    %v4394 = vsub.f32 %v4241, %v4393
    %v4395 = vand.u32 %v4394, 4294901760
    %v4396 = vsub.f32 %v4394, %v4395
    %v4397 = vand.u32 %v4396, 4294901760
    %4398 = vmatmul.mubr.f32.gmra.mrb[0].mxu0 %v4397
    %v4399 = vpop.f32.mrb[0].mxu0
    %v4400 = vadd.f32 0.0, %v4399
    %v4401 = vpop.f32.mrb[0].mxu0
    %4402 = vdwg.mxu0
    %4403 = vmatprep.subr.mxu0 0.0
    %v4404 = vand.u32 %v3358, 4294901760
    %v4405 = vsub.f32 %v3358, %v4404
    %v4406 = vand.u32 %v4405, 4294901760
    %v4407 = vsub.f32 %v4405, %v4406
    %v4408 = vand.u32 %v4407, 4294901760
    %4409 = vmatpush1.msra.mxu0 %v4408
    %4410 = vmatprep.subr.mxu0 0.0
    %v4411 = vand.u32 %v3359, 4294901760
    %v4412 = vsub.f32 %v3359, %v4411
    %v4413 = vand.u32 %v4412, 4294901760
    %v4414 = vsub.f32 %v4412, %v4413
    %v4415 = vand.u32 %v4414, 4294901760
    %4416 = vmatpush1.msra.mxu0 %v4415
    %4417 = vmatprep.subr.mxu0 0.0
    %v4418 = vand.u32 %v3360, 4294901760
    %v4419 = vsub.f32 %v3360, %v4418
    %v4420 = vand.u32 %v4419, 4294901760
    %v4421 = vsub.f32 %v4419, %v4420
    %v4422 = vand.u32 %v4421, 4294901760
    %4423 = vmatpush1.msra.mxu0 %v4422
    %4424 = vmatprep.subr.mxu0 0.0
    %v4425 = vand.u32 %v3361, 4294901760
    %v4426 = vsub.f32 %v3361, %v4425
    %v4427 = vand.u32 %v4426, 4294901760
    %v4428 = vsub.f32 %v4426, %v4427
    %v4429 = vand.u32 %v4428, 4294901760
    %4430 = vmatpush1.msra.mxu0 %v4429
    %4431 = vmatprep.subr.mxu0 0.0
    %v4432 = vand.u32 %v3362, 4294901760
    %v4433 = vsub.f32 %v3362, %v4432
    %v4434 = vand.u32 %v4433, 4294901760
    %v4435 = vsub.f32 %v4433, %v4434
    %v4436 = vand.u32 %v4435, 4294901760
    %4437 = vmatpush1.msra.mxu0 %v4436
    %4438 = vmatprep.subr.mxu0 0.0
    %v4439 = vand.u32 %v3363, 4294901760
    %v4440 = vsub.f32 %v3363, %v4439
    %v4441 = vand.u32 %v4440, 4294901760
    %v4442 = vsub.f32 %v4440, %v4441
    %v4443 = vand.u32 %v4442, 4294901760
    %4444 = vmatpush1.msra.mxu0 %v4443
    %4445 = vmatprep.subr.mxu0 0.0
    %v4446 = vand.u32 %v3364, 4294901760
    %v4447 = vsub.f32 %v3364, %v4446
    %v4448 = vand.u32 %v4447, 4294901760
    %v4449 = vsub.f32 %v4447, %v4448
    %v4450 = vand.u32 %v4449, 4294901760
    %4451 = vmatpush1.msra.mxu0 %v4450
    %4452 = vmatprep.subr.mxu0 0.0
    %v4453 = vand.u32 %v3365, 4294901760
    %v4454 = vsub.f32 %v3365, %v4453
    %v4455 = vand.u32 %v4454, 4294901760
    %v4456 = vsub.f32 %v4454, %v4455
    %v4457 = vand.u32 %v4456, 4294901760
    %4458 = vmatpush1.msra.mxu0 %v4457
    %4459 = vmatprep.subr.mxu0 0.0
    %v4460 = vand.u32 %v3366, 4294901760
    %v4461 = vsub.f32 %v3366, %v4460
    %v4462 = vand.u32 %v4461, 4294901760
    %v4463 = vsub.f32 %v4461, %v4462
    %v4464 = vand.u32 %v4463, 4294901760
    %4465 = vmatpush1.msra.mxu0 %v4464
    %4466 = vmatprep.subr.mxu0 0.0
    %v4467 = vand.u32 %v3367, 4294901760
    %v4468 = vsub.f32 %v3367, %v4467
    %v4469 = vand.u32 %v4468, 4294901760
    %v4470 = vsub.f32 %v4468, %v4469
    %v4471 = vand.u32 %v4470, 4294901760
    %4472 = vmatpush1.msra.mxu0 %v4471
    %4473 = vmatprep.subr.mxu0 0.0
    %v4474 = vand.u32 %v3368, 4294901760
    %v4475 = vsub.f32 %v3368, %v4474
    %v4476 = vand.u32 %v4475, 4294901760
    %v4477 = vsub.f32 %v4475, %v4476
    %v4478 = vand.u32 %v4477, 4294901760
    %4479 = vmatpush1.msra.mxu0 %v4478
    %4480 = vmatprep.subr.mxu0 0.0
    %v4481 = vand.u32 %v3369, 4294901760
    %v4482 = vsub.f32 %v3369, %v4481
    %v4483 = vand.u32 %v4482, 4294901760
    %v4484 = vsub.f32 %v4482, %v4483
    %v4485 = vand.u32 %v4484, 4294901760
    %4486 = vmatpush1.msra.mxu0 %v4485
    %4487 = vmatprep.subr.mxu0 0.0
    %v4488 = vand.u32 %v3370, 4294901760
    %v4489 = vsub.f32 %v3370, %v4488
    %v4490 = vand.u32 %v4489, 4294901760
    %v4491 = vsub.f32 %v4489, %v4490
    %v4492 = vand.u32 %v4491, 4294901760
    %4493 = vmatpush1.msra.mxu0 %v4492
    %4494 = vmatprep.subr.mxu0 0.0
    %v4495 = vand.u32 %v3371, 4294901760
    %v4496 = vsub.f32 %v3371, %v4495
    %v4497 = vand.u32 %v4496, 4294901760
    %v4498 = vsub.f32 %v4496, %v4497
    %v4499 = vand.u32 %v4498, 4294901760
    %4500 = vmatpush1.msra.mxu0 %v4499
    %4501 = vmatprep.subr.mxu0 0.0
    %v4502 = vand.u32 %v3372, 4294901760
    %v4503 = vsub.f32 %v3372, %v4502
    %v4504 = vand.u32 %v4503, 4294901760
    %v4505 = vsub.f32 %v4503, %v4504
    %v4506 = vand.u32 %v4505, 4294901760
    %4507 = vmatpush1.msra.mxu0 %v4506
    %4508 = vmatprep.subr.mxu0 0.0
    %v4509 = vand.u32 %v3373, 4294901760
    %v4510 = vsub.f32 %v3373, %v4509
    %v4511 = vand.u32 %v4510, 4294901760
    %v4512 = vsub.f32 %v4510, %v4511
    %v4513 = vand.u32 %v4512, 4294901760
    %4514 = vmatpush1.msra.mxu0 %v4513
    %4515 = vmatprep.subr.mxu0 0.0
    %4516 = vmatpush1.msra.mxu0 0.0
    %4517 = vmatprep.subr.mxu0 0.0
    %4518 = vmatpush1.msra.mxu0 0.0
    %4519 = vmatprep.subr.mxu0 0.0
    %4520 = vmatpush1.msra.mxu0 0.0
    %4521 = vmatprep.subr.mxu0 0.0
    %4522 = vmatpush1.msra.mxu0 0.0
    %4523 = vmatprep.subr.mxu0 0.0
    %4524 = vmatpush1.msra.mxu0 0.0
    %4525 = vmatprep.subr.mxu0 0.0
    %4526 = vmatpush1.msra.mxu0 0.0
    %4527 = vmatprep.subr.mxu0 0.0
    %4528 = vmatpush1.msra.mxu0 0.0
    %4529 = vmatprep.subr.mxu0 0.0
    %4530 = vmatpush1.msra.mxu0 0.0
    %4531 = vmatprep.subr.mxu0 0.0
    %4532 = vmatpush1.msra.mxu0 0.0
    %4533 = vmatprep.subr.mxu0 0.0
    %4534 = vmatpush1.msra.mxu0 0.0
    %4535 = vmatprep.subr.mxu0 0.0
    %4536 = vmatpush1.msra.mxu0 0.0
    %4537 = vmatprep.subr.mxu0 0.0
    %4538 = vmatpush1.msra.mxu0 0.0
    %4539 = vmatprep.subr.mxu0 0.0
    %4540 = vmatpush1.msra.mxu0 0.0
    %4541 = vmatprep.subr.mxu0 0.0
    %4542 = vmatpush1.msra.mxu0 0.0
    %4543 = vmatprep.subr.mxu0 0.0
    %4544 = vmatpush1.msra.mxu0 0.0
    %4545 = vmatprep.subr.mxu0 0.0
    %4546 = vmatpush1.msra.mxu0 0.0
    %4547 = vmatprep.mubr.f32.mxu0 0.0
    %v4548 = vand.u32 %v4234, 4294901760
    %4549 = vmatmul.mubr.f32.gmra.mrb[0].mxu0 %v4548
    %v4550 = vpop.f32.mrb[0].mxu0
    %v4551 = vadd.f32 %v4330, %v4550
    %v4552 = vpop.f32.mrb[0].mxu0
    %4553 = vmatprep.mubr.f32.mxu0 0.0
    %v4554 = vand.u32 %v4235, 4294901760
    %4555 = vmatmul.mubr.f32.gmra.mrb[0].mxu0 %v4554
    %v4556 = vpop.f32.mrb[0].mxu0
    %v4557 = vadd.f32 %v4340, %v4556
    %v4558 = vpop.f32.mrb[0].mxu0
    %4559 = vmatprep.mubr.f32.mxu0 0.0
    %v4560 = vand.u32 %v4236, 4294901760
    %4561 = vmatmul.mubr.f32.gmra.mrb[0].mxu0 %v4560
    %v4562 = vpop.f32.mrb[0].mxu0
    %v4563 = vadd.f32 %v4350, %v4562
    %v4564 = vpop.f32.mrb[0].mxu0
    %4565 = vmatprep.mubr.f32.mxu0 0.0
    %v4566 = vand.u32 %v4237, 4294901760
    %4567 = vmatmul.mubr.f32.gmra.mrb[0].mxu0 %v4566
    %v4568 = vpop.f32.mrb[0].mxu0
    %v4569 = vadd.f32 %v4360, %v4568
    %v4570 = vpop.f32.mrb[0].mxu0
    %4571 = vmatprep.mubr.f32.mxu0 0.0
    %v4572 = vand.u32 %v4238, 4294901760
    %4573 = vmatmul.mubr.f32.gmra.mrb[0].mxu0 %v4572
    %v4574 = vpop.f32.mrb[0].mxu0
    %v4575 = vadd.f32 %v4370, %v4574
    %v4576 = vpop.f32.mrb[0].mxu0
    %4577 = vmatprep.mubr.f32.mxu0 0.0
    %v4578 = vand.u32 %v4239, 4294901760
    %4579 = vmatmul.mubr.f32.gmra.mrb[0].mxu0 %v4578
    %v4580 = vpop.f32.mrb[0].mxu0
    %v4581 = vadd.f32 %v4380, %v4580
    %v4582 = vpop.f32.mrb[0].mxu0
    %4583 = vmatprep.mubr.f32.mxu0 0.0
    %v4584 = vand.u32 %v4240, 4294901760
    %4585 = vmatmul.mubr.f32.gmra.mrb[0].mxu0 %v4584
    %v4586 = vpop.f32.mrb[0].mxu0
    %v4587 = vadd.f32 %v4390, %v4586
    %v4588 = vpop.f32.mrb[0].mxu0
    %4589 = vmatprep.mubr.f32.mxu0 0.0
    %v4590 = vand.u32 %v4241, 4294901760
    %4591 = vmatmul.mubr.f32.gmra.mrb[0].mxu0 %v4590
    %v4592 = vpop.f32.mrb[0].mxu0
    %v4593 = vadd.f32 %v4400, %v4592
    %v4594 = vpop.f32.mrb[0].mxu0
    %4595 = vdwg.mxu0
    %4596 = vmatprep.subr.mxu0 0.0
    %v4597 = vand.u32 %v3358, 4294901760
    %v4598 = vsub.f32 %v3358, %v4597
    %4599 = vmatpush1.msra.mxu0 %v4598
    %4600 = vmatprep.subr.mxu0 0.0
    %v4601 = vand.u32 %v3359, 4294901760
    %v4602 = vsub.f32 %v3359, %v4601
    %4603 = vmatpush1.msra.mxu0 %v4602
    %4604 = vmatprep.subr.mxu0 0.0
    %v4605 = vand.u32 %v3360, 4294901760
    %v4606 = vsub.f32 %v3360, %v4605
    %4607 = vmatpush1.msra.mxu0 %v4606
    %4608 = vmatprep.subr.mxu0 0.0
    %v4609 = vand.u32 %v3361, 4294901760
    %v4610 = vsub.f32 %v3361, %v4609
    %4611 = vmatpush1.msra.mxu0 %v4610
    %4612 = vmatprep.subr.mxu0 0.0
    %v4613 = vand.u32 %v3362, 4294901760
    %v4614 = vsub.f32 %v3362, %v4613
    %4615 = vmatpush1.msra.mxu0 %v4614
    %4616 = vmatprep.subr.mxu0 0.0
    %v4617 = vand.u32 %v3363, 4294901760
    %v4618 = vsub.f32 %v3363, %v4617
    %4619 = vmatpush1.msra.mxu0 %v4618
    %4620 = vmatprep.subr.mxu0 0.0
    %v4621 = vand.u32 %v3364, 4294901760
    %v4622 = vsub.f32 %v3364, %v4621
    %4623 = vmatpush1.msra.mxu0 %v4622
    %4624 = vmatprep.subr.mxu0 0.0
    %v4625 = vand.u32 %v3365, 4294901760
    %v4626 = vsub.f32 %v3365, %v4625
    %4627 = vmatpush1.msra.mxu0 %v4626
    %4628 = vmatprep.subr.mxu0 0.0
    %v4629 = vand.u32 %v3366, 4294901760
    %v4630 = vsub.f32 %v3366, %v4629
    %4631 = vmatpush1.msra.mxu0 %v4630
    %4632 = vmatprep.subr.mxu0 0.0
    %v4633 = vand.u32 %v3367, 4294901760
    %v4634 = vsub.f32 %v3367, %v4633
    %4635 = vmatpush1.msra.mxu0 %v4634
    %4636 = vmatprep.subr.mxu0 0.0
    %v4637 = vand.u32 %v3368, 4294901760
    %v4638 = vsub.f32 %v3368, %v4637
    %4639 = vmatpush1.msra.mxu0 %v4638
    %4640 = vmatprep.subr.mxu0 0.0
    %v4641 = vand.u32 %v3369, 4294901760
    %v4642 = vsub.f32 %v3369, %v4641
    %4643 = vmatpush1.msra.mxu0 %v4642
    %4644 = vmatprep.subr.mxu0 0.0
    %v4645 = vand.u32 %v3370, 4294901760
    %v4646 = vsub.f32 %v3370, %v4645
    %4647 = vmatpush1.msra.mxu0 %v4646
    %4648 = vmatprep.subr.mxu0 0.0
    %v4649 = vand.u32 %v3371, 4294901760
    %v4650 = vsub.f32 %v3371, %v4649
    %4651 = vmatpush1.msra.mxu0 %v4650
    %4652 = vmatprep.subr.mxu0 0.0
    %v4653 = vand.u32 %v3372, 4294901760
    %v4654 = vsub.f32 %v3372, %v4653
    %4655 = vmatpush1.msra.mxu0 %v4654
    %4656 = vmatprep.subr.mxu0 0.0
    %v4657 = vand.u32 %v3373, 4294901760
    %v4658 = vsub.f32 %v3373, %v4657
    %4659 = vmatpush1.msra.mxu0 %v4658
    %4660 = vmatprep.subr.mxu0 0.0
    %4661 = vmatpush1.msra.mxu0 0.0
    %4662 = vmatprep.subr.mxu0 0.0
    %4663 = vmatpush1.msra.mxu0 0.0
    %4664 = vmatprep.subr.mxu0 0.0
    %4665 = vmatpush1.msra.mxu0 0.0
    %4666 = vmatprep.subr.mxu0 0.0
    %4667 = vmatpush1.msra.mxu0 0.0
    %4668 = vmatprep.subr.mxu0 0.0
    %4669 = vmatpush1.msra.mxu0 0.0
    %4670 = vmatprep.subr.mxu0 0.0
    %4671 = vmatpush1.msra.mxu0 0.0
    %4672 = vmatprep.subr.mxu0 0.0
    %4673 = vmatpush1.msra.mxu0 0.0
    %4674 = vmatprep.subr.mxu0 0.0
    %4675 = vmatpush1.msra.mxu0 0.0
    %4676 = vmatprep.subr.mxu0 0.0
    %4677 = vmatpush1.msra.mxu0 0.0
    %4678 = vmatprep.subr.mxu0 0.0
    %4679 = vmatpush1.msra.mxu0 0.0
    %4680 = vmatprep.subr.mxu0 0.0
    %4681 = vmatpush1.msra.mxu0 0.0
    %4682 = vmatprep.subr.mxu0 0.0
    %4683 = vmatpush1.msra.mxu0 0.0
    %4684 = vmatprep.subr.mxu0 0.0
    %4685 = vmatpush1.msra.mxu0 0.0
    %4686 = vmatprep.subr.mxu0 0.0
    %4687 = vmatpush1.msra.mxu0 0.0
    %4688 = vmatprep.subr.mxu0 0.0
    %4689 = vmatpush1.msra.mxu0 0.0
    %4690 = vmatprep.subr.mxu0 0.0
    %4691 = vmatpush1.msra.mxu0 0.0
    %4692 = vmatprep.mubr.f32.mxu0 0.0
    %v4693 = vand.u32 %v4234, 4294901760
    %v4694 = vsub.f32 %v4234, %v4693
    %4695 = vmatmul.mubr.f32.gmra.mrb[0].mxu0 %v4694
    %v4696 = vpop.f32.mrb[0].mxu0
    %v4697 = vadd.f32 %v4551, %v4696
    %v4698 = vpop.f32.mrb[0].mxu0
    %4699 = vmatprep.mubr.f32.mxu0 0.0
    %v4700 = vand.u32 %v4235, 4294901760
    %v4701 = vsub.f32 %v4235, %v4700
    %4702 = vmatmul.mubr.f32.gmra.mrb[0].mxu0 %v4701
    %v4703 = vpop.f32.mrb[0].mxu0
    %v4704 = vadd.f32 %v4557, %v4703
    %v4705 = vpop.f32.mrb[0].mxu0
    %4706 = vmatprep.mubr.f32.mxu0 0.0
    %v4707 = vand.u32 %v4236, 4294901760
    %v4708 = vsub.f32 %v4236, %v4707
    %4709 = vmatmul.mubr.f32.gmra.mrb[0].mxu0 %v4708
    %v4710 = vpop.f32.mrb[0].mxu0
    %v4711 = vadd.f32 %v4563, %v4710
    %v4712 = vpop.f32.mrb[0].mxu0
    %4713 = vmatprep.mubr.f32.mxu0 0.0
    %v4714 = vand.u32 %v4237, 4294901760
    %v4715 = vsub.f32 %v4237, %v4714
    %4716 = vmatmul.mubr.f32.gmra.mrb[0].mxu0 %v4715
    %v4717 = vpop.f32.mrb[0].mxu0
    %v4718 = vadd.f32 %v4569, %v4717
    %v4719 = vpop.f32.mrb[0].mxu0
    %4720 = vmatprep.mubr.f32.mxu0 0.0
    %v4721 = vand.u32 %v4238, 4294901760
    %v4722 = vsub.f32 %v4238, %v4721
    %4723 = vmatmul.mubr.f32.gmra.mrb[0].mxu0 %v4722
    %v4724 = vpop.f32.mrb[0].mxu0
    %v4725 = vadd.f32 %v4575, %v4724
    %v4726 = vpop.f32.mrb[0].mxu0
    %4727 = vmatprep.mubr.f32.mxu0 0.0
    %v4728 = vand.u32 %v4239, 4294901760
    %v4729 = vsub.f32 %v4239, %v4728
    %4730 = vmatmul.mubr.f32.gmra.mrb[0].mxu0 %v4729
    %v4731 = vpop.f32.mrb[0].mxu0
    %v4732 = vadd.f32 %v4581, %v4731
    %v4733 = vpop.f32.mrb[0].mxu0
    %4734 = vmatprep.mubr.f32.mxu0 0.0
    %v4735 = vand.u32 %v4240, 4294901760
    %v4736 = vsub.f32 %v4240, %v4735
    %4737 = vmatmul.mubr.f32.gmra.mrb[0].mxu0 %v4736
    %v4738 = vpop.f32.mrb[0].mxu0
    %v4739 = vadd.f32 %v4587, %v4738
    %v4740 = vpop.f32.mrb[0].mxu0
    %4741 = vmatprep.mubr.f32.mxu0 0.0
    %v4742 = vand.u32 %v4241, 4294901760
    %v4743 = vsub.f32 %v4241, %v4742
    %4744 = vmatmul.mubr.f32.gmra.mrb[0].mxu0 %v4743
    %v4745 = vpop.f32.mrb[0].mxu0
    %v4746 = vadd.f32 %v4593, %v4745
    %v4747 = vpop.f32.mrb[0].mxu0
    %4748 = vdwg.mxu0
    %4749 = vmatprep.subr.mxu0 0.0
    %v4750 = vand.u32 %v3358, 4294901760
    %4751 = vmatpush1.msra.mxu0 %v4750
    %4752 = vmatprep.subr.mxu0 0.0
    %v4753 = vand.u32 %v3359, 4294901760
    %4754 = vmatpush1.msra.mxu0 %v4753
    %4755 = vmatprep.subr.mxu0 0.0
    %v4756 = vand.u32 %v3360, 4294901760
    %4757 = vmatpush1.msra.mxu0 %v4756
    %4758 = vmatprep.subr.mxu0 0.0
    %v4759 = vand.u32 %v3361, 4294901760
    %4760 = vmatpush1.msra.mxu0 %v4759
    %4761 = vmatprep.subr.mxu0 0.0
    %v4762 = vand.u32 %v3362, 4294901760
    %4763 = vmatpush1.msra.mxu0 %v4762
    %4764 = vmatprep.subr.mxu0 0.0
    %v4765 = vand.u32 %v3363, 4294901760
    %4766 = vmatpush1.msra.mxu0 %v4765
    %4767 = vmatprep.subr.mxu0 0.0
    %v4768 = vand.u32 %v3364, 4294901760
    %4769 = vmatpush1.msra.mxu0 %v4768
    %4770 = vmatprep.subr.mxu0 0.0
    %v4771 = vand.u32 %v3365, 4294901760
    %4772 = vmatpush1.msra.mxu0 %v4771
    %4773 = vmatprep.subr.mxu0 0.0
    %v4774 = vand.u32 %v3366, 4294901760
    %4775 = vmatpush1.msra.mxu0 %v4774
    %4776 = vmatprep.subr.mxu0 0.0
    %v4777 = vand.u32 %v3367, 4294901760
    %4778 = vmatpush1.msra.mxu0 %v4777
    %4779 = vmatprep.subr.mxu0 0.0
    %v4780 = vand.u32 %v3368, 4294901760
    %4781 = vmatpush1.msra.mxu0 %v4780
    %4782 = vmatprep.subr.mxu0 0.0
    %v4783 = vand.u32 %v3369, 4294901760
    %4784 = vmatpush1.msra.mxu0 %v4783
    %4785 = vmatprep.subr.mxu0 0.0
    %v4786 = vand.u32 %v3370, 4294901760
    %4787 = vmatpush1.msra.mxu0 %v4786
    %4788 = vmatprep.subr.mxu0 0.0
    %v4789 = vand.u32 %v3371, 4294901760
    %4790 = vmatpush1.msra.mxu0 %v4789
    %4791 = vmatprep.subr.mxu0 0.0
    %v4792 = vand.u32 %v3372, 4294901760
    %4793 = vmatpush1.msra.mxu0 %v4792
    %4794 = vmatprep.subr.mxu0 0.0
    %v4795 = vand.u32 %v3373, 4294901760
    %4796 = vmatpush1.msra.mxu0 %v4795
    %4797 = vmatprep.subr.mxu0 0.0
    %4798 = vmatpush1.msra.mxu0 0.0
    %4799 = vmatprep.subr.mxu0 0.0
    %4800 = vmatpush1.msra.mxu0 0.0
    %4801 = vmatprep.subr.mxu0 0.0
    %4802 = vmatpush1.msra.mxu0 0.0
    %4803 = vmatprep.subr.mxu0 0.0
    %4804 = vmatpush1.msra.mxu0 0.0
    %4805 = vmatprep.subr.mxu0 0.0
    %4806 = vmatpush1.msra.mxu0 0.0
    %4807 = vmatprep.subr.mxu0 0.0
    %4808 = vmatpush1.msra.mxu0 0.0
    %4809 = vmatprep.subr.mxu0 0.0
    %4810 = vmatpush1.msra.mxu0 0.0
    %4811 = vmatprep.subr.mxu0 0.0
    %4812 = vmatpush1.msra.mxu0 0.0
    %4813 = vmatprep.subr.mxu0 0.0
    %4814 = vmatpush1.msra.mxu0 0.0
    %4815 = vmatprep.subr.mxu0 0.0
    %4816 = vmatpush1.msra.mxu0 0.0
    %4817 = vmatprep.subr.mxu0 0.0
    %4818 = vmatpush1.msra.mxu0 0.0
    %4819 = vmatprep.subr.mxu0 0.0
    %4820 = vmatpush1.msra.mxu0 0.0
    %4821 = vmatprep.subr.mxu0 0.0
    %4822 = vmatpush1.msra.mxu0 0.0
    %4823 = vmatprep.subr.mxu0 0.0
    %4824 = vmatpush1.msra.mxu0 0.0
    %4825 = vmatprep.subr.mxu0 0.0
    %4826 = vmatpush1.msra.mxu0 0.0
    %4827 = vmatprep.subr.mxu0 0.0
    %4828 = vmatpush1.msra.mxu0 0.0
    %4829 = vmatprep.mubr.f32.mxu0 0.0
    %v4830 = vand.u32 %v4234, 4294901760
    %v4831 = vsub.f32 %v4234, %v4830
    %v4832 = vand.u32 %v4831, 4294901760
    %4833 = vmatmul.mubr.f32.gmra.mrb[0].mxu0 %v4832
    %v4834 = vpop.f32.mrb[0].mxu0
    %v4835 = vadd.f32 %v4697, %v4834
    %v4836 = vpop.f32.mrb[0].mxu0
    %4837 = vmatprep.mubr.f32.mxu0 0.0
    %v4838 = vand.u32 %v4235, 4294901760
    %v4839 = vsub.f32 %v4235, %v4838
    %v4840 = vand.u32 %v4839, 4294901760
    %4841 = vmatmul.mubr.f32.gmra.mrb[0].mxu0 %v4840
    %v4842 = vpop.f32.mrb[0].mxu0
    %v4843 = vadd.f32 %v4704, %v4842
    %v4844 = vpop.f32.mrb[0].mxu0
    %4845 = vmatprep.mubr.f32.mxu0 0.0
    %v4846 = vand.u32 %v4236, 4294901760
    %v4847 = vsub.f32 %v4236, %v4846
    %v4848 = vand.u32 %v4847, 4294901760
    %4849 = vmatmul.mubr.f32.gmra.mrb[0].mxu0 %v4848
    %v4850 = vpop.f32.mrb[0].mxu0
    %v4851 = vadd.f32 %v4711, %v4850
    %v4852 = vpop.f32.mrb[0].mxu0
    %4853 = vmatprep.mubr.f32.mxu0 0.0
    %v4854 = vand.u32 %v4237, 4294901760
    %v4855 = vsub.f32 %v4237, %v4854
    %v4856 = vand.u32 %v4855, 4294901760
    %4857 = vmatmul.mubr.f32.gmra.mrb[0].mxu0 %v4856
    %v4858 = vpop.f32.mrb[0].mxu0
    %v4859 = vadd.f32 %v4718, %v4858
    %v4860 = vpop.f32.mrb[0].mxu0
    %4861 = vmatprep.mubr.f32.mxu0 0.0
    %v4862 = vand.u32 %v4238, 4294901760
    %v4863 = vsub.f32 %v4238, %v4862
    %v4864 = vand.u32 %v4863, 4294901760
    %4865 = vmatmul.mubr.f32.gmra.mrb[0].mxu0 %v4864
    %v4866 = vpop.f32.mrb[0].mxu0
    %v4867 = vadd.f32 %v4725, %v4866
    %v4868 = vpop.f32.mrb[0].mxu0
    %4869 = vmatprep.mubr.f32.mxu0 0.0
    %v4870 = vand.u32 %v4239, 4294901760
    %v4871 = vsub.f32 %v4239, %v4870
    %v4872 = vand.u32 %v4871, 4294901760
    %4873 = vmatmul.mubr.f32.gmra.mrb[0].mxu0 %v4872
    %v4874 = vpop.f32.mrb[0].mxu0
    %v4875 = vadd.f32 %v4732, %v4874
    %v4876 = vpop.f32.mrb[0].mxu0
    %4877 = vmatprep.mubr.f32.mxu0 0.0
    %v4878 = vand.u32 %v4240, 4294901760
    %v4879 = vsub.f32 %v4240, %v4878
    %v4880 = vand.u32 %v4879, 4294901760
    %4881 = vmatmul.mubr.f32.gmra.mrb[0].mxu0 %v4880
    %v4882 = vpop.f32.mrb[0].mxu0
    %v4883 = vadd.f32 %v4739, %v4882
    %v4884 = vpop.f32.mrb[0].mxu0
    %4885 = vmatprep.mubr.f32.mxu0 0.0
    %v4886 = vand.u32 %v4241, 4294901760
    %v4887 = vsub.f32 %v4241, %v4886
    %v4888 = vand.u32 %v4887, 4294901760
    %4889 = vmatmul.mubr.f32.gmra.mrb[0].mxu0 %v4888
    %v4890 = vpop.f32.mrb[0].mxu0
    %v4891 = vadd.f32 %v4746, %v4890
    %v4892 = vpop.f32.mrb[0].mxu0
    %4893 = vdwg.mxu0
    %4894 = vmatprep.subr.mxu0 0.0
    %v4895 = vand.u32 %v3358, 4294901760
    %v4896 = vsub.f32 %v3358, %v4895
    %v4897 = vand.u32 %v4896, 4294901760
    %4898 = vmatpush1.msra.mxu0 %v4897
    %4899 = vmatprep.subr.mxu0 0.0
    %v4900 = vand.u32 %v3359, 4294901760
    %v4901 = vsub.f32 %v3359, %v4900
    %v4902 = vand.u32 %v4901, 4294901760
    %4903 = vmatpush1.msra.mxu0 %v4902
    %4904 = vmatprep.subr.mxu0 0.0
    %v4905 = vand.u32 %v3360, 4294901760
    %v4906 = vsub.f32 %v3360, %v4905
    %v4907 = vand.u32 %v4906, 4294901760
    %4908 = vmatpush1.msra.mxu0 %v4907
    %4909 = vmatprep.subr.mxu0 0.0
    %v4910 = vand.u32 %v3361, 4294901760
    %v4911 = vsub.f32 %v3361, %v4910
    %v4912 = vand.u32 %v4911, 4294901760
    %4913 = vmatpush1.msra.mxu0 %v4912
    %4914 = vmatprep.subr.mxu0 0.0
    %v4915 = vand.u32 %v3362, 4294901760
    %v4916 = vsub.f32 %v3362, %v4915
    %v4917 = vand.u32 %v4916, 4294901760
    %4918 = vmatpush1.msra.mxu0 %v4917
    %4919 = vmatprep.subr.mxu0 0.0
    %v4920 = vand.u32 %v3363, 4294901760
    %v4921 = vsub.f32 %v3363, %v4920
    %v4922 = vand.u32 %v4921, 4294901760
    %4923 = vmatpush1.msra.mxu0 %v4922
    %4924 = vmatprep.subr.mxu0 0.0
    %v4925 = vand.u32 %v3364, 4294901760
    %v4926 = vsub.f32 %v3364, %v4925
    %v4927 = vand.u32 %v4926, 4294901760
    %4928 = vmatpush1.msra.mxu0 %v4927
    %4929 = vmatprep.subr.mxu0 0.0
    %v4930 = vand.u32 %v3365, 4294901760
    %v4931 = vsub.f32 %v3365, %v4930
    %v4932 = vand.u32 %v4931, 4294901760
    %4933 = vmatpush1.msra.mxu0 %v4932
    %4934 = vmatprep.subr.mxu0 0.0
    %v4935 = vand.u32 %v3366, 4294901760
    %v4936 = vsub.f32 %v3366, %v4935
    %v4937 = vand.u32 %v4936, 4294901760
    %4938 = vmatpush1.msra.mxu0 %v4937
    %4939 = vmatprep.subr.mxu0 0.0
    %v4940 = vand.u32 %v3367, 4294901760
    %v4941 = vsub.f32 %v3367, %v4940
    %v4942 = vand.u32 %v4941, 4294901760
    %4943 = vmatpush1.msra.mxu0 %v4942
    %4944 = vmatprep.subr.mxu0 0.0
    %v4945 = vand.u32 %v3368, 4294901760
    %v4946 = vsub.f32 %v3368, %v4945
    %v4947 = vand.u32 %v4946, 4294901760
    %4948 = vmatpush1.msra.mxu0 %v4947
    %4949 = vmatprep.subr.mxu0 0.0
    %v4950 = vand.u32 %v3369, 4294901760
    %v4951 = vsub.f32 %v3369, %v4950
    %v4952 = vand.u32 %v4951, 4294901760
    %4953 = vmatpush1.msra.mxu0 %v4952
    %4954 = vmatprep.subr.mxu0 0.0
    %v4955 = vand.u32 %v3370, 4294901760
    %v4956 = vsub.f32 %v3370, %v4955
    %v4957 = vand.u32 %v4956, 4294901760
    %4958 = vmatpush1.msra.mxu0 %v4957
    %4959 = vmatprep.subr.mxu0 0.0
    %v4960 = vand.u32 %v3371, 4294901760
    %v4961 = vsub.f32 %v3371, %v4960
    %v4962 = vand.u32 %v4961, 4294901760
    %4963 = vmatpush1.msra.mxu0 %v4962
    %4964 = vmatprep.subr.mxu0 0.0
    %v4965 = vand.u32 %v3372, 4294901760
    %v4966 = vsub.f32 %v3372, %v4965
    %v4967 = vand.u32 %v4966, 4294901760
    %4968 = vmatpush1.msra.mxu0 %v4967
    %4969 = vmatprep.subr.mxu0 0.0
    %v4970 = vand.u32 %v3373, 4294901760
    %v4971 = vsub.f32 %v3373, %v4970
    %v4972 = vand.u32 %v4971, 4294901760
    %4973 = vmatpush1.msra.mxu0 %v4972
    %4974 = vmatprep.subr.mxu0 0.0
    %4975 = vmatpush1.msra.mxu0 0.0
    %4976 = vmatprep.subr.mxu0 0.0
    %4977 = vmatpush1.msra.mxu0 0.0
    %4978 = vmatprep.subr.mxu0 0.0
    %4979 = vmatpush1.msra.mxu0 0.0
    %4980 = vmatprep.subr.mxu0 0.0
    %4981 = vmatpush1.msra.mxu0 0.0
    %4982 = vmatprep.subr.mxu0 0.0
    %4983 = vmatpush1.msra.mxu0 0.0
    %4984 = vmatprep.subr.mxu0 0.0
    %4985 = vmatpush1.msra.mxu0 0.0
    %4986 = vmatprep.subr.mxu0 0.0
    %4987 = vmatpush1.msra.mxu0 0.0
    %4988 = vmatprep.subr.mxu0 0.0
    %4989 = vmatpush1.msra.mxu0 0.0
    %4990 = vmatprep.subr.mxu0 0.0
    %4991 = vmatpush1.msra.mxu0 0.0
    %4992 = vmatprep.subr.mxu0 0.0
    %4993 = vmatpush1.msra.mxu0 0.0
    %4994 = vmatprep.subr.mxu0 0.0
    %4995 = vmatpush1.msra.mxu0 0.0
    %4996 = vmatprep.subr.mxu0 0.0
    %4997 = vmatpush1.msra.mxu0 0.0
    %4998 = vmatprep.subr.mxu0 0.0
    %4999 = vmatpush1.msra.mxu0 0.0
    %5000 = vmatprep.subr.mxu0 0.0
    %5001 = vmatpush1.msra.mxu0 0.0
    %5002 = vmatprep.subr.mxu0 0.0
    %5003 = vmatpush1.msra.mxu0 0.0
    %5004 = vmatprep.subr.mxu0 0.0
    %5005 = vmatpush1.msra.mxu0 0.0
    %5006 = vmatprep.mubr.f32.mxu0 0.0
    %v5007 = vand.u32 %v4234, 4294901760
    %5008 = vmatmul.mubr.f32.gmra.mrb[0].mxu0 %v5007
    %v5009 = vpop.f32.mrb[0].mxu0
    %v5010 = vadd.f32 %v4835, %v5009
    %v5011 = vpop.f32.mrb[0].mxu0
    %5012 = vmatprep.mubr.f32.mxu0 0.0
    %v5013 = vand.u32 %v4235, 4294901760
    %5014 = vmatmul.mubr.f32.gmra.mrb[0].mxu0 %v5013
    %v5015 = vpop.f32.mrb[0].mxu0
    %v5016 = vadd.f32 %v4843, %v5015
    %v5017 = vpop.f32.mrb[0].mxu0
    %5018 = vmatprep.mubr.f32.mxu0 0.0
    %v5019 = vand.u32 %v4236, 4294901760
    %5020 = vmatmul.mubr.f32.gmra.mrb[0].mxu0 %v5019
    %v5021 = vpop.f32.mrb[0].mxu0
    %v5022 = vadd.f32 %v4851, %v5021
    %v5023 = vpop.f32.mrb[0].mxu0
    %5024 = vmatprep.mubr.f32.mxu0 0.0
    %v5025 = vand.u32 %v4237, 4294901760
    %5026 = vmatmul.mubr.f32.gmra.mrb[0].mxu0 %v5025
    %v5027 = vpop.f32.mrb[0].mxu0
    %v5028 = vadd.f32 %v4859, %v5027
    %v5029 = vpop.f32.mrb[0].mxu0
    %5030 = vmatprep.mubr.f32.mxu0 0.0
    %v5031 = vand.u32 %v4238, 4294901760
    %5032 = vmatmul.mubr.f32.gmra.mrb[0].mxu0 %v5031
    %v5033 = vpop.f32.mrb[0].mxu0
    %v5034 = vadd.f32 %v4867, %v5033
    %v5035 = vpop.f32.mrb[0].mxu0
    %5036 = vmatprep.mubr.f32.mxu0 0.0
    %v5037 = vand.u32 %v4239, 4294901760
    %5038 = vmatmul.mubr.f32.gmra.mrb[0].mxu0 %v5037
    %v5039 = vpop.f32.mrb[0].mxu0
    %v5040 = vadd.f32 %v4875, %v5039
    %v5041 = vpop.f32.mrb[0].mxu0
    %5042 = vmatprep.mubr.f32.mxu0 0.0
    %v5043 = vand.u32 %v4240, 4294901760
    %5044 = vmatmul.mubr.f32.gmra.mrb[0].mxu0 %v5043
    %v5045 = vpop.f32.mrb[0].mxu0
    %v5046 = vadd.f32 %v4883, %v5045
    %v5047 = vpop.f32.mrb[0].mxu0
    %5048 = vmatprep.mubr.f32.mxu0 0.0
    %v5049 = vand.u32 %v4241, 4294901760
    %5050 = vmatmul.mubr.f32.gmra.mrb[0].mxu0 %v5049
    %v5051 = vpop.f32.mrb[0].mxu0
    %v5052 = vadd.f32 %v4891, %v5051
    %v5053 = vpop.f32.mrb[0].mxu0
    %5054 = vdwg.mxu0
    %5055 = vmatprep.subr.mxu0 0.0
    %v5056 = vand.u32 %v3358, 4294901760
    %5057 = vmatpush1.msra.mxu0 %v5056
    %5058 = vmatprep.subr.mxu0 0.0
    %v5059 = vand.u32 %v3359, 4294901760
    %5060 = vmatpush1.msra.mxu0 %v5059
    %5061 = vmatprep.subr.mxu0 0.0
    %v5062 = vand.u32 %v3360, 4294901760
    %5063 = vmatpush1.msra.mxu0 %v5062
    %5064 = vmatprep.subr.mxu0 0.0
    %v5065 = vand.u32 %v3361, 4294901760
    %5066 = vmatpush1.msra.mxu0 %v5065
    %5067 = vmatprep.subr.mxu0 0.0
    %v5068 = vand.u32 %v3362, 4294901760
    %5069 = vmatpush1.msra.mxu0 %v5068
    %5070 = vmatprep.subr.mxu0 0.0
    %v5071 = vand.u32 %v3363, 4294901760
    %5072 = vmatpush1.msra.mxu0 %v5071
    %5073 = vmatprep.subr.mxu0 0.0
    %v5074 = vand.u32 %v3364, 4294901760
    %5075 = vmatpush1.msra.mxu0 %v5074
    %5076 = vmatprep.subr.mxu0 0.0
    %v5077 = vand.u32 %v3365, 4294901760
    %5078 = vmatpush1.msra.mxu0 %v5077
    %5079 = vmatprep.subr.mxu0 0.0
    %v5080 = vand.u32 %v3366, 4294901760
    %5081 = vmatpush1.msra.mxu0 %v5080
    %5082 = vmatprep.subr.mxu0 0.0
    %v5083 = vand.u32 %v3367, 4294901760
    %5084 = vmatpush1.msra.mxu0 %v5083
    %5085 = vmatprep.subr.mxu0 0.0
    %v5086 = vand.u32 %v3368, 4294901760
    %5087 = vmatpush1.msra.mxu0 %v5086
    %5088 = vmatprep.subr.mxu0 0.0
    %v5089 = vand.u32 %v3369, 4294901760
    %5090 = vmatpush1.msra.mxu0 %v5089
    %5091 = vmatprep.subr.mxu0 0.0
    %v5092 = vand.u32 %v3370, 4294901760
    %5093 = vmatpush1.msra.mxu0 %v5092
    %5094 = vmatprep.subr.mxu0 0.0
    %v5095 = vand.u32 %v3371, 4294901760
    %5096 = vmatpush1.msra.mxu0 %v5095
    %5097 = vmatprep.subr.mxu0 0.0
    %v5098 = vand.u32 %v3372, 4294901760
    %5099 = vmatpush1.msra.mxu0 %v5098
    %5100 = vmatprep.subr.mxu0 0.0
    %v5101 = vand.u32 %v3373, 4294901760
    %5102 = vmatpush1.msra.mxu0 %v5101
    %5103 = vmatprep.subr.mxu0 0.0
    %5104 = vmatpush1.msra.mxu0 0.0
    %5105 = vmatprep.subr.mxu0 0.0
    %5106 = vmatpush1.msra.mxu0 0.0
    %5107 = vmatprep.subr.mxu0 0.0
    %5108 = vmatpush1.msra.mxu0 0.0
    %5109 = vmatprep.subr.mxu0 0.0
    %5110 = vmatpush1.msra.mxu0 0.0
    %5111 = vmatprep.subr.mxu0 0.0
    %5112 = vmatpush1.msra.mxu0 0.0
    %5113 = vmatprep.subr.mxu0 0.0
    %5114 = vmatpush1.msra.mxu0 0.0
    %5115 = vmatprep.subr.mxu0 0.0
    %5116 = vmatpush1.msra.mxu0 0.0
    %5117 = vmatprep.subr.mxu0 0.0
    %5118 = vmatpush1.msra.mxu0 0.0
    %5119 = vmatprep.subr.mxu0 0.0
    %5120 = vmatpush1.msra.mxu0 0.0
    %5121 = vmatprep.subr.mxu0 0.0
    %5122 = vmatpush1.msra.mxu0 0.0
    %5123 = vmatprep.subr.mxu0 0.0
    %5124 = vmatpush1.msra.mxu0 0.0
    %5125 = vmatprep.subr.mxu0 0.0
    %5126 = vmatpush1.msra.mxu0 0.0
    %5127 = vmatprep.subr.mxu0 0.0
    %5128 = vmatpush1.msra.mxu0 0.0
    %5129 = vmatprep.subr.mxu0 0.0
    %5130 = vmatpush1.msra.mxu0 0.0
    %5131 = vmatprep.subr.mxu0 0.0
    %5132 = vmatpush1.msra.mxu0 0.0
    %5133 = vmatprep.subr.mxu0 0.0
    %5134 = vmatpush1.msra.mxu0 0.0
    %5135 = vmatprep.mubr.f32.mxu0 0.0
    %v5136 = vand.u32 %v4234, 4294901760
    %5137 = vmatmul.mubr.f32.gmra.mrb[0].mxu0 %v5136
    %v5138 = vpop.f32.mrb[0].mxu0
    %v5139 = vadd.f32 %v5010, %v5138
    %v5140 = vpop.f32.mrb[0].mxu0
    %5141 = vmatprep.mubr.f32.mxu0 0.0
    %v5142 = vand.u32 %v4235, 4294901760
    %5143 = vmatmul.mubr.f32.gmra.mrb[0].mxu0 %v5142
    %v5144 = vpop.f32.mrb[0].mxu0
    %v5145 = vadd.f32 %v5016, %v5144
    %v5146 = vpop.f32.mrb[0].mxu0
    %5147 = vmatprep.mubr.f32.mxu0 0.0
    %v5148 = vand.u32 %v4236, 4294901760
    %5149 = vmatmul.mubr.f32.gmra.mrb[0].mxu0 %v5148
    %v5150 = vpop.f32.mrb[0].mxu0
    %v5151 = vadd.f32 %v5022, %v5150
    %v5152 = vpop.f32.mrb[0].mxu0
    %5153 = vmatprep.mubr.f32.mxu0 0.0
    %v5154 = vand.u32 %v4237, 4294901760
    %5155 = vmatmul.mubr.f32.gmra.mrb[0].mxu0 %v5154
    %v5156 = vpop.f32.mrb[0].mxu0
    %v5157 = vadd.f32 %v5028, %v5156
    %v5158 = vpop.f32.mrb[0].mxu0
    %5159 = vmatprep.mubr.f32.mxu0 0.0
    %v5160 = vand.u32 %v4238, 4294901760
    %5161 = vmatmul.mubr.f32.gmra.mrb[0].mxu0 %v5160
    %v5162 = vpop.f32.mrb[0].mxu0
    %v5163 = vadd.f32 %v5034, %v5162
    %v5164 = vpop.f32.mrb[0].mxu0
    %5165 = vmatprep.mubr.f32.mxu0 0.0
    %v5166 = vand.u32 %v4239, 4294901760
    %5167 = vmatmul.mubr.f32.gmra.mrb[0].mxu0 %v5166
    %v5168 = vpop.f32.mrb[0].mxu0
    %v5169 = vadd.f32 %v5040, %v5168
    %v5170 = vpop.f32.mrb[0].mxu0
    %5171 = vmatprep.mubr.f32.mxu0 0.0
    %v5172 = vand.u32 %v4240, 4294901760
    %5173 = vmatmul.mubr.f32.gmra.mrb[0].mxu0 %v5172
    %v5174 = vpop.f32.mrb[0].mxu0
    %v5175 = vadd.f32 %v5046, %v5174
    %v5176 = vpop.f32.mrb[0].mxu0
    %5177 = vmatprep.mubr.f32.mxu0 0.0
    %v5178 = vand.u32 %v4241, 4294901760
    %5179 = vmatmul.mubr.f32.gmra.mrb[0].mxu0 %v5178
    %v5180 = vpop.f32.mrb[0].mxu0
    %v5181 = vadd.f32 %v5052, %v5180
    %v5182 = vpop.f32.mrb[0].mxu0
    %5183 = vdwg.mxu0
    %v5184 = vld [vmem:[%s6] sm:$0xff]
    %v5185 = vld [vmem:[%s6 + $0x8] sm:$0xff]
    %v5186 = vmul.f32 %v5139, %v5184
    %v5187 = vmul.f32 %v5145, %v5184
    %v5188 = vmul.f32 %v5151, %v5184
    %v5189 = vmul.f32 %v5157, %v5184
    %v5190 = vmul.f32 %v5163, %v5184
    %v5191 = vmul.f32 %v5169, %v5184
    %v5192 = vmul.f32 %v5175, %v5184
    %v5193 = vmul.f32 %v5181, %v5184
    %v5194 = vmul.f32 %v4187, %v5185
    %v5195 = vmul.f32 %v4189, %v5185
    %v5196 = vmul.f32 %v4191, %v5185
    %v5197 = vmul.f32 %v4193, %v5185
    %v5198 = vmul.f32 %v4195, %v5185
    %v5199 = vmul.f32 %v4197, %v5185
    %v5200 = vmul.f32 %v4199, %v5185
    %v5201 = vmul.f32 %v4201, %v5185
    %v5202 = vadd.f32 %v5186, %v5194
    %v5203 = vadd.f32 %v5187, %v5195
    %v5204 = vadd.f32 %v5188, %v5196
    %v5205 = vadd.f32 %v5189, %v5197
    %v5206 = vadd.f32 %v5190, %v5198
    %v5207 = vadd.f32 %v5191, %v5199
    %v5208 = vadd.f32 %v5192, %v5200
    %v5209 = vadd.f32 %v5193, %v5201
    %v5210 = vrot.slane %v5202, 4
    %v5211 = vadd.f32 %v5202, %v5210
    %v5212 = vrot.slane %v5211, 2
    %v5213 = vadd.f32 %v5211, %v5212
    %v5214 = vrot.slane %v5213, 1
    %v5215 = vadd.f32 %v5213, %v5214
    %v5216 = vrot.slane %v5203, 4
    %v5217 = vadd.f32 %v5203, %v5216
    %v5218 = vrot.slane %v5217, 2
    %v5219 = vadd.f32 %v5217, %v5218
    %v5220 = vrot.slane %v5219, 1
    %v5221 = vadd.f32 %v5219, %v5220
    %v5222 = vrot.slane %v5204, 4
    %v5223 = vadd.f32 %v5204, %v5222
    %v5224 = vrot.slane %v5223, 2
    %v5225 = vadd.f32 %v5223, %v5224
    %v5226 = vrot.slane %v5225, 1
    %v5227 = vadd.f32 %v5225, %v5226
    %v5228 = vrot.slane %v5205, 4
    %v5229 = vadd.f32 %v5205, %v5228
    %v5230 = vrot.slane %v5229, 2
    %v5231 = vadd.f32 %v5229, %v5230
    %v5232 = vrot.slane %v5231, 1
    %v5233 = vadd.f32 %v5231, %v5232
    %v5234 = vrot.slane %v5206, 4
    %v5235 = vadd.f32 %v5206, %v5234
    %v5236 = vrot.slane %v5235, 2
    %v5237 = vadd.f32 %v5235, %v5236
    %v5238 = vrot.slane %v5237, 1
    %v5239 = vadd.f32 %v5237, %v5238
    %v5240 = vrot.slane %v5207, 4
    %v5241 = vadd.f32 %v5207, %v5240
    %v5242 = vrot.slane %v5241, 2
    %v5243 = vadd.f32 %v5241, %v5242
    %v5244 = vrot.slane %v5243, 1
    %v5245 = vadd.f32 %v5243, %v5244
    %v5246 = vrot.slane %v5208, 4
    %v5247 = vadd.f32 %v5208, %v5246
    %v5248 = vrot.slane %v5247, 2
    %v5249 = vadd.f32 %v5247, %v5248
    %v5250 = vrot.slane %v5249, 1
    %v5251 = vadd.f32 %v5249, %v5250
    %v5252 = vrot.slane %v5209, 4
    %v5253 = vadd.f32 %v5209, %v5252
    %v5254 = vrot.slane %v5253, 2
    %v5255 = vadd.f32 %v5253, %v5254
    %v5256 = vrot.slane %v5255, 1
    %v5257 = vadd.f32 %v5255, %v5256
    %v5266 = vsel %vm3459, %v5221, %v5215
    %v5267 = vsel %vm3461, %v5227, %v5266
    %v5268 = vsel %vm3463, %v5233, %v5267
    %v5269 = vsel %vm3465, %v5239, %v5268
    %v5270 = vsel %vm3467, %v5245, %v5269
    %v5271 = vsel %vm3469, %v5251, %v5270
    %v5272 = vsel %vm3471, %v5257, %v5271
    %5274 = vst [vmem:[#allocation13] sm:$0xff] %v5272
    // Predicated region
    $region54: #{tpu_custom_call.1} parent=1 // pred_check
      _
    $region55: #{tpu_custom_call.1} parent=1 // pred_check_branch
      %5276 = sbr.rel (0) target = $region57
    $region56: #{tpu_custom_call.1} parent=1 // pred_region
      %s5278 = ssub.s32 128, 128
      %5279 = vsyncadd [#allocation4], %s5278
      %s5281 = sshll.u32 [#allocation13], 4
      %s5282 = int_to_ptr.vmem [resolvable:$true] %s5281
      %5284 = dma.vmem_to_hbm [thread:$0]  %s5282, 128, %s7, [#allocation4]
    $region57: #{tpu_custom_call.1} parent=1 // pred_fallthru
      _
    // Predicated region
    $region58: #{tpu_custom_call.1} parent=1 // pred_check
      _
    $region59: #{tpu_custom_call.1} parent=1 // pred_check_branch
      %5286 = sbr.rel (0) target = $region61
    $region60: #{tpu_custom_call.1} parent=1 // pred_region
      %5287 = dma.done [#allocation4], 128
    $region61: #{tpu_custom_call.1} parent=1 // pred_fallthru
      _
    %5288 = vsyncpa [#allocation3], 1
    %5289 = vsyncpa [#allocation6], 1
    %5290 = vsyncpa [#allocation9], 1
    %5291 = vsyncpa [#allocation12], 1
    %5292 = vsyncpa [#allocation4], 1

</llo_original>
